<compile_context>
chip_gen: v7x
topology: tpu7x:2x2x1
jax: 0.10.0
libtpu: 0.0.40
codegen_flags: <defaults>
</compile_context>

<pallas_src>
import functools

import jax
import jax.numpy as jnp
from jax.experimental import pallas as pl
from jax.experimental.pallas import tpu as pltpu


# ---------------------------------------------------------------------------
# Fused kernel: ConvTranspose2d(k=2, s=2) + crop + channel concat.
# Per grid step (n, i) it produces output rows [2*i*row_tile, 2*(i+1)*row_tile)
# of the final NCHW tensor for batch element n.
#
#   t1_ref: (1, Cin, row_tile, W)    input rows of this tile
#   t2_ref: (1, C2, H2, W2)          full skip tensor for batch n (stays
#                                    resident across the inner row-tile axis)
#   w_ref : (2, 2, Cout, Cin)        bf16, w_ref[kh,kw,co,ci] = weight[ci,co,kh,kw]
#   b_ref : (Cout, 1)                f32 bias
#   e_ref : (2, W, 2W)               bf16 0/1 spread matrices: col j -> col 2j(+kw)
#   o_ref : (1, C2+Cout, 2*row_tile, 2W)
# ---------------------------------------------------------------------------
def _up_fused_kernel(t1_ref, t2_ref, w_ref, b_ref, e_ref, o_ref, *,
                     c2, row_tile, w_out, diff_y, diff_x):
    i = pl.program_id(1)

    # ---- skip connection: crop (negative F.pad) + copy into channels [0, c2)
    row0 = diff_y + i * (2 * row_tile)
    o_ref[0, :c2, :, :] = t2_ref[0, :, pl.ds(row0, 2 * row_tile),
                                 pl.ds(diff_x, w_out)]

    # ---- ConvTranspose2d(k=2, s=2): each input row -> two interleaved output rows
    bias = b_ref[...]        # (Cout, 1) f32
    e0 = e_ref[0]            # (W, 2W) bf16: spreads column j -> column 2j
    e1 = e_ref[1]            #               spreads column j -> column 2j+1
    for r in range(row_tile):                               # static unroll
        x = t1_ref[0, :, r, :].astype(jnp.bfloat16)         # (Cin, W)
        # lane-interleaved copies of x (exact: 0/1 matrix, bf16 values)
        xe0 = jnp.dot(x, e0, preferred_element_type=jnp.float32).astype(jnp.bfloat16)
        xe1 = jnp.dot(x, e1, preferred_element_type=jnp.float32).astype(jnp.bfloat16)
        for kh in range(2):
            z = (jnp.dot(w_ref[kh, 0], xe0, preferred_element_type=jnp.float32)
                 + jnp.dot(w_ref[kh, 1], xe1, preferred_element_type=jnp.float32)
                 + bias)                                     # (Cout, 2W) f32
            o_ref[0, c2:, 2 * r + kh, :] = z


def up_forward(t1, t2, weight, bias, *, row_tile=None):
    """Pallas equivalent of Up.forward(t1, t2). Inputs/outputs are NCHW f32."""
    N, Cin, H, W = t1.shape
    Cout = weight.shape[1]
    C2, H2, W2 = t2.shape[1], t2.shape[2], t2.shape[3]
    Ho, Wo = 2 * H, 2 * W

    # Faithful to the PyTorch module's (quirky) indexing: diffX is computed
    # from dim 2 but crops W, diffY from dim 3 but crops H (left/top crop via
    # negative F.pad).  Equivalent to an intended crop when H/W diffs match.
    diffX = H2 - Ho
    diffY = W2 - Wo
    if H2 - diffY != Ho or W2 - diffX != Wo:
        raise ValueError("cropped skip tensor does not match upsampled size "
                         "(same constraint torch.cat would impose)")

    if row_tile is None:
        row_tile = 8 if H % 8 == 0 else H   # keep block sublane dims (8, *)-friendly
    assert H % row_tile == 0

    # Tiny one-time parameter re-layouts (done on host-side XLA, negligible).
    w_t = jnp.transpose(weight, (2, 3, 1, 0)).astype(jnp.bfloat16)   # (2,2,Cout,Cin)
    b2d = bias.astype(jnp.float32).reshape(Cout, 1)

    jj = jnp.arange(W)
    spread = jnp.zeros((2, W, Wo), jnp.float32)
    spread = spread.at[0, jj, 2 * jj].set(1.0).at[1, jj, 2 * jj + 1].set(1.0)
    spread = spread.astype(jnp.bfloat16)                             # exact 0/1

    kernel = functools.partial(
        _up_fused_kernel, c2=C2, row_tile=row_tile, w_out=Wo,
        diff_y=diffY, diff_x=diffX)

    return pl.pallas_call(
        kernel,
        out_shape=jax.ShapeDtypeStruct((N, C2 + Cout, Ho, Wo), jnp.float32),
        grid=(N, H // row_tile),
        in_specs=[
            pl.BlockSpec((1, Cin, row_tile, W), lambda n, i: (n, 0, i, 0)),
            pl.BlockSpec((1, C2, H2, W2), lambda n, i: (n, 0, 0, 0)),
            pl.BlockSpec((2, 2, Cout, Cin), lambda n, i: (0, 0, 0, 0)),
            pl.BlockSpec((Cout, 1), lambda n, i: (0, 0)),
            pl.BlockSpec((2, W, Wo), lambda n, i: (0, 0, 0)),
        ],
        out_specs=pl.BlockSpec((1, C2 + Cout, 2 * row_tile, Wo),
                               lambda n, i: (n, 0, i, 0)),
        compiler_params=pltpu.CompilerParams(
            dimension_semantics=("parallel", "parallel"),
            vmem_limit_bytes=32 * 1024 * 1024,
        ),
    )(t1, t2, w_t, b2d, spread)


def _reference(t1, t2, weight, bias):
    """Pure-JAX reference with matching numerics (bf16 operands, f32 accum)."""
    N, Cin, H, W = t1.shape
    Cout = weight.shape[1]
    xb = t1.astype(jnp.bfloat16).astype(jnp.float32)
    wb = weight.astype(jnp.bfloat16).astype(jnp.float32)
    up = jnp.zeros((N, Cout, 2 * H, 2 * W), jnp.float32)
    for kh in range(2):
        for kw in range(2):
            contrib = (jnp.einsum("nihw,io->nohw", xb, wb[:, :, kh, kw])
                       + bias[None, :, None, None])
            up = up.at[:, :, kh::2, kw::2].set(contrib)
    diffX = t2.shape[2] - up.shape[2]
    diffY = t2.shape[3] - up.shape[3]
    return jnp.concatenate([t2[:, :, diffY:, diffX:], up], axis=1)


if __name__ == "__main__":
    key = jax.random.PRNGKey(0)
    k_w, k_b, k_t1, k_t2 = jax.random.split(key, 4)

    in_channels, out_channels, skip_channels = 8, 4, 6
    N, H, W = 2, 16, 16
    H2, W2 = 36, 36   # skip connection slightly larger -> exercises the crop

    weight = 0.1 * jax.random.normal(
        k_w, (in_channels, out_channels, 2, 2), dtype=jnp.float32)
    bias = 0.1 * jax.random.normal(k_b, (out_channels,), dtype=jnp.float32)
    t1 = jax.random.normal(k_t1, (N, in_channels, H, W), dtype=jnp.float32)
    t2 = jax.random.normal(k_t2, (N, skip_channels, H2, W2), dtype=jnp.float32)

    out = jax.block_until_ready(jax.jit(up_forward)(t1, t2, weight, bias))

    ref = _reference(t1, t2, weight, bias)
    assert out.shape == (N, skip_channels + out_channels, 2 * H, 2 * W), out.shape
    max_err = float(jnp.max(jnp.abs(out - ref)))
    assert jnp.allclose(out, ref, atol=1e-4, rtol=1e-4), f"mismatch, max err {max_err}"

    print("KERNEL_OK")
</pallas_src>

<mosaic_0001>
module attributes {stable_mosaic.version = 11 : i64} {
  func.func @_up_fused_kernel(%arg0: i32, %arg1: i32, %arg2: memref<1x8x8x16xf32, #tpu.memory_space<vmem>>, %arg3: memref<1x6x36x36xf32, #tpu.memory_space<vmem>>, %arg4: memref<2x2x4x8xbf16, #tpu.memory_space<vmem>>, %arg5: memref<4x1xf32, #tpu.memory_space<vmem>>, %arg6: memref<2x16x32xbf16, #tpu.memory_space<vmem>>, %arg7: memref<1x10x16x32xf32, #tpu.memory_space<vmem>>) attributes {dimension_semantics = [#tpu.dimension_semantics<parallel>, #tpu.dimension_semantics<parallel>], iteration_bounds = array<i64: 2, 2>, scalar_prefetch = 0 : i64, scratch_operands = 0 : i64, tpu.core_type = #tpu.core_type<tc>, window_params = [{transform_indices = @transform_0, window_bounds = array<i64: 1, 8, 8, 16>}, {transform_indices = @transform_1, window_bounds = array<i64: 1, 6, 36, 36>}, {pipeline_mode = #tpu.pipeline_mode<synchronous>, transform_indices = @transform_2, window_bounds = array<i64: 2, 2, 4, 8>}, {pipeline_mode = #tpu.pipeline_mode<synchronous>, transform_indices = @transform_3, window_bounds = array<i64: 4, 1>}, {pipeline_mode = #tpu.pipeline_mode<synchronous>, transform_indices = @transform_4, window_bounds = array<i64: 2, 16, 32>}, {transform_indices = @transform_5, window_bounds = array<i64: 1, 10, 16, 32>}]} {
    %c16_i32 = arith.constant 16 : i32
    %0 = arith.muli %arg1, %c16_i32 : i32
    %c4_i32 = arith.constant 4 : i32
    %1 = arith.addi %c4_i32, %0 : i32
    %c0 = arith.constant 0 : index
    %c0_0 = arith.constant 0 : index
    %2 = arith.index_cast %1 : i32 to index
    %c4 = arith.constant 4 : index
    %3 = vector.load %arg3[%c0, %c0_0, %2, %c4] : memref<1x6x36x36xf32, #tpu.memory_space<vmem>>, vector<1x6x16x32xf32>
    %4 = vector.shape_cast %3 : vector<1x6x16x32xf32> to vector<6x16x32xf32>
    %c0_1 = arith.constant 0 : index
    %c0_2 = arith.constant 0 : index
    %c0_3 = arith.constant 0 : index
    %c0_4 = arith.constant 0 : index
    %5 = vector.load %arg7[%c0_1, %c0_2, %c0_3, %c0_4] : memref<1x10x16x32xf32, #tpu.memory_space<vmem>>, vector<1x6x16x32xf32>
    %6 = vector.shape_cast %5 : vector<1x6x16x32xf32> to vector<6x16x32xf32>
    %7 = vector.shape_cast %4 : vector<6x16x32xf32> to vector<1x6x16x32xf32>
    tpu.vector_store %arg7[%c0_1, %c0_2, %c0_3, %c0_4], %7 {strides = array<i32>} : memref<1x10x16x32xf32, #tpu.memory_space<vmem>>, vector<1x6x16x32xf32>,
    %c0_5 = arith.constant 0 : index
    %c0_6 = arith.constant 0 : index
    %8 = vector.load %arg5[%c0_5, %c0_6] : memref<4x1xf32, #tpu.memory_space<vmem>>, vector<4x1xf32>
    %c0_7 = arith.constant 0 : index
    %c0_8 = arith.constant 0 : index
    %c0_9 = arith.constant 0 : index
    %9 = vector.load %arg6[%c0_7, %c0_8, %c0_9] : memref<2x16x32xbf16, #tpu.memory_space<vmem>>, vector<1x16x32xbf16>
    %10 = vector.shape_cast %9 : vector<1x16x32xbf16> to vector<16x32xbf16>
    %c1 = arith.constant 1 : index
    %c0_10 = arith.constant 0 : index
    %c0_11 = arith.constant 0 : index
    %11 = vector.load %arg6[%c1, %c0_10, %c0_11] : memref<2x16x32xbf16, #tpu.memory_space<vmem>>, vector<1x16x32xbf16>
    %12 = vector.shape_cast %11 : vector<1x16x32xbf16> to vector<16x32xbf16>
    %c0_12 = arith.constant 0 : index
    %c0_13 = arith.constant 0 : index
    %c0_14 = arith.constant 0 : index
    %c0_15 = arith.constant 0 : index
    %13 = vector.load %arg2[%c0_12, %c0_13, %c0_14, %c0_15] : memref<1x8x8x16xf32, #tpu.memory_space<vmem>>, vector<1x8x1x16xf32>
    %14 = vector.shape_cast %13 : vector<1x8x1x16xf32> to vector<8x16xf32>
    %15 = arith.truncf %14 : vector<8x16xf32> to vector<8x16xbf16>
    %cst = arith.constant dense<0.000000e+00> : vector<8x32xf32>
    %16 = tpu.matmul %15, %10, %cst {dimension_numbers = #tpu.dot_dimension_numbers<[1], [0], [0], [1], [0, 0, 1, 1], [], []>} : vector<8x16xbf16>, vector<16x32xbf16>, vector<8x32xf32> -> vector<8x32xf32>
    %17 = arith.truncf %16 : vector<8x32xf32> to vector<8x32xbf16>
    %cst_16 = arith.constant dense<0.000000e+00> : vector<8x32xf32>
    %18 = tpu.matmul %15, %12, %cst_16 {dimension_numbers = #tpu.dot_dimension_numbers<[1], [0], [0], [1], [0, 0, 1, 1], [], []>} : vector<8x16xbf16>, vector<16x32xbf16>, vector<8x32xf32> -> vector<8x32xf32>
    %19 = arith.truncf %18 : vector<8x32xf32> to vector<8x32xbf16>
    %c0_17 = arith.constant 0 : index
    %c0_18 = arith.constant 0 : index
    %c0_19 = arith.constant 0 : index
    %c0_20 = arith.constant 0 : index
    %20 = vector.load %arg4[%c0_17, %c0_18, %c0_19, %c0_20] : memref<2x2x4x8xbf16, #tpu.memory_space<vmem>>, vector<1x1x4x8xbf16>
    %21 = vector.shape_cast %20 : vector<1x1x4x8xbf16> to vector<4x8xbf16>
    %cst_21 = arith.constant dense<0.000000e+00> : vector<4x32xf32>
    %22 = tpu.matmul %21, %17, %cst_21 {dimension_numbers = #tpu.dot_dimension_numbers<[1], [0], [0], [1], [0, 0, 1, 1], [], []>} : vector<4x8xbf16>, vector<8x32xbf16>, vector<4x32xf32> -> vector<4x32xf32>
    %c0_22 = arith.constant 0 : index
    %c1_23 = arith.constant 1 : index
    %c0_24 = arith.constant 0 : index
    %c0_25 = arith.constant 0 : index
    %23 = vector.load %arg4[%c0_22, %c1_23, %c0_24, %c0_25] : memref<2x2x4x8xbf16, #tpu.memory_space<vmem>>, vector<1x1x4x8xbf16>
    %24 = vector.shape_cast %23 : vector<1x1x4x8xbf16> to vector<4x8xbf16>
    %cst_26 = arith.constant dense<0.000000e+00> : vector<4x32xf32>
    %25 = tpu.matmul %24, %19, %cst_26 {dimension_numbers = #tpu.dot_dimension_numbers<[1], [0], [0], [1], [0, 0, 1, 1], [], []>} : vector<4x8xbf16>, vector<8x32xbf16>, vector<4x32xf32> -> vector<4x32xf32>
    %26 = arith.addf %22, %25 : vector<4x32xf32>
    %27 = vector.broadcast %8 : vector<4x1xf32> to vector<4x32xf32>
    %28 = arith.addf %26, %27 : vector<4x32xf32>
    %c0_27 = arith.constant 0 : index
    %c6 = arith.constant 6 : index
    %c0_28 = arith.constant 0 : index
    %c0_29 = arith.constant 0 : index
    %29 = vector.load %arg7[%c0_27, %c6, %c0_28, %c0_29] : memref<1x10x16x32xf32, #tpu.memory_space<vmem>>, vector<1x4x1x32xf32>
    %30 = vector.shape_cast %29 : vector<1x4x1x32xf32> to vector<4x32xf32>
    %31 = vector.shape_cast %28 : vector<4x32xf32> to vector<1x4x1x32xf32>
    tpu.vector_store %arg7[%c0_27, %c6, %c0_28, %c0_29], %31 {strides = array<i32>} : memref<1x10x16x32xf32, #tpu.memory_space<vmem>>, vector<1x4x1x32xf32>,
    %c1_30 = arith.constant 1 : index
    %c0_31 = arith.constant 0 : index
    %c0_32 = arith.constant 0 : index
    %c0_33 = arith.constant 0 : index
    %32 = vector.load %arg4[%c1_30, %c0_31, %c0_32, %c0_33] : memref<2x2x4x8xbf16, #tpu.memory_space<vmem>>, vector<1x1x4x8xbf16>
    %33 = vector.shape_cast %32 : vector<1x1x4x8xbf16> to vector<4x8xbf16>
    %cst_34 = arith.constant dense<0.000000e+00> : vector<4x32xf32>
    %34 = tpu.matmul %33, %17, %cst_34 {dimension_numbers = #tpu.dot_dimension_numbers<[1], [0], [0], [1], [0, 0, 1, 1], [], []>} : vector<4x8xbf16>, vector<8x32xbf16>, vector<4x32xf32> -> vector<4x32xf32>
    %c1_35 = arith.constant 1 : index
    %c1_36 = arith.constant 1 : index
    %c0_37 = arith.constant 0 : index
    %c0_38 = arith.constant 0 : index
    %35 = vector.load %arg4[%c1_35, %c1_36, %c0_37, %c0_38] : memref<2x2x4x8xbf16, #tpu.memory_space<vmem>>, vector<1x1x4x8xbf16>
    %36 = vector.shape_cast %35 : vector<1x1x4x8xbf16> to vector<4x8xbf16>
    %cst_39 = arith.constant dense<0.000000e+00> : vector<4x32xf32>
    %37 = tpu.matmul %36, %19, %cst_39 {dimension_numbers = #tpu.dot_dimension_numbers<[1], [0], [0], [1], [0, 0, 1, 1], [], []>} : vector<4x8xbf16>, vector<8x32xbf16>, vector<4x32xf32> -> vector<4x32xf32>
    %38 = arith.addf %34, %37 : vector<4x32xf32>
    %39 = vector.broadcast %8 : vector<4x1xf32> to vector<4x32xf32>
    %40 = arith.addf %38, %39 : vector<4x32xf32>
    %c0_40 = arith.constant 0 : index
    %c6_41 = arith.constant 6 : index
    %c1_42 = arith.constant 1 : index
    %c0_43 = arith.constant 0 : index
    %41 = vector.load %arg7[%c0_40, %c6_41, %c1_42, %c0_43] : memref<1x10x16x32xf32, #tpu.memory_space<vmem>>, vector<1x4x1x32xf32>
    %42 = vector.shape_cast %41 : vector<1x4x1x32xf32> to vector<4x32xf32>
    %43 = vector.shape_cast %40 : vector<4x32xf32> to vector<1x4x1x32xf32>
    tpu.vector_store %arg7[%c0_40, %c6_41, %c1_42, %c0_43], %43 {strides = array<i32>} : memref<1x10x16x32xf32, #tpu.memory_space<vmem>>, vector<1x4x1x32xf32>,
    %c0_44 = arith.constant 0 : index
    %c0_45 = arith.constant 0 : index
    %c1_46 = arith.constant 1 : index
    %c0_47 = arith.constant 0 : index
    %44 = vector.load %arg2[%c0_44, %c0_45, %c1_46, %c0_47] : memref<1x8x8x16xf32, #tpu.memory_space<vmem>>, vector<1x8x1x16xf32>
    %45 = vector.shape_cast %44 : vector<1x8x1x16xf32> to vector<8x16xf32>
    %46 = arith.truncf %45 : vector<8x16xf32> to vector<8x16xbf16>
    %cst_48 = arith.constant dense<0.000000e+00> : vector<8x32xf32>
    %47 = tpu.matmul %46, %10, %cst_48 {dimension_numbers = #tpu.dot_dimension_numbers<[1], [0], [0], [1], [0, 0, 1, 1], [], []>} : vector<8x16xbf16>, vector<16x32xbf16>, vector<8x32xf32> -> vector<8x32xf32>
    %48 = arith.truncf %47 : vector<8x32xf32> to vector<8x32xbf16>
    %cst_49 = arith.constant dense<0.000000e+00> : vector<8x32xf32>
    %49 = tpu.matmul %46, %12, %cst_49 {dimension_numbers = #tpu.dot_dimension_numbers<[1], [0], [0], [1], [0, 0, 1, 1], [], []>} : vector<8x16xbf16>, vector<16x32xbf16>, vector<8x32xf32> -> vector<8x32xf32>
    %50 = arith.truncf %49 : vector<8x32xf32> to vector<8x32xbf16>
    %c0_50 = arith.constant 0 : index
    %c0_51 = arith.constant 0 : index
    %c0_52 = arith.constant 0 : index
    %c0_53 = arith.constant 0 : index
    %51 = vector.load %arg4[%c0_50, %c0_51, %c0_52, %c0_53] : memref<2x2x4x8xbf16, #tpu.memory_space<vmem>>, vector<1x1x4x8xbf16>
    %52 = vector.shape_cast %51 : vector<1x1x4x8xbf16> to vector<4x8xbf16>
    %cst_54 = arith.constant dense<0.000000e+00> : vector<4x32xf32>
    %53 = tpu.matmul %52, %48, %cst_54 {dimension_numbers = #tpu.dot_dimension_numbers<[1], [0], [0], [1], [0, 0, 1, 1], [], []>} : vector<4x8xbf16>, vector<8x32xbf16>, vector<4x32xf32> -> vector<4x32xf32>
    %c0_55 = arith.constant 0 : index
    %c1_56 = arith.constant 1 : index
    %c0_57 = arith.constant 0 : index
    %c0_58 = arith.constant 0 : index
    %54 = vector.load %arg4[%c0_55, %c1_56, %c0_57, %c0_58] : memref<2x2x4x8xbf16, #tpu.memory_space<vmem>>, vector<1x1x4x8xbf16>
    %55 = vector.shape_cast %54 : vector<1x1x4x8xbf16> to vector<4x8xbf16>
    %cst_59 = arith.constant dense<0.000000e+00> : vector<4x32xf32>
    %56 = tpu.matmul %55, %50, %cst_59 {dimension_numbers = #tpu.dot_dimension_numbers<[1], [0], [0], [1], [0, 0, 1, 1], [], []>} : vector<4x8xbf16>, vector<8x32xbf16>, vector<4x32xf32> -> vector<4x32xf32>
    %57 = arith.addf %53, %56 : vector<4x32xf32>
    %58 = vector.broadcast %8 : vector<4x1xf32> to vector<4x32xf32>
    %59 = arith.addf %57, %58 : vector<4x32xf32>
    %c0_60 = arith.constant 0 : index
    %c6_61 = arith.constant 6 : index
    %c2 = arith.constant 2 : index
    %c0_62 = arith.constant 0 : index
    %60 = vector.load %arg7[%c0_60, %c6_61, %c2, %c0_62] : memref<1x10x16x32xf32, #tpu.memory_space<vmem>>, vector<1x4x1x32xf32>
    %61 = vector.shape_cast %60 : vector<1x4x1x32xf32> to vector<4x32xf32>
    %62 = vector.shape_cast %59 : vector<4x32xf32> to vector<1x4x1x32xf32>
    tpu.vector_store %arg7[%c0_60, %c6_61, %c2, %c0_62], %62 {strides = array<i32>} : memref<1x10x16x32xf32, #tpu.memory_space<vmem>>, vector<1x4x1x32xf32>,
    %c1_63 = arith.constant 1 : index
    %c0_64 = arith.constant 0 : index
    %c0_65 = arith.constant 0 : index
    %c0_66 = arith.constant 0 : index
    %63 = vector.load %arg4[%c1_63, %c0_64, %c0_65, %c0_66] : memref<2x2x4x8xbf16, #tpu.memory_space<vmem>>, vector<1x1x4x8xbf16>
    %64 = vector.shape_cast %63 : vector<1x1x4x8xbf16> to vector<4x8xbf16>
    %cst_67 = arith.constant dense<0.000000e+00> : vector<4x32xf32>
    %65 = tpu.matmul %64, %48, %cst_67 {dimension_numbers = #tpu.dot_dimension_numbers<[1], [0], [0], [1], [0, 0, 1, 1], [], []>} : vector<4x8xbf16>, vector<8x32xbf16>, vector<4x32xf32> -> vector<4x32xf32>
    %c1_68 = arith.constant 1 : index
    %c1_69 = arith.constant 1 : index
    %c0_70 = arith.constant 0 : index
    %c0_71 = arith.constant 0 : index
    %66 = vector.load %arg4[%c1_68, %c1_69, %c0_70, %c0_71] : memref<2x2x4x8xbf16, #tpu.memory_space<vmem>>, vector<1x1x4x8xbf16>
    %67 = vector.shape_cast %66 : vector<1x1x4x8xbf16> to vector<4x8xbf16>
    %cst_72 = arith.constant dense<0.000000e+00> : vector<4x32xf32>
    %68 = tpu.matmul %67, %50, %cst_72 {dimension_numbers = #tpu.dot_dimension_numbers<[1], [0], [0], [1], [0, 0, 1, 1], [], []>} : vector<4x8xbf16>, vector<8x32xbf16>, vector<4x32xf32> -> vector<4x32xf32>
    %69 = arith.addf %65, %68 : vector<4x32xf32>
    %70 = vector.broadcast %8 : vector<4x1xf32> to vector<4x32xf32>
    %71 = arith.addf %69, %70 : vector<4x32xf32>
    %c0_73 = arith.constant 0 : index
    %c6_74 = arith.constant 6 : index
    %c3 = arith.constant 3 : index
    %c0_75 = arith.constant 0 : index
    %72 = vector.load %arg7[%c0_73, %c6_74, %c3, %c0_75] : memref<1x10x16x32xf32, #tpu.memory_space<vmem>>, vector<1x4x1x32xf32>
    %73 = vector.shape_cast %72 : vector<1x4x1x32xf32> to vector<4x32xf32>
    %74 = vector.shape_cast %71 : vector<4x32xf32> to vector<1x4x1x32xf32>
    tpu.vector_store %arg7[%c0_73, %c6_74, %c3, %c0_75], %74 {strides = array<i32>} : memref<1x10x16x32xf32, #tpu.memory_space<vmem>>, vector<1x4x1x32xf32>,
    %c0_76 = arith.constant 0 : index
    %c0_77 = arith.constant 0 : index
    %c2_78 = arith.constant 2 : index
    %c0_79 = arith.constant 0 : index
    %75 = vector.load %arg2[%c0_76, %c0_77, %c2_78, %c0_79] : memref<1x8x8x16xf32, #tpu.memory_space<vmem>>, vector<1x8x1x16xf32>
    %76 = vector.shape_cast %75 : vector<1x8x1x16xf32> to vector<8x16xf32>
    %77 = arith.truncf %76 : vector<8x16xf32> to vector<8x16xbf16>
    %cst_80 = arith.constant dense<0.000000e+00> : vector<8x32xf32>
    %78 = tpu.matmul %77, %10, %cst_80 {dimension_numbers = #tpu.dot_dimension_numbers<[1], [0], [0], [1], [0, 0, 1, 1], [], []>} : vector<8x16xbf16>, vector<16x32xbf16>, vector<8x32xf32> -> vector<8x32xf32>
    %79 = arith.truncf %78 : vector<8x32xf32> to vector<8x32xbf16>
    %cst_81 = arith.constant dense<0.000000e+00> : vector<8x32xf32>
    %80 = tpu.matmul %77, %12, %cst_81 {dimension_numbers = #tpu.dot_dimension_numbers<[1], [0], [0], [1], [0, 0, 1, 1], [], []>} : vector<8x16xbf16>, vector<16x32xbf16>, vector<8x32xf32> -> vector<8x32xf32>
    %81 = arith.truncf %80 : vector<8x32xf32> to vector<8x32xbf16>
    %c0_82 = arith.constant 0 : index
    %c0_83 = arith.constant 0 : index
    %c0_84 = arith.constant 0 : index
    %c0_85 = arith.constant 0 : index
    %82 = vector.load %arg4[%c0_82, %c0_83, %c0_84, %c0_85] : memref<2x2x4x8xbf16, #tpu.memory_space<vmem>>, vector<1x1x4x8xbf16>
    %83 = vector.shape_cast %82 : vector<1x1x4x8xbf16> to vector<4x8xbf16>
    %cst_86 = arith.constant dense<0.000000e+00> : vector<4x32xf32>
    %84 = tpu.matmul %83, %79, %cst_86 {dimension_numbers = #tpu.dot_dimension_numbers<[1], [0], [0], [1], [0, 0, 1, 1], [], []>} : vector<4x8xbf16>, vector<8x32xbf16>, vector<4x32xf32> -> vector<4x32xf32>
    %c0_87 = arith.constant 0 : index
    %c1_88 = arith.constant 1 : index
    %c0_89 = arith.constant 0 : index
    %c0_90 = arith.constant 0 : index
    %85 = vector.load %arg4[%c0_87, %c1_88, %c0_89, %c0_90] : memref<2x2x4x8xbf16, #tpu.memory_space<vmem>>, vector<1x1x4x8xbf16>
    %86 = vector.shape_cast %85 : vector<1x1x4x8xbf16> to vector<4x8xbf16>
    %cst_91 = arith.constant dense<0.000000e+00> : vector<4x32xf32>
    %87 = tpu.matmul %86, %81, %cst_91 {dimension_numbers = #tpu.dot_dimension_numbers<[1], [0], [0], [1], [0, 0, 1, 1], [], []>} : vector<4x8xbf16>, vector<8x32xbf16>, vector<4x32xf32> -> vector<4x32xf32>
    %88 = arith.addf %84, %87 : vector<4x32xf32>
    %89 = vector.broadcast %8 : vector<4x1xf32> to vector<4x32xf32>
    %90 = arith.addf %88, %89 : vector<4x32xf32>
    %c0_92 = arith.constant 0 : index
    %c6_93 = arith.constant 6 : index
    %c4_94 = arith.constant 4 : index
    %c0_95 = arith.constant 0 : index
    %91 = vector.load %arg7[%c0_92, %c6_93, %c4_94, %c0_95] : memref<1x10x16x32xf32, #tpu.memory_space<vmem>>, vector<1x4x1x32xf32>
    %92 = vector.shape_cast %91 : vector<1x4x1x32xf32> to vector<4x32xf32>
    %93 = vector.shape_cast %90 : vector<4x32xf32> to vector<1x4x1x32xf32>
    tpu.vector_store %arg7[%c0_92, %c6_93, %c4_94, %c0_95], %93 {strides = array<i32>} : memref<1x10x16x32xf32, #tpu.memory_space<vmem>>, vector<1x4x1x32xf32>,
    %c1_96 = arith.constant 1 : index
    %c0_97 = arith.constant 0 : index
    %c0_98 = arith.constant 0 : index
    %c0_99 = arith.constant 0 : index
    %94 = vector.load %arg4[%c1_96, %c0_97, %c0_98, %c0_99] : memref<2x2x4x8xbf16, #tpu.memory_space<vmem>>, vector<1x1x4x8xbf16>
    %95 = vector.shape_cast %94 : vector<1x1x4x8xbf16> to vector<4x8xbf16>
    %cst_100 = arith.constant dense<0.000000e+00> : vector<4x32xf32>
    %96 = tpu.matmul %95, %79, %cst_100 {dimension_numbers = #tpu.dot_dimension_numbers<[1], [0], [0], [1], [0, 0, 1, 1], [], []>} : vector<4x8xbf16>, vector<8x32xbf16>, vector<4x32xf32> -> vector<4x32xf32>
    %c1_101 = arith.constant 1 : index
    %c1_102 = arith.constant 1 : index
    %c0_103 = arith.constant 0 : index
    %c0_104 = arith.constant 0 : index
    %97 = vector.load %arg4[%c1_101, %c1_102, %c0_103, %c0_104] : memref<2x2x4x8xbf16, #tpu.memory_space<vmem>>, vector<1x1x4x8xbf16>
    %98 = vector.shape_cast %97 : vector<1x1x4x8xbf16> to vector<4x8xbf16>
    %cst_105 = arith.constant dense<0.000000e+00> : vector<4x32xf32>
    %99 = tpu.matmul %98, %81, %cst_105 {dimension_numbers = #tpu.dot_dimension_numbers<[1], [0], [0], [1], [0, 0, 1, 1], [], []>} : vector<4x8xbf16>, vector<8x32xbf16>, vector<4x32xf32> -> vector<4x32xf32>
    %100 = arith.addf %96, %99 : vector<4x32xf32>
    %101 = vector.broadcast %8 : vector<4x1xf32> to vector<4x32xf32>
    %102 = arith.addf %100, %101 : vector<4x32xf32>
    %c0_106 = arith.constant 0 : index
    %c6_107 = arith.constant 6 : index
    %c5 = arith.constant 5 : index
    %c0_108 = arith.constant 0 : index
    %103 = vector.load %arg7[%c0_106, %c6_107, %c5, %c0_108] : memref<1x10x16x32xf32, #tpu.memory_space<vmem>>, vector<1x4x1x32xf32>
    %104 = vector.shape_cast %103 : vector<1x4x1x32xf32> to vector<4x32xf32>
    %105 = vector.shape_cast %102 : vector<4x32xf32> to vector<1x4x1x32xf32>
    tpu.vector_store %arg7[%c0_106, %c6_107, %c5, %c0_108], %105 {strides = array<i32>} : memref<1x10x16x32xf32, #tpu.memory_space<vmem>>, vector<1x4x1x32xf32>,
    %c0_109 = arith.constant 0 : index
    %c0_110 = arith.constant 0 : index
    %c3_111 = arith.constant 3 : index
    %c0_112 = arith.constant 0 : index
    %106 = vector.load %arg2[%c0_109, %c0_110, %c3_111, %c0_112] : memref<1x8x8x16xf32, #tpu.memory_space<vmem>>, vector<1x8x1x16xf32>
    %107 = vector.shape_cast %106 : vector<1x8x1x16xf32> to vector<8x16xf32>
    %108 = arith.truncf %107 : vector<8x16xf32> to vector<8x16xbf16>
    %cst_113 = arith.constant dense<0.000000e+00> : vector<8x32xf32>
    %109 = tpu.matmul %108, %10, %cst_113 {dimension_numbers = #tpu.dot_dimension_numbers<[1], [0], [0], [1], [0, 0, 1, 1], [], []>} : vector<8x16xbf16>, vector<16x32xbf16>, vector<8x32xf32> -> vector<8x32xf32>
    %110 = arith.truncf %109 : vector<8x32xf32> to vector<8x32xbf16>
    %cst_114 = arith.constant dense<0.000000e+00> : vector<8x32xf32>
    %111 = tpu.matmul %108, %12, %cst_114 {dimension_numbers = #tpu.dot_dimension_numbers<[1], [0], [0], [1], [0, 0, 1, 1], [], []>} : vector<8x16xbf16>, vector<16x32xbf16>, vector<8x32xf32> -> vector<8x32xf32>
    %112 = arith.truncf %111 : vector<8x32xf32> to vector<8x32xbf16>
    %c0_115 = arith.constant 0 : index
    %c0_116 = arith.constant 0 : index
    %c0_117 = arith.constant 0 : index
    %c0_118 = arith.constant 0 : index
    %113 = vector.load %arg4[%c0_115, %c0_116, %c0_117, %c0_118] : memref<2x2x4x8xbf16, #tpu.memory_space<vmem>>, vector<1x1x4x8xbf16>
    %114 = vector.shape_cast %113 : vector<1x1x4x8xbf16> to vector<4x8xbf16>
    %cst_119 = arith.constant dense<0.000000e+00> : vector<4x32xf32>
    %115 = tpu.matmul %114, %110, %cst_119 {dimension_numbers = #tpu.dot_dimension_numbers<[1], [0], [0], [1], [0, 0, 1, 1], [], []>} : vector<4x8xbf16>, vector<8x32xbf16>, vector<4x32xf32> -> vector<4x32xf32>
    %c0_120 = arith.constant 0 : index
    %c1_121 = arith.constant 1 : index
    %c0_122 = arith.constant 0 : index
    %c0_123 = arith.constant 0 : index
    %116 = vector.load %arg4[%c0_120, %c1_121, %c0_122, %c0_123] : memref<2x2x4x8xbf16, #tpu.memory_space<vmem>>, vector<1x1x4x8xbf16>
    %117 = vector.shape_cast %116 : vector<1x1x4x8xbf16> to vector<4x8xbf16>
    %cst_124 = arith.constant dense<0.000000e+00> : vector<4x32xf32>
    %118 = tpu.matmul %117, %112, %cst_124 {dimension_numbers = #tpu.dot_dimension_numbers<[1], [0], [0], [1], [0, 0, 1, 1], [], []>} : vector<4x8xbf16>, vector<8x32xbf16>, vector<4x32xf32> -> vector<4x32xf32>
    %119 = arith.addf %115, %118 : vector<4x32xf32>
    %120 = vector.broadcast %8 : vector<4x1xf32> to vector<4x32xf32>
    %121 = arith.addf %119, %120 : vector<4x32xf32>
    %c0_125 = arith.constant 0 : index
    %c6_126 = arith.constant 6 : index
    %c6_127 = arith.constant 6 : index
    %c0_128 = arith.constant 0 : index
    %122 = vector.load %arg7[%c0_125, %c6_126, %c6_127, %c0_128] : memref<1x10x16x32xf32, #tpu.memory_space<vmem>>, vector<1x4x1x32xf32>
    %123 = vector.shape_cast %122 : vector<1x4x1x32xf32> to vector<4x32xf32>
    %124 = vector.shape_cast %121 : vector<4x32xf32> to vector<1x4x1x32xf32>
    tpu.vector_store %arg7[%c0_125, %c6_126, %c6_127, %c0_128], %124 {strides = array<i32>} : memref<1x10x16x32xf32, #tpu.memory_space<vmem>>, vector<1x4x1x32xf32>,
    %c1_129 = arith.constant 1 : index
    %c0_130 = arith.constant 0 : index
    %c0_131 = arith.constant 0 : index
    %c0_132 = arith.constant 0 : index
    %125 = vector.load %arg4[%c1_129, %c0_130, %c0_131, %c0_132] : memref<2x2x4x8xbf16, #tpu.memory_space<vmem>>, vector<1x1x4x8xbf16>
    %126 = vector.shape_cast %125 : vector<1x1x4x8xbf16> to vector<4x8xbf16>
    %cst_133 = arith.constant dense<0.000000e+00> : vector<4x32xf32>
    %127 = tpu.matmul %126, %110, %cst_133 {dimension_numbers = #tpu.dot_dimension_numbers<[1], [0], [0], [1], [0, 0, 1, 1], [], []>} : vector<4x8xbf16>, vector<8x32xbf16>, vector<4x32xf32> -> vector<4x32xf32>
    %c1_134 = arith.constant 1 : index
    %c1_135 = arith.constant 1 : index
    %c0_136 = arith.constant 0 : index
    %c0_137 = arith.constant 0 : index
    %128 = vector.load %arg4[%c1_134, %c1_135, %c0_136, %c0_137] : memref<2x2x4x8xbf16, #tpu.memory_space<vmem>>, vector<1x1x4x8xbf16>
    %129 = vector.shape_cast %128 : vector<1x1x4x8xbf16> to vector<4x8xbf16>
    %cst_138 = arith.constant dense<0.000000e+00> : vector<4x32xf32>
    %130 = tpu.matmul %129, %112, %cst_138 {dimension_numbers = #tpu.dot_dimension_numbers<[1], [0], [0], [1], [0, 0, 1, 1], [], []>} : vector<4x8xbf16>, vector<8x32xbf16>, vector<4x32xf32> -> vector<4x32xf32>
    %131 = arith.addf %127, %130 : vector<4x32xf32>
    %132 = vector.broadcast %8 : vector<4x1xf32> to vector<4x32xf32>
    %133 = arith.addf %131, %132 : vector<4x32xf32>
    %c0_139 = arith.constant 0 : index
    %c6_140 = arith.constant 6 : index
    %c7 = arith.constant 7 : index
    %c0_141 = arith.constant 0 : index
    %134 = vector.load %arg7[%c0_139, %c6_140, %c7, %c0_141] : memref<1x10x16x32xf32, #tpu.memory_space<vmem>>, vector<1x4x1x32xf32>
    %135 = vector.shape_cast %134 : vector<1x4x1x32xf32> to vector<4x32xf32>
    %136 = vector.shape_cast %133 : vector<4x32xf32> to vector<1x4x1x32xf32>
    tpu.vector_store %arg7[%c0_139, %c6_140, %c7, %c0_141], %136 {strides = array<i32>} : memref<1x10x16x32xf32, #tpu.memory_space<vmem>>, vector<1x4x1x32xf32>,
    %c0_142 = arith.constant 0 : index
    %c0_143 = arith.constant 0 : index
    %c4_144 = arith.constant 4 : index
    %c0_145 = arith.constant 0 : index
    %137 = vector.load %arg2[%c0_142, %c0_143, %c4_144, %c0_145] : memref<1x8x8x16xf32, #tpu.memory_space<vmem>>, vector<1x8x1x16xf32>
    %138 = vector.shape_cast %137 : vector<1x8x1x16xf32> to vector<8x16xf32>
    %139 = arith.truncf %138 : vector<8x16xf32> to vector<8x16xbf16>
    %cst_146 = arith.constant dense<0.000000e+00> : vector<8x32xf32>
    %140 = tpu.matmul %139, %10, %cst_146 {dimension_numbers = #tpu.dot_dimension_numbers<[1], [0], [0], [1], [0, 0, 1, 1], [], []>} : vector<8x16xbf16>, vector<16x32xbf16>, vector<8x32xf32> -> vector<8x32xf32>
    %141 = arith.truncf %140 : vector<8x32xf32> to vector<8x32xbf16>
    %cst_147 = arith.constant dense<0.000000e+00> : vector<8x32xf32>
    %142 = tpu.matmul %139, %12, %cst_147 {dimension_numbers = #tpu.dot_dimension_numbers<[1], [0], [0], [1], [0, 0, 1, 1], [], []>} : vector<8x16xbf16>, vector<16x32xbf16>, vector<8x32xf32> -> vector<8x32xf32>
    %143 = arith.truncf %142 : vector<8x32xf32> to vector<8x32xbf16>
    %c0_148 = arith.constant 0 : index
    %c0_149 = arith.constant 0 : index
    %c0_150 = arith.constant 0 : index
    %c0_151 = arith.constant 0 : index
    %144 = vector.load %arg4[%c0_148, %c0_149, %c0_150, %c0_151] : memref<2x2x4x8xbf16, #tpu.memory_space<vmem>>, vector<1x1x4x8xbf16>
    %145 = vector.shape_cast %144 : vector<1x1x4x8xbf16> to vector<4x8xbf16>
    %cst_152 = arith.constant dense<0.000000e+00> : vector<4x32xf32>
    %146 = tpu.matmul %145, %141, %cst_152 {dimension_numbers = #tpu.dot_dimension_numbers<[1], [0], [0], [1], [0, 0, 1, 1], [], []>} : vector<4x8xbf16>, vector<8x32xbf16>, vector<4x32xf32> -> vector<4x32xf32>
    %c0_153 = arith.constant 0 : index
    %c1_154 = arith.constant 1 : index
    %c0_155 = arith.constant 0 : index
    %c0_156 = arith.constant 0 : index
    %147 = vector.load %arg4[%c0_153, %c1_154, %c0_155, %c0_156] : memref<2x2x4x8xbf16, #tpu.memory_space<vmem>>, vector<1x1x4x8xbf16>
    %148 = vector.shape_cast %147 : vector<1x1x4x8xbf16> to vector<4x8xbf16>
    %cst_157 = arith.constant dense<0.000000e+00> : vector<4x32xf32>
    %149 = tpu.matmul %148, %143, %cst_157 {dimension_numbers = #tpu.dot_dimension_numbers<[1], [0], [0], [1], [0, 0, 1, 1], [], []>} : vector<4x8xbf16>, vector<8x32xbf16>, vector<4x32xf32> -> vector<4x32xf32>
    %150 = arith.addf %146, %149 : vector<4x32xf32>
    %151 = vector.broadcast %8 : vector<4x1xf32> to vector<4x32xf32>
    %152 = arith.addf %150, %151 : vector<4x32xf32>
    %c0_158 = arith.constant 0 : index
    %c6_159 = arith.constant 6 : index
    %c8 = arith.constant 8 : index
    %c0_160 = arith.constant 0 : index
    %153 = vector.load %arg7[%c0_158, %c6_159, %c8, %c0_160] : memref<1x10x16x32xf32, #tpu.memory_space<vmem>>, vector<1x4x1x32xf32>
    %154 = vector.shape_cast %153 : vector<1x4x1x32xf32> to vector<4x32xf32>
    %155 = vector.shape_cast %152 : vector<4x32xf32> to vector<1x4x1x32xf32>
    tpu.vector_store %arg7[%c0_158, %c6_159, %c8, %c0_160], %155 {strides = array<i32>} : memref<1x10x16x32xf32, #tpu.memory_space<vmem>>, vector<1x4x1x32xf32>,
    %c1_161 = arith.constant 1 : index
    %c0_162 = arith.constant 0 : index
    %c0_163 = arith.constant 0 : index
    %c0_164 = arith.constant 0 : index
    %156 = vector.load %arg4[%c1_161, %c0_162, %c0_163, %c0_164] : memref<2x2x4x8xbf16, #tpu.memory_space<vmem>>, vector<1x1x4x8xbf16>
    %157 = vector.shape_cast %156 : vector<1x1x4x8xbf16> to vector<4x8xbf16>
    %cst_165 = arith.constant dense<0.000000e+00> : vector<4x32xf32>
    %158 = tpu.matmul %157, %141, %cst_165 {dimension_numbers = #tpu.dot_dimension_numbers<[1], [0], [0], [1], [0, 0, 1, 1], [], []>} : vector<4x8xbf16>, vector<8x32xbf16>, vector<4x32xf32> -> vector<4x32xf32>
    %c1_166 = arith.constant 1 : index
    %c1_167 = arith.constant 1 : index
    %c0_168 = arith.constant 0 : index
    %c0_169 = arith.constant 0 : index
    %159 = vector.load %arg4[%c1_166, %c1_167, %c0_168, %c0_169] : memref<2x2x4x8xbf16, #tpu.memory_space<vmem>>, vector<1x1x4x8xbf16>
    %160 = vector.shape_cast %159 : vector<1x1x4x8xbf16> to vector<4x8xbf16>
    %cst_170 = arith.constant dense<0.000000e+00> : vector<4x32xf32>
    %161 = tpu.matmul %160, %143, %cst_170 {dimension_numbers = #tpu.dot_dimension_numbers<[1], [0], [0], [1], [0, 0, 1, 1], [], []>} : vector<4x8xbf16>, vector<8x32xbf16>, vector<4x32xf32> -> vector<4x32xf32>
    %162 = arith.addf %158, %161 : vector<4x32xf32>
    %163 = vector.broadcast %8 : vector<4x1xf32> to vector<4x32xf32>
    %164 = arith.addf %162, %163 : vector<4x32xf32>
    %c0_171 = arith.constant 0 : index
    %c6_172 = arith.constant 6 : index
    %c9 = arith.constant 9 : index
    %c0_173 = arith.constant 0 : index
    %165 = vector.load %arg7[%c0_171, %c6_172, %c9, %c0_173] : memref<1x10x16x32xf32, #tpu.memory_space<vmem>>, vector<1x4x1x32xf32>
    %166 = vector.shape_cast %165 : vector<1x4x1x32xf32> to vector<4x32xf32>
    %167 = vector.shape_cast %164 : vector<4x32xf32> to vector<1x4x1x32xf32>
    tpu.vector_store %arg7[%c0_171, %c6_172, %c9, %c0_173], %167 {strides = array<i32>} : memref<1x10x16x32xf32, #tpu.memory_space<vmem>>, vector<1x4x1x32xf32>,
    %c0_174 = arith.constant 0 : index
    %c0_175 = arith.constant 0 : index
    %c5_176 = arith.constant 5 : index
    %c0_177 = arith.constant 0 : index
    %168 = vector.load %arg2[%c0_174, %c0_175, %c5_176, %c0_177] : memref<1x8x8x16xf32, #tpu.memory_space<vmem>>, vector<1x8x1x16xf32>
    %169 = vector.shape_cast %168 : vector<1x8x1x16xf32> to vector<8x16xf32>
    %170 = arith.truncf %169 : vector<8x16xf32> to vector<8x16xbf16>
    %cst_178 = arith.constant dense<0.000000e+00> : vector<8x32xf32>
    %171 = tpu.matmul %170, %10, %cst_178 {dimension_numbers = #tpu.dot_dimension_numbers<[1], [0], [0], [1], [0, 0, 1, 1], [], []>} : vector<8x16xbf16>, vector<16x32xbf16>, vector<8x32xf32> -> vector<8x32xf32>
    %172 = arith.truncf %171 : vector<8x32xf32> to vector<8x32xbf16>
    %cst_179 = arith.constant dense<0.000000e+00> : vector<8x32xf32>
    %173 = tpu.matmul %170, %12, %cst_179 {dimension_numbers = #tpu.dot_dimension_numbers<[1], [0], [0], [1], [0, 0, 1, 1], [], []>} : vector<8x16xbf16>, vector<16x32xbf16>, vector<8x32xf32> -> vector<8x32xf32>
    %174 = arith.truncf %173 : vector<8x32xf32> to vector<8x32xbf16>
    %c0_180 = arith.constant 0 : index
    %c0_181 = arith.constant 0 : index
    %c0_182 = arith.constant 0 : index
    %c0_183 = arith.constant 0 : index
    %175 = vector.load %arg4[%c0_180, %c0_181, %c0_182, %c0_183] : memref<2x2x4x8xbf16, #tpu.memory_space<vmem>>, vector<1x1x4x8xbf16>
    %176 = vector.shape_cast %175 : vector<1x1x4x8xbf16> to vector<4x8xbf16>
    %cst_184 = arith.constant dense<0.000000e+00> : vector<4x32xf32>
    %177 = tpu.matmul %176, %172, %cst_184 {dimension_numbers = #tpu.dot_dimension_numbers<[1], [0], [0], [1], [0, 0, 1, 1], [], []>} : vector<4x8xbf16>, vector<8x32xbf16>, vector<4x32xf32> -> vector<4x32xf32>
    %c0_185 = arith.constant 0 : index
    %c1_186 = arith.constant 1 : index
    %c0_187 = arith.constant 0 : index
    %c0_188 = arith.constant 0 : index
    %178 = vector.load %arg4[%c0_185, %c1_186, %c0_187, %c0_188] : memref<2x2x4x8xbf16, #tpu.memory_space<vmem>>, vector<1x1x4x8xbf16>
    %179 = vector.shape_cast %178 : vector<1x1x4x8xbf16> to vector<4x8xbf16>
    %cst_189 = arith.constant dense<0.000000e+00> : vector<4x32xf32>
    %180 = tpu.matmul %179, %174, %cst_189 {dimension_numbers = #tpu.dot_dimension_numbers<[1], [0], [0], [1], [0, 0, 1, 1], [], []>} : vector<4x8xbf16>, vector<8x32xbf16>, vector<4x32xf32> -> vector<4x32xf32>
    %181 = arith.addf %177, %180 : vector<4x32xf32>
    %182 = vector.broadcast %8 : vector<4x1xf32> to vector<4x32xf32>
    %183 = arith.addf %181, %182 : vector<4x32xf32>
    %c0_190 = arith.constant 0 : index
    %c6_191 = arith.constant 6 : index
    %c10 = arith.constant 10 : index
    %c0_192 = arith.constant 0 : index
    %184 = vector.load %arg7[%c0_190, %c6_191, %c10, %c0_192] : memref<1x10x16x32xf32, #tpu.memory_space<vmem>>, vector<1x4x1x32xf32>
    %185 = vector.shape_cast %184 : vector<1x4x1x32xf32> to vector<4x32xf32>
    %186 = vector.shape_cast %183 : vector<4x32xf32> to vector<1x4x1x32xf32>
    tpu.vector_store %arg7[%c0_190, %c6_191, %c10, %c0_192], %186 {strides = array<i32>} : memref<1x10x16x32xf32, #tpu.memory_space<vmem>>, vector<1x4x1x32xf32>,
    %c1_193 = arith.constant 1 : index
    %c0_194 = arith.constant 0 : index
    %c0_195 = arith.constant 0 : index
    %c0_196 = arith.constant 0 : index
    %187 = vector.load %arg4[%c1_193, %c0_194, %c0_195, %c0_196] : memref<2x2x4x8xbf16, #tpu.memory_space<vmem>>, vector<1x1x4x8xbf16>
    %188 = vector.shape_cast %187 : vector<1x1x4x8xbf16> to vector<4x8xbf16>
    %cst_197 = arith.constant dense<0.000000e+00> : vector<4x32xf32>
    %189 = tpu.matmul %188, %172, %cst_197 {dimension_numbers = #tpu.dot_dimension_numbers<[1], [0], [0], [1], [0, 0, 1, 1], [], []>} : vector<4x8xbf16>, vector<8x32xbf16>, vector<4x32xf32> -> vector<4x32xf32>
    %c1_198 = arith.constant 1 : index
    %c1_199 = arith.constant 1 : index
    %c0_200 = arith.constant 0 : index
    %c0_201 = arith.constant 0 : index
    %190 = vector.load %arg4[%c1_198, %c1_199, %c0_200, %c0_201] : memref<2x2x4x8xbf16, #tpu.memory_space<vmem>>, vector<1x1x4x8xbf16>
    %191 = vector.shape_cast %190 : vector<1x1x4x8xbf16> to vector<4x8xbf16>
    %cst_202 = arith.constant dense<0.000000e+00> : vector<4x32xf32>
    %192 = tpu.matmul %191, %174, %cst_202 {dimension_numbers = #tpu.dot_dimension_numbers<[1], [0], [0], [1], [0, 0, 1, 1], [], []>} : vector<4x8xbf16>, vector<8x32xbf16>, vector<4x32xf32> -> vector<4x32xf32>
    %193 = arith.addf %189, %192 : vector<4x32xf32>
    %194 = vector.broadcast %8 : vector<4x1xf32> to vector<4x32xf32>
    %195 = arith.addf %193, %194 : vector<4x32xf32>
    %c0_203 = arith.constant 0 : index
    %c6_204 = arith.constant 6 : index
    %c11 = arith.constant 11 : index
    %c0_205 = arith.constant 0 : index
    %196 = vector.load %arg7[%c0_203, %c6_204, %c11, %c0_205] : memref<1x10x16x32xf32, #tpu.memory_space<vmem>>, vector<1x4x1x32xf32>
    %197 = vector.shape_cast %196 : vector<1x4x1x32xf32> to vector<4x32xf32>
    %198 = vector.shape_cast %195 : vector<4x32xf32> to vector<1x4x1x32xf32>
    tpu.vector_store %arg7[%c0_203, %c6_204, %c11, %c0_205], %198 {strides = array<i32>} : memref<1x10x16x32xf32, #tpu.memory_space<vmem>>, vector<1x4x1x32xf32>,
    %c0_206 = arith.constant 0 : index
    %c0_207 = arith.constant 0 : index
    %c6_208 = arith.constant 6 : index
    %c0_209 = arith.constant 0 : index
    %199 = vector.load %arg2[%c0_206, %c0_207, %c6_208, %c0_209] : memref<1x8x8x16xf32, #tpu.memory_space<vmem>>, vector<1x8x1x16xf32>
    %200 = vector.shape_cast %199 : vector<1x8x1x16xf32> to vector<8x16xf32>
    %201 = arith.truncf %200 : vector<8x16xf32> to vector<8x16xbf16>
    %cst_210 = arith.constant dense<0.000000e+00> : vector<8x32xf32>
    %202 = tpu.matmul %201, %10, %cst_210 {dimension_numbers = #tpu.dot_dimension_numbers<[1], [0], [0], [1], [0, 0, 1, 1], [], []>} : vector<8x16xbf16>, vector<16x32xbf16>, vector<8x32xf32> -> vector<8x32xf32>
    %203 = arith.truncf %202 : vector<8x32xf32> to vector<8x32xbf16>
    %cst_211 = arith.constant dense<0.000000e+00> : vector<8x32xf32>
    %204 = tpu.matmul %201, %12, %cst_211 {dimension_numbers = #tpu.dot_dimension_numbers<[1], [0], [0], [1], [0, 0, 1, 1], [], []>} : vector<8x16xbf16>, vector<16x32xbf16>, vector<8x32xf32> -> vector<8x32xf32>
    %205 = arith.truncf %204 : vector<8x32xf32> to vector<8x32xbf16>
    %c0_212 = arith.constant 0 : index
    %c0_213 = arith.constant 0 : index
    %c0_214 = arith.constant 0 : index
    %c0_215 = arith.constant 0 : index
    %206 = vector.load %arg4[%c0_212, %c0_213, %c0_214, %c0_215] : memref<2x2x4x8xbf16, #tpu.memory_space<vmem>>, vector<1x1x4x8xbf16>
    %207 = vector.shape_cast %206 : vector<1x1x4x8xbf16> to vector<4x8xbf16>
    %cst_216 = arith.constant dense<0.000000e+00> : vector<4x32xf32>
    %208 = tpu.matmul %207, %203, %cst_216 {dimension_numbers = #tpu.dot_dimension_numbers<[1], [0], [0], [1], [0, 0, 1, 1], [], []>} : vector<4x8xbf16>, vector<8x32xbf16>, vector<4x32xf32> -> vector<4x32xf32>
    %c0_217 = arith.constant 0 : index
    %c1_218 = arith.constant 1 : index
    %c0_219 = arith.constant 0 : index
    %c0_220 = arith.constant 0 : index
    %209 = vector.load %arg4[%c0_217, %c1_218, %c0_219, %c0_220] : memref<2x2x4x8xbf16, #tpu.memory_space<vmem>>, vector<1x1x4x8xbf16>
    %210 = vector.shape_cast %209 : vector<1x1x4x8xbf16> to vector<4x8xbf16>
    %cst_221 = arith.constant dense<0.000000e+00> : vector<4x32xf32>
    %211 = tpu.matmul %210, %205, %cst_221 {dimension_numbers = #tpu.dot_dimension_numbers<[1], [0], [0], [1], [0, 0, 1, 1], [], []>} : vector<4x8xbf16>, vector<8x32xbf16>, vector<4x32xf32> -> vector<4x32xf32>
    %212 = arith.addf %208, %211 : vector<4x32xf32>
    %213 = vector.broadcast %8 : vector<4x1xf32> to vector<4x32xf32>
    %214 = arith.addf %212, %213 : vector<4x32xf32>
    %c0_222 = arith.constant 0 : index
    %c6_223 = arith.constant 6 : index
    %c12 = arith.constant 12 : index
    %c0_224 = arith.constant 0 : index
    %215 = vector.load %arg7[%c0_222, %c6_223, %c12, %c0_224] : memref<1x10x16x32xf32, #tpu.memory_space<vmem>>, vector<1x4x1x32xf32>
    %216 = vector.shape_cast %215 : vector<1x4x1x32xf32> to vector<4x32xf32>
    %217 = vector.shape_cast %214 : vector<4x32xf32> to vector<1x4x1x32xf32>
    tpu.vector_store %arg7[%c0_222, %c6_223, %c12, %c0_224], %217 {strides = array<i32>} : memref<1x10x16x32xf32, #tpu.memory_space<vmem>>, vector<1x4x1x32xf32>,
    %c1_225 = arith.constant 1 : index
    %c0_226 = arith.constant 0 : index
    %c0_227 = arith.constant 0 : index
    %c0_228 = arith.constant 0 : index
    %218 = vector.load %arg4[%c1_225, %c0_226, %c0_227, %c0_228] : memref<2x2x4x8xbf16, #tpu.memory_space<vmem>>, vector<1x1x4x8xbf16>
    %219 = vector.shape_cast %218 : vector<1x1x4x8xbf16> to vector<4x8xbf16>
    %cst_229 = arith.constant dense<0.000000e+00> : vector<4x32xf32>
    %220 = tpu.matmul %219, %203, %cst_229 {dimension_numbers = #tpu.dot_dimension_numbers<[1], [0], [0], [1], [0, 0, 1, 1], [], []>} : vector<4x8xbf16>, vector<8x32xbf16>, vector<4x32xf32> -> vector<4x32xf32>
    %c1_230 = arith.constant 1 : index
    %c1_231 = arith.constant 1 : index
    %c0_232 = arith.constant 0 : index
    %c0_233 = arith.constant 0 : index
    %221 = vector.load %arg4[%c1_230, %c1_231, %c0_232, %c0_233] : memref<2x2x4x8xbf16, #tpu.memory_space<vmem>>, vector<1x1x4x8xbf16>
    %222 = vector.shape_cast %221 : vector<1x1x4x8xbf16> to vector<4x8xbf16>
    %cst_234 = arith.constant dense<0.000000e+00> : vector<4x32xf32>
    %223 = tpu.matmul %222, %205, %cst_234 {dimension_numbers = #tpu.dot_dimension_numbers<[1], [0], [0], [1], [0, 0, 1, 1], [], []>} : vector<4x8xbf16>, vector<8x32xbf16>, vector<4x32xf32> -> vector<4x32xf32>
    %224 = arith.addf %220, %223 : vector<4x32xf32>
    %225 = vector.broadcast %8 : vector<4x1xf32> to vector<4x32xf32>
    %226 = arith.addf %224, %225 : vector<4x32xf32>
    %c0_235 = arith.constant 0 : index
    %c6_236 = arith.constant 6 : index
    %c13 = arith.constant 13 : index
    %c0_237 = arith.constant 0 : index
    %227 = vector.load %arg7[%c0_235, %c6_236, %c13, %c0_237] : memref<1x10x16x32xf32, #tpu.memory_space<vmem>>, vector<1x4x1x32xf32>
    %228 = vector.shape_cast %227 : vector<1x4x1x32xf32> to vector<4x32xf32>
    %229 = vector.shape_cast %226 : vector<4x32xf32> to vector<1x4x1x32xf32>
    tpu.vector_store %arg7[%c0_235, %c6_236, %c13, %c0_237], %229 {strides = array<i32>} : memref<1x10x16x32xf32, #tpu.memory_space<vmem>>, vector<1x4x1x32xf32>,
    %c0_238 = arith.constant 0 : index
    %c0_239 = arith.constant 0 : index
    %c7_240 = arith.constant 7 : index
    %c0_241 = arith.constant 0 : index
    %230 = vector.load %arg2[%c0_238, %c0_239, %c7_240, %c0_241] : memref<1x8x8x16xf32, #tpu.memory_space<vmem>>, vector<1x8x1x16xf32>
    %231 = vector.shape_cast %230 : vector<1x8x1x16xf32> to vector<8x16xf32>
    %232 = arith.truncf %231 : vector<8x16xf32> to vector<8x16xbf16>
    %cst_242 = arith.constant dense<0.000000e+00> : vector<8x32xf32>
    %233 = tpu.matmul %232, %10, %cst_242 {dimension_numbers = #tpu.dot_dimension_numbers<[1], [0], [0], [1], [0, 0, 1, 1], [], []>} : vector<8x16xbf16>, vector<16x32xbf16>, vector<8x32xf32> -> vector<8x32xf32>
    %234 = arith.truncf %233 : vector<8x32xf32> to vector<8x32xbf16>
    %cst_243 = arith.constant dense<0.000000e+00> : vector<8x32xf32>
    %235 = tpu.matmul %232, %12, %cst_243 {dimension_numbers = #tpu.dot_dimension_numbers<[1], [0], [0], [1], [0, 0, 1, 1], [], []>} : vector<8x16xbf16>, vector<16x32xbf16>, vector<8x32xf32> -> vector<8x32xf32>
    %236 = arith.truncf %235 : vector<8x32xf32> to vector<8x32xbf16>
    %c0_244 = arith.constant 0 : index
    %c0_245 = arith.constant 0 : index
    %c0_246 = arith.constant 0 : index
    %c0_247 = arith.constant 0 : index
    %237 = vector.load %arg4[%c0_244, %c0_245, %c0_246, %c0_247] : memref<2x2x4x8xbf16, #tpu.memory_space<vmem>>, vector<1x1x4x8xbf16>
    %238 = vector.shape_cast %237 : vector<1x1x4x8xbf16> to vector<4x8xbf16>
    %cst_248 = arith.constant dense<0.000000e+00> : vector<4x32xf32>
    %239 = tpu.matmul %238, %234, %cst_248 {dimension_numbers = #tpu.dot_dimension_numbers<[1], [0], [0], [1], [0, 0, 1, 1], [], []>} : vector<4x8xbf16>, vector<8x32xbf16>, vector<4x32xf32> -> vector<4x32xf32>
    %c0_249 = arith.constant 0 : index
    %c1_250 = arith.constant 1 : index
    %c0_251 = arith.constant 0 : index
    %c0_252 = arith.constant 0 : index
    %240 = vector.load %arg4[%c0_249, %c1_250, %c0_251, %c0_252] : memref<2x2x4x8xbf16, #tpu.memory_space<vmem>>, vector<1x1x4x8xbf16>
    %241 = vector.shape_cast %240 : vector<1x1x4x8xbf16> to vector<4x8xbf16>
    %cst_253 = arith.constant dense<0.000000e+00> : vector<4x32xf32>
    %242 = tpu.matmul %241, %236, %cst_253 {dimension_numbers = #tpu.dot_dimension_numbers<[1], [0], [0], [1], [0, 0, 1, 1], [], []>} : vector<4x8xbf16>, vector<8x32xbf16>, vector<4x32xf32> -> vector<4x32xf32>
    %243 = arith.addf %239, %242 : vector<4x32xf32>
    %244 = vector.broadcast %8 : vector<4x1xf32> to vector<4x32xf32>
    %245 = arith.addf %243, %244 : vector<4x32xf32>
    %c0_254 = arith.constant 0 : index
    %c6_255 = arith.constant 6 : index
    %c14 = arith.constant 14 : index
    %c0_256 = arith.constant 0 : index
    %246 = vector.load %arg7[%c0_254, %c6_255, %c14, %c0_256] : memref<1x10x16x32xf32, #tpu.memory_space<vmem>>, vector<1x4x1x32xf32>
    %247 = vector.shape_cast %246 : vector<1x4x1x32xf32> to vector<4x32xf32>
    %248 = vector.shape_cast %245 : vector<4x32xf32> to vector<1x4x1x32xf32>
    tpu.vector_store %arg7[%c0_254, %c6_255, %c14, %c0_256], %248 {strides = array<i32>} : memref<1x10x16x32xf32, #tpu.memory_space<vmem>>, vector<1x4x1x32xf32>,
    %c1_257 = arith.constant 1 : index
    %c0_258 = arith.constant 0 : index
    %c0_259 = arith.constant 0 : index
    %c0_260 = arith.constant 0 : index
    %249 = vector.load %arg4[%c1_257, %c0_258, %c0_259, %c0_260] : memref<2x2x4x8xbf16, #tpu.memory_space<vmem>>, vector<1x1x4x8xbf16>
    %250 = vector.shape_cast %249 : vector<1x1x4x8xbf16> to vector<4x8xbf16>
    %cst_261 = arith.constant dense<0.000000e+00> : vector<4x32xf32>
    %251 = tpu.matmul %250, %234, %cst_261 {dimension_numbers = #tpu.dot_dimension_numbers<[1], [0], [0], [1], [0, 0, 1, 1], [], []>} : vector<4x8xbf16>, vector<8x32xbf16>, vector<4x32xf32> -> vector<4x32xf32>
    %c1_262 = arith.constant 1 : index
    %c1_263 = arith.constant 1 : index
    %c0_264 = arith.constant 0 : index
    %c0_265 = arith.constant 0 : index
    %252 = vector.load %arg4[%c1_262, %c1_263, %c0_264, %c0_265] : memref<2x2x4x8xbf16, #tpu.memory_space<vmem>>, vector<1x1x4x8xbf16>
    %253 = vector.shape_cast %252 : vector<1x1x4x8xbf16> to vector<4x8xbf16>
    %cst_266 = arith.constant dense<0.000000e+00> : vector<4x32xf32>
    %254 = tpu.matmul %253, %236, %cst_266 {dimension_numbers = #tpu.dot_dimension_numbers<[1], [0], [0], [1], [0, 0, 1, 1], [], []>} : vector<4x8xbf16>, vector<8x32xbf16>, vector<4x32xf32> -> vector<4x32xf32>
    %255 = arith.addf %251, %254 : vector<4x32xf32>
    %256 = vector.broadcast %8 : vector<4x1xf32> to vector<4x32xf32>
    %257 = arith.addf %255, %256 : vector<4x32xf32>
    %c0_267 = arith.constant 0 : index
    %c6_268 = arith.constant 6 : index
    %c15 = arith.constant 15 : index
    %c0_269 = arith.constant 0 : index
    %258 = vector.load %arg7[%c0_267, %c6_268, %c15, %c0_269] : memref<1x10x16x32xf32, #tpu.memory_space<vmem>>, vector<1x4x1x32xf32>
    %259 = vector.shape_cast %258 : vector<1x4x1x32xf32> to vector<4x32xf32>
    %260 = vector.shape_cast %257 : vector<4x32xf32> to vector<1x4x1x32xf32>
    tpu.vector_store %arg7[%c0_267, %c6_268, %c15, %c0_269], %260 {strides = array<i32>} : memref<1x10x16x32xf32, #tpu.memory_space<vmem>>, vector<1x4x1x32xf32>,
    return
  }
  func.func @transform_0(%arg0: i32, %arg1: i32) -> (i32, i32, i32, i32) {
    %c0_i32 = arith.constant 0 : i32
    %c0_i32_0 = arith.constant 0 : i32
    %c0_i32_1 = arith.constant 0 : i32
    return %arg0, %c0_i32, %arg1, %c0_i32_0 : i32, i32, i32, i32
  }
  func.func @transform_1(%arg0: i32, %arg1: i32) -> (i32, i32, i32, i32) {
    %c0_i32 = arith.constant 0 : i32
    %c0_i32_0 = arith.constant 0 : i32
    %c0_i32_1 = arith.constant 0 : i32
    %c0_i32_2 = arith.constant 0 : i32
    return %arg0, %c0_i32, %c0_i32_0, %c0_i32_1 : i32, i32, i32, i32
  }
  func.func @transform_2(%arg0: i32, %arg1: i32) -> (i32, i32, i32, i32) {
    %c0_i32 = arith.constant 0 : i32
    %c0_i32_0 = arith.constant 0 : i32
    %c0_i32_1 = arith.constant 0 : i32
    %c0_i32_2 = arith.constant 0 : i32
    %c0_i32_3 = arith.constant 0 : i32
    return %c0_i32, %c0_i32_0, %c0_i32_1, %c0_i32_2 : i32, i32, i32, i32
  }
  func.func @transform_3(%arg0: i32, %arg1: i32) -> (i32, i32) {
    %c0_i32 = arith.constant 0 : i32
    %c0_i32_0 = arith.constant 0 : i32
    %c0_i32_1 = arith.constant 0 : i32
    return %c0_i32, %c0_i32_0 : i32, i32
  }
  func.func @transform_4(%arg0: i32, %arg1: i32) -> (i32, i32, i32) {
    %c0_i32 = arith.constant 0 : i32
    %c0_i32_0 = arith.constant 0 : i32
    %c0_i32_1 = arith.constant 0 : i32
    %c0_i32_2 = arith.constant 0 : i32
    return %c0_i32, %c0_i32_0, %c0_i32_1 : i32, i32, i32
  }
  func.func @transform_5(%arg0: i32, %arg1: i32) -> (i32, i32, i32, i32) {
    %c0_i32 = arith.constant 0 : i32
    %c0_i32_0 = arith.constant 0 : i32
    %c0_i32_1 = arith.constant 0 : i32
    return %arg0, %c0_i32, %arg1, %c0_i32_0 : i32, i32, i32, i32
  }
}

</mosaic_0001>

<llo_original>
// kernel: up_forward.1
$region0: #{up_forward.1}
  #allocation0 [shape = 'u32[]', space=smem, size = 0x4, offset = 0x4, fixed_abs, tag = 'smem constant byte address 0x4 - core index']
  #allocation1 [shape = 'u32[144,128]{1,0:T(1,128)}', space=vmem, size = 0x12000, scoped, tag = 'internal scratch']
  #allocation5 [shape = 's32[]', space=sflag, size = 0x4, offset = 0, fixed_abs, tag = 'sflag constant byte address 0x0 - dummy sync flag']
  %s0 = inlined_call_operand.vmem [shape: f32[2,8,16,16], index: 0, kind: input, shape index: {}]
  %s1 = inlined_call_operand.vmem [shape: f32[2,6,36,36], index: 1, kind: input, shape index: {}]
  %s2 = inlined_call_operand.vmem [shape: bf16[2,2,4,8], index: 2, kind: input, shape index: {}]
  %s3 = inlined_call_operand.vmem [shape: f32[4,1], index: 3, kind: input, shape index: {}]
  %s4 = inlined_call_operand.vmem [shape: bf16[2,16,32], index: 4, kind: input, shape index: {}]
  %s5 = inlined_call_operand.hbm [shape: f32[2,10,32,32], index: 5, kind: output, shape index: {}]
  %s6 = sld [smem:[#allocation0]]
  $region91: #{up_forward.1} parent=0
    _
  %s8 = ssub.s32 1, %s6
  %s9 = scalar_select 0, %s8, %s6
  $region1: #{up_forward.1} parent=0
    #allocation2 [shape = 'u8[65536]{0}', space=vmem, size = 0x10000, scoped, tag = 'input window, operand 0']
    #allocation3 [shape = 'u8[163840]{0}', space=vmem, size = 0x28000, scoped, tag = 'output window, operand 0']
    #allocation4 [shape = 's32[2]{0}', space=sflag, size = 0x8, scoped, tag = 'scoped memory for up_forward.1']
    %10 = vsyncpa [#allocation4], 0
    %s11 = scalar_lea.sflag [#allocation4], 1
    %12 = vsyncpa %s11, 0
    loop: start=0, step=1, limit=6
    $region2: #{up_forward.1} parent=1 // loop_pre_header
      _
    $region3: #{up_forward.1} parent=1 // loop_header
      %s14 = sphi 0, %s18
      %p15 = scmp.ge.s32.totalorder %s14, 6
      %s21 = sphi 0, %s33
      %s22 = sphi 0, %s29
      %s23 = sphi 0, %s21
      %s24 = sphi 0, %s22
      %s25 = sphi 0, %s23
      %s26 = sphi 0, %s24
      %s38 = sphi 0, %s40
      %s41 = sphi 0, %s38
      %s42 = sphi 0, %s41
      %s58 = sphi 0, %s42
      %s64 = sphi 0, %s66
      %s67 = sphi 0, %s64
      %s68 = sphi 0, %s67
      %s84 = sphi 0, %s68
      %s88 = sphi 0, %s88
      %s90 = sphi 0, %s88
      %s91 = sphi 0, %s90
      %s105 = sphi 0, %s91
      %s109 = sphi 0, %s109
      %s111 = sphi 0, %s109
      %s112 = sphi 0, %s111
      %s126 = sphi 0, %s112
      %s130 = sphi 0, %s130
      %s132 = sphi 0, %s130
      %s133 = sphi 0, %s132
      %s147 = sphi 0, %s133
      %s155 = sphi 0, %s157
      %s158 = sphi 0, %s155
      %s159 = sphi 0, %s158
      %s175 = sphi 0, %s159
    $region4: #{up_forward.1} parent=1 // loop_header_branch
      %17 = sbr.rel (%p15) target = $region8
    $region5: #{up_forward.1} parent=1 // loop_body
      %s19 = ssub.s32 %s14, 1
      %s20 = ssub.s32 %s14, 2
      %s27 = sadd.s32 1, %s22
      %p28 = scmp.ge.s32.totalorder %s27, 2
      %s29 = scalar_select %p28, 0, %s27
      %s30 = sadd.s32 1, %s21
      %s31 = scalar_select %p28, %s30, %s21
      %p32 = scmp.ge.s32.totalorder %s31, 2
      %s33 = scalar_select %p32, 0, %s31
      %s34 = ssub.s32 %s21, %s33
      %s35 = ssub.s32 %s22, %s29
      %s36 = sor.u32 %s34, %s35
      %p37 = scmp.eq.s32.totalorder %s36, 0
      %s39 = sadd.s32 %s38, 1
      %s40 = scalar_select %p37, %s38, %s39
      %p43 = pneg %p37
      %p44 = scmp.eq.s32.totalorder %s14, 3
      %p45 = por %p43, %p44
      %p46 = scmp.ne.s32.totalorder %s38, %s41
      %p47 = scmp.eq.s32.totalorder %s14, 0
      %p48 = por %p46, %p47
      %p49 = scmp.ne.s32.totalorder %s38, %s41
      %p50 = scmp.eq.s32.totalorder %s19, 3
      %p51 = por %p49, %p50
      %p52 = scmp.ne.s32.totalorder %s41, %s42
      %p53 = scmp.eq.s32.totalorder %s19, 0
      %p54 = por %p52, %p53
      %p55 = scmp.ne.s32.totalorder %s41, %s42
      %p56 = scmp.eq.s32.totalorder %s20, 3
      %p57 = por %p55, %p56
      %p59 = scmp.ne.s32.totalorder %s42, %s58
      %p60 = scmp.eq.s32.totalorder %s20, 0
      %p61 = por %p59, %p60
      %s62 = ssub.s32 %s21, %s33
      %p63 = scmp.eq.s32.totalorder %s62, 0
      %s65 = sadd.s32 %s64, 1
      %s66 = scalar_select %p63, %s64, %s65
      %p69 = pneg %p63
      %p70 = scmp.eq.s32.totalorder %s14, 3
      %p71 = por %p69, %p70
      %p72 = scmp.ne.s32.totalorder %s64, %s67
      %p73 = scmp.eq.s32.totalorder %s14, 0
      %p74 = por %p72, %p73
      %p75 = scmp.ne.s32.totalorder %s64, %s67
      %p76 = scmp.eq.s32.totalorder %s19, 3
      %p77 = por %p75, %p76
      %p78 = scmp.ne.s32.totalorder %s67, %s68
      %p79 = scmp.eq.s32.totalorder %s19, 0
      %p80 = por %p78, %p79
      %p81 = scmp.ne.s32.totalorder %s67, %s68
      %p82 = scmp.eq.s32.totalorder %s20, 3
      %p83 = por %p81, %p82
      %p85 = scmp.ne.s32.totalorder %s68, %s84
      %p86 = scmp.eq.s32.totalorder %s20, 0
      %p87 = por %p85, %p86
      %s89 = sadd.s32 %s88, 1
      %p92 = scmp.eq.s32.totalorder %s14, 3
      %p93 = scmp.ne.s32.totalorder %s88, %s90
      %p94 = scmp.eq.s32.totalorder %s14, 0
      %p95 = por %p93, %p94
      %p96 = scmp.ne.s32.totalorder %s88, %s90
      %p97 = scmp.eq.s32.totalorder %s19, 3
      %p98 = por %p96, %p97
      %p99 = scmp.ne.s32.totalorder %s90, %s91
      %p100 = scmp.eq.s32.totalorder %s19, 0
      %p101 = por %p99, %p100
      %p102 = scmp.ne.s32.totalorder %s90, %s91
      %p103 = scmp.eq.s32.totalorder %s20, 3
      %p104 = por %p102, %p103
      %p106 = scmp.ne.s32.totalorder %s91, %s105
      %p107 = scmp.eq.s32.totalorder %s20, 0
      %p108 = por %p106, %p107
      %s110 = sadd.s32 %s109, 1
      %p113 = scmp.eq.s32.totalorder %s14, 3
      %p114 = scmp.ne.s32.totalorder %s109, %s111
      %p115 = scmp.eq.s32.totalorder %s14, 0
      %p116 = por %p114, %p115
      %p117 = scmp.ne.s32.totalorder %s109, %s111
      %p118 = scmp.eq.s32.totalorder %s19, 3
      %p119 = por %p117, %p118
      %p120 = scmp.ne.s32.totalorder %s111, %s112
      %p121 = scmp.eq.s32.totalorder %s19, 0
      %p122 = por %p120, %p121
      %p123 = scmp.ne.s32.totalorder %s111, %s112
      %p124 = scmp.eq.s32.totalorder %s20, 3
      %p125 = por %p123, %p124
      %p127 = scmp.ne.s32.totalorder %s112, %s126
      %p128 = scmp.eq.s32.totalorder %s20, 0
      %p129 = por %p127, %p128
      %s131 = sadd.s32 %s130, 1
      %p134 = scmp.eq.s32.totalorder %s14, 3
      %p135 = scmp.ne.s32.totalorder %s130, %s132
      %p136 = scmp.eq.s32.totalorder %s14, 0
      %p137 = por %p135, %p136
      %p138 = scmp.ne.s32.totalorder %s130, %s132
      %p139 = scmp.eq.s32.totalorder %s19, 3
      %p140 = por %p138, %p139
      %p141 = scmp.ne.s32.totalorder %s132, %s133
      %p142 = scmp.eq.s32.totalorder %s19, 0
      %p143 = por %p141, %p142
      %p144 = scmp.ne.s32.totalorder %s132, %s133
      %p145 = scmp.eq.s32.totalorder %s20, 3
      %p146 = por %p144, %p145
      %p148 = scmp.ne.s32.totalorder %s133, %s147
      %p149 = scmp.eq.s32.totalorder %s20, 0
      %p150 = por %p148, %p149
      %s151 = ssub.s32 %s21, %s33
      %s152 = ssub.s32 %s22, %s29
      %s153 = sor.u32 %s151, %s152
      %p154 = scmp.eq.s32.totalorder %s153, 0
      %s156 = sadd.s32 %s155, 1
      %s157 = scalar_select %p154, %s155, %s156
      %p160 = pneg %p154
      %p161 = scmp.eq.s32.totalorder %s14, 3
      %p162 = por %p160, %p161
      %p163 = scmp.ne.s32.totalorder %s155, %s158
      %p164 = scmp.eq.s32.totalorder %s14, 0
      %p165 = por %p163, %p164
      %p166 = scmp.ne.s32.totalorder %s155, %s158
      %p167 = scmp.eq.s32.totalorder %s19, 3
      %p168 = por %p166, %p167
      %p169 = scmp.ne.s32.totalorder %s158, %s159
      %p170 = scmp.eq.s32.totalorder %s19, 0
      %p171 = por %p169, %p170
      %p172 = scmp.ne.s32.totalorder %s158, %s159
      %p173 = scmp.eq.s32.totalorder %s20, 3
      %p174 = por %p172, %p173
      %p176 = scmp.ne.s32.totalorder %s159, %s175
      %p177 = scmp.eq.s32.totalorder %s20, 0
      %p178 = por %p176, %p177
      %p179 = scmp.le.s32.totalorder 1, %s14
      %p180 = scmp.lt.s32.totalorder %s14, 5
      %p181 = pnand %p179, %p180
      %p182 = pneg %p181
      // Predicated region
      $region9: #{up_forward.1} parent=5 // pred_check
        _
      $region10: #{up_forward.1} parent=5 // pred_check_branch
        %184 = sbr.rel (%p181) target = $region12
      $region11: #{up_forward.1} parent=5 // pred_region
        %s185 = ssub.s32 %s14, 1
        // Predicated region
        $region13: #{up_forward.1} parent=11 // pred_check
          %p186 = pneg %p101
        $region14: #{up_forward.1} parent=11 // pred_check_branch
          %188 = sbr.rel (%p186) target = $region16
        $region15: #{up_forward.1} parent=11 // pred_region
          _
        $region16: #{up_forward.1} parent=11 // pred_fallthru
          _
        // Predicated region
        $region17: #{up_forward.1} parent=11 // pred_check
          %p189 = pneg %p122
        $region18: #{up_forward.1} parent=11 // pred_check_branch
          %191 = sbr.rel (%p189) target = $region20
        $region19: #{up_forward.1} parent=11 // pred_region
          _
        $region20: #{up_forward.1} parent=11 // pred_fallthru
          _
        // Predicated region
        $region21: #{up_forward.1} parent=11 // pred_check
          %p192 = pneg %p143
        $region22: #{up_forward.1} parent=11 // pred_check_branch
          %194 = sbr.rel (%p192) target = $region24
        $region23: #{up_forward.1} parent=11 // pred_region
          _
        $region24: #{up_forward.1} parent=11 // pred_fallthru
          _
      $region12: #{up_forward.1} parent=5 // pred_fallthru
        _
      %p195 = scmp.lt.s32.totalorder %s14, 4
      // Predicated region
      $region25: #{up_forward.1} parent=5 // pred_check
        %p196 = pneg %p195
      $region26: #{up_forward.1} parent=5 // pred_check_branch
        %198 = sbr.rel (%p196) target = $region28
      $region27: #{up_forward.1} parent=5 // pred_region
        // Predicated region
        $region29: #{up_forward.1} parent=27 // pred_check
          %p199 = pneg %p48
        $region30: #{up_forward.1} parent=27 // pred_check_branch
          %201 = sbr.rel (%p199) target = $region32
        $region31: #{up_forward.1} parent=27 // pred_region
          %s202 = sand.u32 %s38, 1
          %s203 = sand.u32 %s38, 1
          %s204 = smul.addr %s203, 64
          %s205 = scalar_lea.vmem [#allocation2], %s204
          %s206 = smul.addr %s21, 16
          %s207 = sadd.s32 %s22, %s206
          %s208 = smul.addr %s207, 8
          %s209 = scalar_lea.vmem %s0, %s208
          // Predicated region
          $region33: #{up_forward.1} parent=31 // pred_check
            _
          $region34: #{up_forward.1} parent=31 // pred_check_branch
            %211 = sbr.rel (0) target = $region36
          $region35: #{up_forward.1} parent=31 // pred_region
            // Predicated region
            $region37: #{up_forward.1} parent=35 // pred_check
              _
            $region38: #{up_forward.1} parent=35 // pred_check_branch
              %213 = sbr.rel (0) target = $region40
            $region39: #{up_forward.1} parent=35 // pred_region
              // Predicated region
              $region52: #{up_forward.1} parent=39 // pred_check
                _
              $region53: #{up_forward.1} parent=39 // pred_check_branch
                %242 = sbr.rel (0) target = $region55
              $region54: #{up_forward.1} parent=39 // pred_region
                loop: start=0, step=1, limit=1
                $region56: #{up_forward.1} parent=54 // loop_pre_header
                  _
                $region57: #{up_forward.1} parent=54 // loop_header
                  %s244 = sphi 0, %s248
                  %p245 = scmp.ge.s32.totalorder %s244, 1
                  %s249 = sphi %s209, %s209
                  %s250 = sphi %s205, %s205
                $region58: #{up_forward.1} parent=54 // loop_header_branch
                  %247 = sbr.rel (%p245) target = $region62
                $region59: #{up_forward.1} parent=54 // loop_body
                  %v251 = vld [vmem:[%s249] sm:$0xff]
                  %252 = vst [vmem:[%s250] sm:$0xff] %v251
                  %v253 = vld [vmem:[%s249 + $0x10] sm:$0xff]
                  %254 = vst [vmem:[%s250 + $0x8] sm:$0xff] %v253
                  %v255 = vld [vmem:[%s249 + $0x20] sm:$0xff]
                  %256 = vst [vmem:[%s250 + $0x10] sm:$0xff] %v255
                  %v257 = vld [vmem:[%s249 + $0x30] sm:$0xff]
                  %258 = vst [vmem:[%s250 + $0x18] sm:$0xff] %v257
                  %v259 = vld [vmem:[%s249 + $0x40] sm:$0xff]
                  %260 = vst [vmem:[%s250 + $0x20] sm:$0xff] %v259
                  %v261 = vld [vmem:[%s249 + $0x50] sm:$0xff]
                  %262 = vst [vmem:[%s250 + $0x28] sm:$0xff] %v261
                  %v263 = vld [vmem:[%s249 + $0x60] sm:$0xff]
                  %264 = vst [vmem:[%s250 + $0x30] sm:$0xff] %v263
                  %v265 = vld [vmem:[%s249 + $0x70] sm:$0xff]
                  %266 = vst [vmem:[%s250 + $0x38] sm:$0xff] %v265
                $region60: #{up_forward.1} parent=54 // loop_footer
                  %s248 = sadd.s32 1, %s244
                $region61: #{up_forward.1} parent=54 // loop_footer_branch
                  %243 = sbr.rel target = $region57
                $region62: #{up_forward.1} parent=54 // loop_exit
                  _
              $region55: #{up_forward.1} parent=39 // pred_fallthru
                _
              // Predicated region
              $region63: #{up_forward.1} parent=39 // pred_check
                _
              $region64: #{up_forward.1} parent=39 // pred_check_branch
                %268 = sbr.rel target = $region66
              $region65: #{up_forward.1} parent=39 // pred_region
                _
              $region66: #{up_forward.1} parent=39 // pred_fallthru
                _
            $region40: #{up_forward.1} parent=35 // pred_fallthru
              _
            // Predicated region
            $region41: #{up_forward.1} parent=35 // pred_check
              _
            $region42: #{up_forward.1} parent=35 // pred_check_branch
              %215 = sbr.rel target = $region44
            $region43: #{up_forward.1} parent=35 // pred_region
              loop: start=0, step=1, limit=1
              $region45: #{up_forward.1} parent=43 // loop_pre_header
                _
              $region46: #{up_forward.1} parent=43 // loop_header
                %s218 = sphi 0, %s222
                %p219 = scmp.ge.s32.totalorder %s218, 1
                %s223 = sphi %s209, %s209
                %s224 = sphi %s205, %s205
              $region47: #{up_forward.1} parent=43 // loop_header_branch
                %221 = sbr.rel (%p219) target = $region51
              $region48: #{up_forward.1} parent=43 // loop_body
                %v225 = vld [vmem:[%s223] sm:$0xff]
                %226 = vst [vmem:[%s224] sm:$0xff] %v225
                %v227 = vld [vmem:[%s223 + $0x10] sm:$0xff]
                %228 = vst [vmem:[%s224 + $0x8] sm:$0xff] %v227
                %v229 = vld [vmem:[%s223 + $0x20] sm:$0xff]
                %230 = vst [vmem:[%s224 + $0x10] sm:$0xff] %v229
                %v231 = vld [vmem:[%s223 + $0x30] sm:$0xff]
                %232 = vst [vmem:[%s224 + $0x18] sm:$0xff] %v231
                %v233 = vld [vmem:[%s223 + $0x40] sm:$0xff]
                %234 = vst [vmem:[%s224 + $0x20] sm:$0xff] %v233
                %v235 = vld [vmem:[%s223 + $0x50] sm:$0xff]
                %236 = vst [vmem:[%s224 + $0x28] sm:$0xff] %v235
                %v237 = vld [vmem:[%s223 + $0x60] sm:$0xff]
                %238 = vst [vmem:[%s224 + $0x30] sm:$0xff] %v237
                %v239 = vld [vmem:[%s223 + $0x70] sm:$0xff]
                %240 = vst [vmem:[%s224 + $0x38] sm:$0xff] %v239
              $region49: #{up_forward.1} parent=43 // loop_footer
                %s222 = sadd.s32 1, %s218
              $region50: #{up_forward.1} parent=43 // loop_footer_branch
                %217 = sbr.rel target = $region46
              $region51: #{up_forward.1} parent=43 // loop_exit
                _
            $region44: #{up_forward.1} parent=35 // pred_fallthru
              _
          $region36: #{up_forward.1} parent=31 // pred_fallthru
            _
          %269 = vnop
        $region32: #{up_forward.1} parent=27 // pred_fallthru
          _
        // Predicated region
        $region67: #{up_forward.1} parent=27 // pred_check
          %p270 = pneg %p74
        $region68: #{up_forward.1} parent=27 // pred_check_branch
          %272 = sbr.rel (%p270) target = $region70
        $region69: #{up_forward.1} parent=27 // pred_region
          %p273 = scmp.lt.s32.totalorder %s21, 1
          %s274 = scalar_select %p273, %s21, 1
          %s275 = smul.addr %s274, 30
          %s276 = smul.addr %s275, 8
          %s277 = scalar_lea.vmem %s1, %s276
        $region70: #{up_forward.1} parent=27 // pred_fallthru
          _
      $region28: #{up_forward.1} parent=5 // pred_fallthru
        _
      %p278 = scmp.le.s32.totalorder 1, %s14
      %p279 = scmp.lt.s32.totalorder %s14, 5
      %p280 = pnand %p278, %p279
      %p281 = pneg %p280
      // Predicated region
      $region71: #{up_forward.1} parent=5 // pred_check
        _
      $region72: #{up_forward.1} parent=5 // pred_check_branch
        %283 = sbr.rel (%p280) target = $region74
      $region73: #{up_forward.1} parent=5 // pred_region
        %s284 = ssub.s32 %s14, 1
        %s285 = sand.u32 %s41, 1
        %s286 = sand.u32 %s41, 1
        %s287 = smul.addr %s286, 64
        %s288 = scalar_lea.vmem [#allocation2], %s287
        // Predicated region
        $region75: #{up_forward.1} parent=73 // pred_check
          %p289 = pneg %p54
        $region76: #{up_forward.1} parent=73 // pred_check_branch
          %291 = sbr.rel (%p289) target = $region78
        $region77: #{up_forward.1} parent=73 // pred_region
          _
        $region78: #{up_forward.1} parent=73 // pred_fallthru
          _
        %s292 = sand.u32 %s41, 1
        %s293 = sand.u32 %s41, 1
        %s294 = smul.addr %s293, 64
        %s295 = scalar_lea.vmem [#allocation2], %s294
        %p296 = pneg %p54
        %p297 = pneg %p51
        %p298 = scmp.lt.s32.totalorder %s23, 1
        %s299 = scalar_select %p298, %s23, 1
        %s300 = smul.addr %s299, 30
        %s301 = smul.addr %s300, 8
        %s302 = scalar_lea.vmem %s1, %s301
        %p303 = pneg %p80
        %p304 = pneg %p77
        %p305 = pneg %p101
        %p306 = pneg %p98
        %p307 = pneg %p122
        %p308 = pneg %p119
        %p309 = pneg %p143
        %p310 = pneg %p140
        %p311 = pneg %p171
        %p312 = pneg %p168
        %s313 = sand.u32 %s158, 1
        %s314 = scalar_lea.sflag [#allocation4], %s313
        %s315 = sand.u32 %s158, 1
        %s316 = smul.addr %s315, 160
        %s317 = scalar_lea.vmem [#allocation3], %s316
        %p318 = scmp.lt.s32.totalorder %s23, 1
        %s319 = scalar_select %p318, %s23, 1
        %s320 = smul.addr %s319, 30
        %s321 = smul.addr %s320, 8
        %s322 = scalar_lea.vmem %s1, %s321
        %s323 = smul.u32 2, %s24
        %s325 = smul.u32 %s24, 16
        %s326 = sadd.s32 %s325, 4
        %s327 = scalar_lea.vmem %s322, %s326
        %v328 = vld [vmem:[%s327] sm:$0xff]
        %v329 = vld [vmem:[%s327 + $0x8] sm:$0xff]
        %v330 = vld [vmem:[%s327 + $0x28] sm:$0xff]
        %v331 = vld [vmem:[%s327 + $0x30] sm:$0xff]
        %v332 = vld [vmem:[%s327 + $0x50] sm:$0xff]
        %v333 = vld [vmem:[%s327 + $0x58] sm:$0xff]
        %v334 = vld [vmem:[%s327 + $0x78] sm:$0xff]
        %v335 = vld [vmem:[%s327 + $0x80] sm:$0xff]
        %v336 = vld [vmem:[%s327 + $0xa0] sm:$0xff]
        %v337 = vld [vmem:[%s327 + $0xa8] sm:$0xff]
        %v338 = vld [vmem:[%s327 + $0xc8] sm:$0xff]
        %v339 = vld [vmem:[%s327 + $0xd0] sm:$0xff]
        %352 = vrot.lane.b32.xlu0 %v328, 124
        %v353 = vpop.permute.xlu0 %352
        %354 = vrot.lane.b32.xlu0 %v329, 124
        %v355 = vpop.permute.xlu0 %354
        %356 = vrot.lane.b32.xlu0 %v330, 124
        %v357 = vpop.permute.xlu0 %356
        %358 = vrot.lane.b32.xlu0 %v331, 124
        %v359 = vpop.permute.xlu0 %358
        %360 = vrot.lane.b32.xlu0 %v332, 124
        %v361 = vpop.permute.xlu0 %360
        %362 = vrot.lane.b32.xlu0 %v333, 124
        %v363 = vpop.permute.xlu0 %362
        %364 = vrot.lane.b32.xlu0 %v334, 124
        %v365 = vpop.permute.xlu0 %364
        %366 = vrot.lane.b32.xlu0 %v335, 124
        %v367 = vpop.permute.xlu0 %366
        %368 = vrot.lane.b32.xlu0 %v336, 124
        %v369 = vpop.permute.xlu0 %368
        %370 = vrot.lane.b32.xlu0 %v337, 124
        %v371 = vpop.permute.xlu0 %370
        %372 = vrot.lane.b32.xlu0 %v338, 124
        %v373 = vpop.permute.xlu0 %372
        %374 = vrot.lane.b32.xlu0 %v339, 124
        %v375 = vpop.permute.xlu0 %374
        %vm388 = vcmask 261120
        %389 = vst.msk [vmem:[%s317] sm:$0xff] %vm388, %v353
        %390 = vst.msk [vmem:[%s317 + $0x8] sm:$0xff] %vm388, %v355
        %391 = vst.msk [vmem:[%s317 + $0x10] sm:$0xff] %vm388, %v357
        %392 = vst.msk [vmem:[%s317 + $0x18] sm:$0xff] %vm388, %v359
        %393 = vst.msk [vmem:[%s317 + $0x20] sm:$0xff] %vm388, %v361
        %394 = vst.msk [vmem:[%s317 + $0x28] sm:$0xff] %vm388, %v363
        %395 = vst.msk [vmem:[%s317 + $0x30] sm:$0xff] %vm388, %v365
        %396 = vst.msk [vmem:[%s317 + $0x38] sm:$0xff] %vm388, %v367
        %397 = vst.msk [vmem:[%s317 + $0x40] sm:$0xff] %vm388, %v369
        %398 = vst.msk [vmem:[%s317 + $0x48] sm:$0xff] %vm388, %v371
        %399 = vst.msk [vmem:[%s317 + $0x50] sm:$0xff] %vm388, %v373
        %400 = vst.msk [vmem:[%s317 + $0x58] sm:$0xff] %vm388, %v375
        %v401 = vld [vmem:[%s3] sm:$0xf]
        %v402 = vld [vmem:[%s4] sm:$0xf]
        %v403 = vld [vmem:[%s4 + $0x4] sm:$0xf]
        %s404 = scalar_lea.vmem %s4, 8
        %v405 = vld [vmem:[%s404] sm:$0xf]
        %v406 = vld [vmem:[%s404 + $0x4] sm:$0xf]
        %v407 = vld [vmem:[%s288] sm:$0x1]
        %v408 = vld [vmem:[%s288 + $0x8] sm:$0x1]
        %v409 = vld [vmem:[%s288 + $0x10] sm:$0x1]
        %v410 = vld [vmem:[%s288 + $0x18] sm:$0x1]
        %v411 = vld [vmem:[%s288 + $0x20] sm:$0x1]
        %v412 = vld [vmem:[%s288 + $0x28] sm:$0x1]
        %v413 = vld [vmem:[%s288 + $0x30] sm:$0x1]
        %v414 = vld [vmem:[%s288 + $0x38] sm:$0x1]
        %v415 = vpack.c.bf16 %v407, %v407
        %v416 = vpack.c.bf16 %v408, %v408
        %v417 = vpack.c.bf16 %v409, %v409
        %v418 = vpack.c.bf16 %v410, %v410
        %v419 = vpack.c.bf16 %v411, %v411
        %v420 = vpack.c.bf16 %v412, %v412
        %v421 = vpack.c.bf16 %v413, %v413
        %v422 = vpack.c.bf16 %v414, %v414
        %v431 = vunpack.c.l.b16 %v415
        %v432 = vunpack.c.l.b16 %v416
        %v433 = vunpack.c.l.b16 %v417
        %v434 = vunpack.c.l.b16 %v418
        %v435 = vunpack.c.l.b16 %v419
        %v436 = vunpack.c.l.b16 %v420
        %v437 = vunpack.c.l.b16 %v421
        %v438 = vunpack.c.l.b16 %v422
        %v439 = vrot.slane %v432, 7
        %vm440 = vcmask 1041409
        %v441 = vsel %vm440, %v439, %v431
        %v442 = vrot.slane %v433, 6
        %vm443 = vcmask 1042434
        %v444 = vsel %vm443, %v442, %v441
        %v445 = vrot.slane %v434, 5
        %vm446 = vcmask 1043459
        %v447 = vsel %vm446, %v445, %v444
        %v448 = vrot.slane %v435, 4
        %vm449 = vcmask 1044484
        %v450 = vsel %vm449, %v448, %v447
        %v451 = vrot.slane %v436, 3
        %vm452 = vcmask 1045509
        %v453 = vsel %vm452, %v451, %v450
        %v454 = vrot.slane %v437, 2
        %vm455 = vcmask 1046534
        %v456 = vsel %vm455, %v454, %v453
        %v457 = vrot.slane %v438, 1
        %vm458 = vcmask 1047559
        %v459 = vsel %vm458, %v457, %v456
        %v460 = vpack.c.b16 %v459, %v459
        %v463 = vunpack.c.l.b16 %v402
        %v464 = vunpack.c.l.b16 %v403
        %v465 = vpack.c.b16 %v464, %v463
        %vm467 = vcmask 130048
        %v469 = vsel %vm467, %v460, 0
        %471 = vmatprep.subr.bf16.mxu0 0
        %472 = vmatpush1.bf16.msra.mxu0 %v465
        %473 = vmatprep.subr.bf16.mxu0 0
        %474 = vmatpush1.bf16.msra.mxu0 0
        %475 = vmatprep.subr.bf16.mxu0 0
        %476 = vmatpush1.bf16.msra.mxu0 0
        %477 = vmatprep.subr.bf16.mxu0 0
        %478 = vmatpush1.bf16.msra.mxu0 0
        %479 = vmatprep.subr.bf16.mxu0 0
        %480 = vmatpush1.bf16.msra.mxu0 0
        %481 = vmatprep.subr.bf16.mxu0 0
        %482 = vmatpush1.bf16.msra.mxu0 0
        %483 = vmatprep.subr.bf16.mxu0 0
        %484 = vmatpush1.bf16.msra.mxu0 0
        %485 = vmatprep.subr.bf16.mxu0 0
        %486 = vmatpush1.bf16.msra.mxu0 0
        %487 = vmatprep.subr.bf16.mxu0 0
        %488 = vmatpush1.bf16.msra.mxu0 0
        %489 = vmatprep.subr.bf16.mxu0 0
        %490 = vmatpush1.bf16.msra.mxu0 0
        %491 = vmatprep.subr.bf16.mxu0 0
        %492 = vmatpush1.bf16.msra.mxu0 0
        %493 = vmatprep.subr.bf16.mxu0 0
        %494 = vmatpush1.bf16.msra.mxu0 0
        %495 = vmatprep.subr.bf16.mxu0 0
        %496 = vmatpush1.bf16.msra.mxu0 0
        %497 = vmatprep.subr.bf16.mxu0 0
        %498 = vmatpush1.bf16.msra.mxu0 0
        %499 = vmatprep.subr.bf16.mxu0 0
        %500 = vmatpush1.bf16.msra.mxu0 0
        %501 = vmatprep.subr.bf16.mxu0 0
        %502 = vmatpush1.bf16.msra.mxu0 0
        %503 = vmatprep.mubr.bf16.mxu0 0
        %504 = vmatmul.mubr.bf16.gmra.mrb[0].mxu0 %v469
        %v505 = vpop.f32.mrb[0].mxu0
        %v506 = vadd.f32 0.0, %v505
        %v507 = vpop.f32.mrb[0].mxu0
        %v508 = vpop.f32.mrb[0].mxu0
        %v509 = vpop.f32.mrb[0].mxu0
        %510 = vdwg.mxu0
        %v511 = vpack.c.bf16 %v506, %v506
        %v514 = vunpack.c.l.b16 %v405
        %v515 = vunpack.c.l.b16 %v406
        %v516 = vpack.c.b16 %v515, %v514
        %518 = vmatprep.subr.bf16.mxu0 0
        %519 = vmatpush1.bf16.msra.mxu0 %v516
        %520 = vmatprep.subr.bf16.mxu0 0
        %521 = vmatpush1.bf16.msra.mxu0 0
        %522 = vmatprep.subr.bf16.mxu0 0
        %523 = vmatpush1.bf16.msra.mxu0 0
        %524 = vmatprep.subr.bf16.mxu0 0
        %525 = vmatpush1.bf16.msra.mxu0 0
        %526 = vmatprep.subr.bf16.mxu0 0
        %527 = vmatpush1.bf16.msra.mxu0 0
        %528 = vmatprep.subr.bf16.mxu0 0
        %529 = vmatpush1.bf16.msra.mxu0 0
        %530 = vmatprep.subr.bf16.mxu0 0
        %531 = vmatpush1.bf16.msra.mxu0 0
        %532 = vmatprep.subr.bf16.mxu0 0
        %533 = vmatpush1.bf16.msra.mxu0 0
        %534 = vmatprep.subr.bf16.mxu0 0
        %535 = vmatpush1.bf16.msra.mxu0 0
        %536 = vmatprep.subr.bf16.mxu0 0
        %537 = vmatpush1.bf16.msra.mxu0 0
        %538 = vmatprep.subr.bf16.mxu0 0
        %539 = vmatpush1.bf16.msra.mxu0 0
        %540 = vmatprep.subr.bf16.mxu0 0
        %541 = vmatpush1.bf16.msra.mxu0 0
        %542 = vmatprep.subr.bf16.mxu0 0
        %543 = vmatpush1.bf16.msra.mxu0 0
        %544 = vmatprep.subr.bf16.mxu0 0
        %545 = vmatpush1.bf16.msra.mxu0 0
        %546 = vmatprep.subr.bf16.mxu0 0
        %547 = vmatpush1.bf16.msra.mxu0 0
        %548 = vmatprep.subr.bf16.mxu0 0
        %549 = vmatpush1.bf16.msra.mxu0 0
        %550 = vmatprep.mubr.bf16.mxu0 0
        %551 = vmatmul.mubr.bf16.gmra.mrb[0].mxu0 %v469
        %v552 = vpop.f32.mrb[0].mxu0
        %v553 = vadd.f32 0.0, %v552
        %v554 = vpop.f32.mrb[0].mxu0
        %v555 = vpop.f32.mrb[0].mxu0
        %v556 = vpop.f32.mrb[0].mxu0
        %557 = vdwg.mxu0
        %v558 = vpack.c.bf16 %v553, %v553
        %v559 = vld [vmem:[%s2] sm:$0x3]
        %s560 = scalar_lea.vmem %s2, 2
        %v561 = vld [vmem:[%s560] sm:$0x3]
        %vm562 = vcmask 64512
        %v564 = vsel %vm562, %v561, 0
        %vm566 = vcmask 1043456
        %v568 = vsel %vm566, %v558, 0
        %570 = vmatprep.subr.bf16.mxu0 0
        %571 = vmatpush1.bf16.msra.mxu0 %v568
        %572 = vmatprep.subr.bf16.mxu0 0
        %573 = vmatpush1.bf16.msra.mxu0 0
        %574 = vmatprep.subr.bf16.mxu0 0
        %575 = vmatpush1.bf16.msra.mxu0 0
        %576 = vmatprep.subr.bf16.mxu0 0
        %577 = vmatpush1.bf16.msra.mxu0 0
        %578 = vmatprep.subr.bf16.mxu0 0
        %579 = vmatpush1.bf16.msra.mxu0 0
        %580 = vmatprep.subr.bf16.mxu0 0
        %581 = vmatpush1.bf16.msra.mxu0 0
        %582 = vmatprep.subr.bf16.mxu0 0
        %583 = vmatpush1.bf16.msra.mxu0 0
        %584 = vmatprep.subr.bf16.mxu0 0
        %585 = vmatpush1.bf16.msra.mxu0 0
        %586 = vmatprep.subr.bf16.mxu0 0
        %587 = vmatpush1.bf16.msra.mxu0 0
        %588 = vmatprep.subr.bf16.mxu0 0
        %589 = vmatpush1.bf16.msra.mxu0 0
        %590 = vmatprep.subr.bf16.mxu0 0
        %591 = vmatpush1.bf16.msra.mxu0 0
        %592 = vmatprep.subr.bf16.mxu0 0
        %593 = vmatpush1.bf16.msra.mxu0 0
        %594 = vmatprep.subr.bf16.mxu0 0
        %595 = vmatpush1.bf16.msra.mxu0 0
        %596 = vmatprep.subr.bf16.mxu0 0
        %597 = vmatpush1.bf16.msra.mxu0 0
        %598 = vmatprep.subr.bf16.mxu0 0
        %599 = vmatpush1.bf16.msra.mxu0 0
        %600 = vmatprep.subr.bf16.mxu0 0
        %601 = vmatpush1.bf16.msra.mxu0 0
        %602 = vmatprep.mubr.bf16.mxu0 0
        %603 = vmatmul.mubr.bf16.gmra.mrb[0].mxu0 %v564
        %v604 = vpop.f32.mrb[0].mxu0
        %v605 = vadd.f32 0.0, %v604
        %v606 = vpop.f32.mrb[0].mxu0
        %v607 = vpop.f32.mrb[0].mxu0
        %v608 = vpop.f32.mrb[0].mxu0
        %609 = vdwg.mxu0
        %v611 = vsel %vm562, %v559, 0
        %v614 = vsel %vm566, %v511, 0
        %616 = vmatprep.subr.bf16.mxu0 0
        %617 = vmatpush1.bf16.msra.mxu0 %v614
        %618 = vmatprep.subr.bf16.mxu0 0
        %619 = vmatpush1.bf16.msra.mxu0 0
        %620 = vmatprep.subr.bf16.mxu0 0
        %621 = vmatpush1.bf16.msra.mxu0 0
        %622 = vmatprep.subr.bf16.mxu0 0
        %623 = vmatpush1.bf16.msra.mxu0 0
        %624 = vmatprep.subr.bf16.mxu0 0
        %625 = vmatpush1.bf16.msra.mxu0 0
        %626 = vmatprep.subr.bf16.mxu0 0
        %627 = vmatpush1.bf16.msra.mxu0 0
        %628 = vmatprep.subr.bf16.mxu0 0
        %629 = vmatpush1.bf16.msra.mxu0 0
        %630 = vmatprep.subr.bf16.mxu0 0
        %631 = vmatpush1.bf16.msra.mxu0 0
        %632 = vmatprep.subr.bf16.mxu0 0
        %633 = vmatpush1.bf16.msra.mxu0 0
        %634 = vmatprep.subr.bf16.mxu0 0
        %635 = vmatpush1.bf16.msra.mxu0 0
        %636 = vmatprep.subr.bf16.mxu0 0
        %637 = vmatpush1.bf16.msra.mxu0 0
        %638 = vmatprep.subr.bf16.mxu0 0
        %639 = vmatpush1.bf16.msra.mxu0 0
        %640 = vmatprep.subr.bf16.mxu0 0
        %641 = vmatpush1.bf16.msra.mxu0 0
        %642 = vmatprep.subr.bf16.mxu0 0
        %643 = vmatpush1.bf16.msra.mxu0 0
        %644 = vmatprep.subr.bf16.mxu0 0
        %645 = vmatpush1.bf16.msra.mxu0 0
        %646 = vmatprep.subr.bf16.mxu0 0
        %647 = vmatpush1.bf16.msra.mxu0 0
        %648 = vmatprep.mubr.bf16.mxu0 0
        %649 = vmatmul.mubr.bf16.gmra.mrb[0].mxu0 %v611
        %v650 = vpop.f32.mrb[0].mxu0
        %v651 = vadd.f32 %v605, %v650
        %v652 = vpop.f32.mrb[0].mxu0
        %v653 = vpop.f32.mrb[0].mxu0
        %v654 = vpop.f32.mrb[0].mxu0
        %655 = vdwg.mxu0
        %657 = vset.pattern.permute.xlu0 0
        %658 = vperm.xlu0 %657, %v401
        %v659 = vpop.permute.xlu0 %658
        %v661 = vadd.f32 %v651, %v659
        %v664 = vunpack.c.l.s4 1966171168
        %v665 = vunpack.c.0.s8 %v664
        %v666 = vlaneseq
        %v667 = vshrl.u32 %v666, 7
        %v668 = vsub.s32 %v665, %v667
        %v669 = vrot.slane %v661, %v668
        %v670 = vcombine.high %v669, %v669
        %v672 = vunpack.c.l.s4 1966171168
        %v673 = vunpack.c.0.s8 %v672
        %v674 = vlaneseq
        %v675 = vshrl.u32 %v674, 7
        %v676 = vsub.s32 %v673, %v675
        %v677 = vrot.slane %v669, %v676
        %v679 = vunpack.c.l.s4 1966171168
        %v680 = vunpack.c.0.s8 %v679
        %v681 = vlaneseq
        %v682 = vshrl.u32 %v681, 7
        %v683 = vsub.s32 %v680, %v682
        %v684 = vrot.slane %v670, %v683
        %v685 = vcombine.high %v677, %v677
        %v686 = vcombine.high %v684, %v684
        %s691 = scalar_lea.vmem %s317, 96 [#allocation3]
        %vm692 = vcmask 253952
        %693 = vst.msk [vmem:[%s691] sm:$0x1] %vm692, %v677
        %694 = vst.msk [vmem:[%s691 + $0x10] sm:$0x1] %vm692, %v684
        %695 = vst.msk [vmem:[%s691 + $0x20] sm:$0x1] %vm692, %v685
        %696 = vst.msk [vmem:[%s691 + $0x30] sm:$0x1] %vm692, %v686
        %s697 = scalar_lea.vmem %s2, 4
        %v698 = vld [vmem:[%s697] sm:$0x3]
        %s699 = scalar_lea.vmem %s2, 6
        %v700 = vld [vmem:[%s699] sm:$0x3]
        %v702 = vsel %vm562, %v700, 0
        %704 = vmatprep.subr.bf16.mxu0 0
        %705 = vmatpush1.bf16.msra.mxu0 %v568
        %706 = vmatprep.subr.bf16.mxu0 0
        %707 = vmatpush1.bf16.msra.mxu0 0
        %708 = vmatprep.subr.bf16.mxu0 0
        %709 = vmatpush1.bf16.msra.mxu0 0
        %710 = vmatprep.subr.bf16.mxu0 0
        %711 = vmatpush1.bf16.msra.mxu0 0
        %712 = vmatprep.subr.bf16.mxu0 0
        %713 = vmatpush1.bf16.msra.mxu0 0
        %714 = vmatprep.subr.bf16.mxu0 0
        %715 = vmatpush1.bf16.msra.mxu0 0
        %716 = vmatprep.subr.bf16.mxu0 0
        %717 = vmatpush1.bf16.msra.mxu0 0
        %718 = vmatprep.subr.bf16.mxu0 0
        %719 = vmatpush1.bf16.msra.mxu0 0
        %720 = vmatprep.subr.bf16.mxu0 0
        %721 = vmatpush1.bf16.msra.mxu0 0
        %722 = vmatprep.subr.bf16.mxu0 0
        %723 = vmatpush1.bf16.msra.mxu0 0
        %724 = vmatprep.subr.bf16.mxu0 0
        %725 = vmatpush1.bf16.msra.mxu0 0
        %726 = vmatprep.subr.bf16.mxu0 0
        %727 = vmatpush1.bf16.msra.mxu0 0
        %728 = vmatprep.subr.bf16.mxu0 0
        %729 = vmatpush1.bf16.msra.mxu0 0
        %730 = vmatprep.subr.bf16.mxu0 0
        %731 = vmatpush1.bf16.msra.mxu0 0
        %732 = vmatprep.subr.bf16.mxu0 0
        %733 = vmatpush1.bf16.msra.mxu0 0
        %734 = vmatprep.subr.bf16.mxu0 0
        %735 = vmatpush1.bf16.msra.mxu0 0
        %736 = vmatprep.mubr.bf16.mxu0 0
        %737 = vmatmul.mubr.bf16.gmra.mrb[0].mxu0 %v702
        %v738 = vpop.f32.mrb[0].mxu0
        %v739 = vadd.f32 0.0, %v738
        %v740 = vpop.f32.mrb[0].mxu0
        %v741 = vpop.f32.mrb[0].mxu0
        %v742 = vpop.f32.mrb[0].mxu0
        %743 = vdwg.mxu0
        %v745 = vsel %vm562, %v698, 0
        %747 = vmatprep.subr.bf16.mxu0 0
        %748 = vmatpush1.bf16.msra.mxu0 %v614
        %749 = vmatprep.subr.bf16.mxu0 0
        %750 = vmatpush1.bf16.msra.mxu0 0
        %751 = vmatprep.subr.bf16.mxu0 0
        %752 = vmatpush1.bf16.msra.mxu0 0
        %753 = vmatprep.subr.bf16.mxu0 0
        %754 = vmatpush1.bf16.msra.mxu0 0
        %755 = vmatprep.subr.bf16.mxu0 0
        %756 = vmatpush1.bf16.msra.mxu0 0
        %757 = vmatprep.subr.bf16.mxu0 0
        %758 = vmatpush1.bf16.msra.mxu0 0
        %759 = vmatprep.subr.bf16.mxu0 0
        %760 = vmatpush1.bf16.msra.mxu0 0
        %761 = vmatprep.subr.bf16.mxu0 0
        %762 = vmatpush1.bf16.msra.mxu0 0
        %763 = vmatprep.subr.bf16.mxu0 0
        %764 = vmatpush1.bf16.msra.mxu0 0
        %765 = vmatprep.subr.bf16.mxu0 0
        %766 = vmatpush1.bf16.msra.mxu0 0
        %767 = vmatprep.subr.bf16.mxu0 0
        %768 = vmatpush1.bf16.msra.mxu0 0
        %769 = vmatprep.subr.bf16.mxu0 0
        %770 = vmatpush1.bf16.msra.mxu0 0
        %771 = vmatprep.subr.bf16.mxu0 0
        %772 = vmatpush1.bf16.msra.mxu0 0
        %773 = vmatprep.subr.bf16.mxu0 0
        %774 = vmatpush1.bf16.msra.mxu0 0
        %775 = vmatprep.subr.bf16.mxu0 0
        %776 = vmatpush1.bf16.msra.mxu0 0
        %777 = vmatprep.subr.bf16.mxu0 0
        %778 = vmatpush1.bf16.msra.mxu0 0
        %779 = vmatprep.mubr.bf16.mxu0 0
        %780 = vmatmul.mubr.bf16.gmra.mrb[0].mxu0 %v745
        %v781 = vpop.f32.mrb[0].mxu0
        %v782 = vadd.f32 %v739, %v781
        %v783 = vpop.f32.mrb[0].mxu0
        %v784 = vpop.f32.mrb[0].mxu0
        %v785 = vpop.f32.mrb[0].mxu0
        %786 = vdwg.mxu0
        %v787 = vadd.f32 %v782, %v659
        %v790 = vunpack.c.l.s4 1966171168
        %v791 = vunpack.c.0.s8 %v790
        %v792 = vlaneseq
        %v793 = vshrl.u32 %v792, 7
        %v794 = vsub.s32 %v791, %v793
        %v795 = vrot.slane %v787, %v794
        %v796 = vcombine.high %v795, %v795
        %v798 = vunpack.c.l.s4 1966171168
        %v799 = vunpack.c.0.s8 %v798
        %v800 = vlaneseq
        %v801 = vshrl.u32 %v800, 7
        %v802 = vsub.s32 %v799, %v801
        %v803 = vrot.slane %v795, %v802
        %v805 = vunpack.c.l.s4 1966171168
        %v806 = vunpack.c.0.s8 %v805
        %v807 = vlaneseq
        %v808 = vshrl.u32 %v807, 7
        %v809 = vsub.s32 %v806, %v808
        %v810 = vrot.slane %v796, %v809
        %v811 = vcombine.high %v803, %v803
        %v812 = vcombine.high %v810, %v810
        %817 = vst.msk [vmem:[%s691 + $0x1] sm:$0x1] %vm692, %v803
        %818 = vst.msk [vmem:[%s691 + $0x11] sm:$0x1] %vm692, %v810
        %819 = vst.msk [vmem:[%s691 + $0x21] sm:$0x1] %vm692, %v811
        %820 = vst.msk [vmem:[%s691 + $0x31] sm:$0x1] %vm692, %v812
        %v821 = vld [vmem:[%s288 + $0x1] sm:$0x1]
        %v822 = vld [vmem:[%s288 + $0x9] sm:$0x1]
        %v823 = vld [vmem:[%s288 + $0x11] sm:$0x1]
        %v824 = vld [vmem:[%s288 + $0x19] sm:$0x1]
        %v825 = vld [vmem:[%s288 + $0x21] sm:$0x1]
        %v826 = vld [vmem:[%s288 + $0x29] sm:$0x1]
        %v827 = vld [vmem:[%s288 + $0x31] sm:$0x1]
        %v828 = vld [vmem:[%s288 + $0x39] sm:$0x1]
        %v829 = vpack.c.bf16 %v821, %v821
        %v830 = vpack.c.bf16 %v822, %v822
        %v831 = vpack.c.bf16 %v823, %v823
        %v832 = vpack.c.bf16 %v824, %v824
        %v833 = vpack.c.bf16 %v825, %v825
        %v834 = vpack.c.bf16 %v826, %v826
        %v835 = vpack.c.bf16 %v827, %v827
        %v836 = vpack.c.bf16 %v828, %v828
        %v845 = vunpack.c.l.b16 %v829
        %v846 = vunpack.c.l.b16 %v830
        %v847 = vunpack.c.l.b16 %v831
        %v848 = vunpack.c.l.b16 %v832
        %v849 = vunpack.c.l.b16 %v833
        %v850 = vunpack.c.l.b16 %v834
        %v851 = vunpack.c.l.b16 %v835
        %v852 = vunpack.c.l.b16 %v836
        %v853 = vrot.slane %v846, 7
        %v854 = vsel %vm440, %v853, %v845
        %v855 = vrot.slane %v847, 6
        %v856 = vsel %vm443, %v855, %v854
        %v857 = vrot.slane %v848, 5
        %v858 = vsel %vm446, %v857, %v856
        %v859 = vrot.slane %v849, 4
        %v860 = vsel %vm449, %v859, %v858
        %v861 = vrot.slane %v850, 3
        %v862 = vsel %vm452, %v861, %v860
        %v863 = vrot.slane %v851, 2
        %v864 = vsel %vm455, %v863, %v862
        %v865 = vrot.slane %v852, 1
        %v866 = vsel %vm458, %v865, %v864
        %v867 = vpack.c.b16 %v866, %v866
        %v869 = vsel %vm467, %v867, 0
        %871 = vmatprep.subr.bf16.mxu0 0
        %872 = vmatpush1.bf16.msra.mxu0 %v465
        %873 = vmatprep.subr.bf16.mxu0 0
        %874 = vmatpush1.bf16.msra.mxu0 0
        %875 = vmatprep.subr.bf16.mxu0 0
        %876 = vmatpush1.bf16.msra.mxu0 0
        %877 = vmatprep.subr.bf16.mxu0 0
        %878 = vmatpush1.bf16.msra.mxu0 0
        %879 = vmatprep.subr.bf16.mxu0 0
        %880 = vmatpush1.bf16.msra.mxu0 0
        %881 = vmatprep.subr.bf16.mxu0 0
        %882 = vmatpush1.bf16.msra.mxu0 0
        %883 = vmatprep.subr.bf16.mxu0 0
        %884 = vmatpush1.bf16.msra.mxu0 0
        %885 = vmatprep.subr.bf16.mxu0 0
        %886 = vmatpush1.bf16.msra.mxu0 0
        %887 = vmatprep.subr.bf16.mxu0 0
        %888 = vmatpush1.bf16.msra.mxu0 0
        %889 = vmatprep.subr.bf16.mxu0 0
        %890 = vmatpush1.bf16.msra.mxu0 0
        %891 = vmatprep.subr.bf16.mxu0 0
        %892 = vmatpush1.bf16.msra.mxu0 0
        %893 = vmatprep.subr.bf16.mxu0 0
        %894 = vmatpush1.bf16.msra.mxu0 0
        %895 = vmatprep.subr.bf16.mxu0 0
        %896 = vmatpush1.bf16.msra.mxu0 0
        %897 = vmatprep.subr.bf16.mxu0 0
        %898 = vmatpush1.bf16.msra.mxu0 0
        %899 = vmatprep.subr.bf16.mxu0 0
        %900 = vmatpush1.bf16.msra.mxu0 0
        %901 = vmatprep.subr.bf16.mxu0 0
        %902 = vmatpush1.bf16.msra.mxu0 0
        %903 = vmatprep.mubr.bf16.mxu0 0
        %904 = vmatmul.mubr.bf16.gmra.mrb[0].mxu0 %v869
        %v905 = vpop.f32.mrb[0].mxu0
        %v906 = vadd.f32 0.0, %v905
        %v907 = vpop.f32.mrb[0].mxu0
        %v908 = vpop.f32.mrb[0].mxu0
        %v909 = vpop.f32.mrb[0].mxu0
        %910 = vdwg.mxu0
        %v911 = vpack.c.bf16 %v906, %v906
        %912 = vmatprep.subr.bf16.mxu0 0
        %913 = vmatpush1.bf16.msra.mxu0 %v516
        %914 = vmatprep.subr.bf16.mxu0 0
        %915 = vmatpush1.bf16.msra.mxu0 0
        %916 = vmatprep.subr.bf16.mxu0 0
        %917 = vmatpush1.bf16.msra.mxu0 0
        %918 = vmatprep.subr.bf16.mxu0 0
        %919 = vmatpush1.bf16.msra.mxu0 0
        %920 = vmatprep.subr.bf16.mxu0 0
        %921 = vmatpush1.bf16.msra.mxu0 0
        %922 = vmatprep.subr.bf16.mxu0 0
        %923 = vmatpush1.bf16.msra.mxu0 0
        %924 = vmatprep.subr.bf16.mxu0 0
        %925 = vmatpush1.bf16.msra.mxu0 0
        %926 = vmatprep.subr.bf16.mxu0 0
        %927 = vmatpush1.bf16.msra.mxu0 0
        %928 = vmatprep.subr.bf16.mxu0 0
        %929 = vmatpush1.bf16.msra.mxu0 0
        %930 = vmatprep.subr.bf16.mxu0 0
        %931 = vmatpush1.bf16.msra.mxu0 0
        %932 = vmatprep.subr.bf16.mxu0 0
        %933 = vmatpush1.bf16.msra.mxu0 0
        %934 = vmatprep.subr.bf16.mxu0 0
        %935 = vmatpush1.bf16.msra.mxu0 0
        %936 = vmatprep.subr.bf16.mxu0 0
        %937 = vmatpush1.bf16.msra.mxu0 0
        %938 = vmatprep.subr.bf16.mxu0 0
        %939 = vmatpush1.bf16.msra.mxu0 0
        %940 = vmatprep.subr.bf16.mxu0 0
        %941 = vmatpush1.bf16.msra.mxu0 0
        %942 = vmatprep.subr.bf16.mxu0 0
        %943 = vmatpush1.bf16.msra.mxu0 0
        %944 = vmatprep.mubr.bf16.mxu0 0
        %945 = vmatmul.mubr.bf16.gmra.mrb[0].mxu0 %v869
        %v946 = vpop.f32.mrb[0].mxu0
        %v947 = vadd.f32 0.0, %v946
        %v948 = vpop.f32.mrb[0].mxu0
        %v949 = vpop.f32.mrb[0].mxu0
        %v950 = vpop.f32.mrb[0].mxu0
        %951 = vdwg.mxu0
        %v952 = vpack.c.bf16 %v947, %v947
        %v953 = vld [vmem:[%s2] sm:$0x3]
        %v954 = vld [vmem:[%s560] sm:$0x3]
        %v956 = vsel %vm562, %v954, 0
        %v959 = vsel %vm566, %v952, 0
        %961 = vmatprep.subr.bf16.mxu0 0
        %962 = vmatpush1.bf16.msra.mxu0 %v959
        %963 = vmatprep.subr.bf16.mxu0 0
        %964 = vmatpush1.bf16.msra.mxu0 0
        %965 = vmatprep.subr.bf16.mxu0 0
        %966 = vmatpush1.bf16.msra.mxu0 0
        %967 = vmatprep.subr.bf16.mxu0 0
        %968 = vmatpush1.bf16.msra.mxu0 0
        %969 = vmatprep.subr.bf16.mxu0 0
        %970 = vmatpush1.bf16.msra.mxu0 0
        %971 = vmatprep.subr.bf16.mxu0 0
        %972 = vmatpush1.bf16.msra.mxu0 0
        %973 = vmatprep.subr.bf16.mxu0 0
        %974 = vmatpush1.bf16.msra.mxu0 0
        %975 = vmatprep.subr.bf16.mxu0 0
        %976 = vmatpush1.bf16.msra.mxu0 0
        %977 = vmatprep.subr.bf16.mxu0 0
        %978 = vmatpush1.bf16.msra.mxu0 0
        %979 = vmatprep.subr.bf16.mxu0 0
        %980 = vmatpush1.bf16.msra.mxu0 0
        %981 = vmatprep.subr.bf16.mxu0 0
        %982 = vmatpush1.bf16.msra.mxu0 0
        %983 = vmatprep.subr.bf16.mxu0 0
        %984 = vmatpush1.bf16.msra.mxu0 0
        %985 = vmatprep.subr.bf16.mxu0 0
        %986 = vmatpush1.bf16.msra.mxu0 0
        %987 = vmatprep.subr.bf16.mxu0 0
        %988 = vmatpush1.bf16.msra.mxu0 0
        %989 = vmatprep.subr.bf16.mxu0 0
        %990 = vmatpush1.bf16.msra.mxu0 0
        %991 = vmatprep.subr.bf16.mxu0 0
        %992 = vmatpush1.bf16.msra.mxu0 0
        %993 = vmatprep.mubr.bf16.mxu0 0
        %994 = vmatmul.mubr.bf16.gmra.mrb[0].mxu0 %v956
        %v995 = vpop.f32.mrb[0].mxu0
        %v996 = vadd.f32 0.0, %v995
        %v997 = vpop.f32.mrb[0].mxu0
        %v998 = vpop.f32.mrb[0].mxu0
        %v999 = vpop.f32.mrb[0].mxu0
        %1000 = vdwg.mxu0
        %v1002 = vsel %vm562, %v953, 0
        %v1005 = vsel %vm566, %v911, 0
        %1007 = vmatprep.subr.bf16.mxu0 0
        %1008 = vmatpush1.bf16.msra.mxu0 %v1005
        %1009 = vmatprep.subr.bf16.mxu0 0
        %1010 = vmatpush1.bf16.msra.mxu0 0
        %1011 = vmatprep.subr.bf16.mxu0 0
        %1012 = vmatpush1.bf16.msra.mxu0 0
        %1013 = vmatprep.subr.bf16.mxu0 0
        %1014 = vmatpush1.bf16.msra.mxu0 0
        %1015 = vmatprep.subr.bf16.mxu0 0
        %1016 = vmatpush1.bf16.msra.mxu0 0
        %1017 = vmatprep.subr.bf16.mxu0 0
        %1018 = vmatpush1.bf16.msra.mxu0 0
        %1019 = vmatprep.subr.bf16.mxu0 0
        %1020 = vmatpush1.bf16.msra.mxu0 0
        %1021 = vmatprep.subr.bf16.mxu0 0
        %1022 = vmatpush1.bf16.msra.mxu0 0
        %1023 = vmatprep.subr.bf16.mxu0 0
        %1024 = vmatpush1.bf16.msra.mxu0 0
        %1025 = vmatprep.subr.bf16.mxu0 0
        %1026 = vmatpush1.bf16.msra.mxu0 0
        %1027 = vmatprep.subr.bf16.mxu0 0
        %1028 = vmatpush1.bf16.msra.mxu0 0
        %1029 = vmatprep.subr.bf16.mxu0 0
        %1030 = vmatpush1.bf16.msra.mxu0 0
        %1031 = vmatprep.subr.bf16.mxu0 0
        %1032 = vmatpush1.bf16.msra.mxu0 0
        %1033 = vmatprep.subr.bf16.mxu0 0
        %1034 = vmatpush1.bf16.msra.mxu0 0
        %1035 = vmatprep.subr.bf16.mxu0 0
        %1036 = vmatpush1.bf16.msra.mxu0 0
        %1037 = vmatprep.subr.bf16.mxu0 0
        %1038 = vmatpush1.bf16.msra.mxu0 0
        %1039 = vmatprep.mubr.bf16.mxu0 0
        %1040 = vmatmul.mubr.bf16.gmra.mrb[0].mxu0 %v1002
        %v1041 = vpop.f32.mrb[0].mxu0
        %v1042 = vadd.f32 %v996, %v1041
        %v1043 = vpop.f32.mrb[0].mxu0
        %v1044 = vpop.f32.mrb[0].mxu0
        %v1045 = vpop.f32.mrb[0].mxu0
        %1046 = vdwg.mxu0
        %v1047 = vadd.f32 %v1042, %v659
        %v1050 = vunpack.c.l.s4 1966171168
        %v1051 = vunpack.c.0.s8 %v1050
        %v1052 = vlaneseq
        %v1053 = vshrl.u32 %v1052, 7
        %v1054 = vsub.s32 %v1051, %v1053
        %v1055 = vrot.slane %v1047, %v1054
        %v1056 = vcombine.high %v1055, %v1055
        %v1058 = vunpack.c.l.s4 1966171168
        %v1059 = vunpack.c.0.s8 %v1058
        %v1060 = vlaneseq
        %v1061 = vshrl.u32 %v1060, 7
        %v1062 = vsub.s32 %v1059, %v1061
        %v1063 = vrot.slane %v1055, %v1062
        %v1065 = vunpack.c.l.s4 1966171168
        %v1066 = vunpack.c.0.s8 %v1065
        %v1067 = vlaneseq
        %v1068 = vshrl.u32 %v1067, 7
        %v1069 = vsub.s32 %v1066, %v1068
        %v1070 = vrot.slane %v1056, %v1069
        %v1071 = vcombine.high %v1063, %v1063
        %v1072 = vcombine.high %v1070, %v1070
        %1077 = vst.msk [vmem:[%s691 + $0x2] sm:$0x1] %vm692, %v1063
        %1078 = vst.msk [vmem:[%s691 + $0x12] sm:$0x1] %vm692, %v1070
        %1079 = vst.msk [vmem:[%s691 + $0x22] sm:$0x1] %vm692, %v1071
        %1080 = vst.msk [vmem:[%s691 + $0x32] sm:$0x1] %vm692, %v1072
        %v1081 = vld [vmem:[%s697] sm:$0x3]
        %v1082 = vld [vmem:[%s699] sm:$0x3]
        %v1084 = vsel %vm562, %v1082, 0
        %1086 = vmatprep.subr.bf16.mxu0 0
        %1087 = vmatpush1.bf16.msra.mxu0 %v959
        %1088 = vmatprep.subr.bf16.mxu0 0
        %1089 = vmatpush1.bf16.msra.mxu0 0
        %1090 = vmatprep.subr.bf16.mxu0 0
        %1091 = vmatpush1.bf16.msra.mxu0 0
        %1092 = vmatprep.subr.bf16.mxu0 0
        %1093 = vmatpush1.bf16.msra.mxu0 0
        %1094 = vmatprep.subr.bf16.mxu0 0
        %1095 = vmatpush1.bf16.msra.mxu0 0
        %1096 = vmatprep.subr.bf16.mxu0 0
        %1097 = vmatpush1.bf16.msra.mxu0 0
        %1098 = vmatprep.subr.bf16.mxu0 0
        %1099 = vmatpush1.bf16.msra.mxu0 0
        %1100 = vmatprep.subr.bf16.mxu0 0
        %1101 = vmatpush1.bf16.msra.mxu0 0
        %1102 = vmatprep.subr.bf16.mxu0 0
        %1103 = vmatpush1.bf16.msra.mxu0 0
        %1104 = vmatprep.subr.bf16.mxu0 0
        %1105 = vmatpush1.bf16.msra.mxu0 0
        %1106 = vmatprep.subr.bf16.mxu0 0
        %1107 = vmatpush1.bf16.msra.mxu0 0
        %1108 = vmatprep.subr.bf16.mxu0 0
        %1109 = vmatpush1.bf16.msra.mxu0 0
        %1110 = vmatprep.subr.bf16.mxu0 0
        %1111 = vmatpush1.bf16.msra.mxu0 0
        %1112 = vmatprep.subr.bf16.mxu0 0
        %1113 = vmatpush1.bf16.msra.mxu0 0
        %1114 = vmatprep.subr.bf16.mxu0 0
        %1115 = vmatpush1.bf16.msra.mxu0 0
        %1116 = vmatprep.subr.bf16.mxu0 0
        %1117 = vmatpush1.bf16.msra.mxu0 0
        %1118 = vmatprep.mubr.bf16.mxu0 0
        %1119 = vmatmul.mubr.bf16.gmra.mrb[0].mxu0 %v1084
        %v1120 = vpop.f32.mrb[0].mxu0
        %v1121 = vadd.f32 0.0, %v1120
        %v1122 = vpop.f32.mrb[0].mxu0
        %v1123 = vpop.f32.mrb[0].mxu0
        %v1124 = vpop.f32.mrb[0].mxu0
        %1125 = vdwg.mxu0
        %v1127 = vsel %vm562, %v1081, 0
        %1129 = vmatprep.subr.bf16.mxu0 0
        %1130 = vmatpush1.bf16.msra.mxu0 %v1005
        %1131 = vmatprep.subr.bf16.mxu0 0
        %1132 = vmatpush1.bf16.msra.mxu0 0
        %1133 = vmatprep.subr.bf16.mxu0 0
        %1134 = vmatpush1.bf16.msra.mxu0 0
        %1135 = vmatprep.subr.bf16.mxu0 0
        %1136 = vmatpush1.bf16.msra.mxu0 0
        %1137 = vmatprep.subr.bf16.mxu0 0
        %1138 = vmatpush1.bf16.msra.mxu0 0
        %1139 = vmatprep.subr.bf16.mxu0 0
        %1140 = vmatpush1.bf16.msra.mxu0 0
        %1141 = vmatprep.subr.bf16.mxu0 0
        %1142 = vmatpush1.bf16.msra.mxu0 0
        %1143 = vmatprep.subr.bf16.mxu0 0
        %1144 = vmatpush1.bf16.msra.mxu0 0
        %1145 = vmatprep.subr.bf16.mxu0 0
        %1146 = vmatpush1.bf16.msra.mxu0 0
        %1147 = vmatprep.subr.bf16.mxu0 0
        %1148 = vmatpush1.bf16.msra.mxu0 0
        %1149 = vmatprep.subr.bf16.mxu0 0
        %1150 = vmatpush1.bf16.msra.mxu0 0
        %1151 = vmatprep.subr.bf16.mxu0 0
        %1152 = vmatpush1.bf16.msra.mxu0 0
        %1153 = vmatprep.subr.bf16.mxu0 0
        %1154 = vmatpush1.bf16.msra.mxu0 0
        %1155 = vmatprep.subr.bf16.mxu0 0
        %1156 = vmatpush1.bf16.msra.mxu0 0
        %1157 = vmatprep.subr.bf16.mxu0 0
        %1158 = vmatpush1.bf16.msra.mxu0 0
        %1159 = vmatprep.subr.bf16.mxu0 0
        %1160 = vmatpush1.bf16.msra.mxu0 0
        %1161 = vmatprep.mubr.bf16.mxu0 0
        %1162 = vmatmul.mubr.bf16.gmra.mrb[0].mxu0 %v1127
        %v1163 = vpop.f32.mrb[0].mxu0
        %v1164 = vadd.f32 %v1121, %v1163
        %v1165 = vpop.f32.mrb[0].mxu0
        %v1166 = vpop.f32.mrb[0].mxu0
        %v1167 = vpop.f32.mrb[0].mxu0
        %1168 = vdwg.mxu0
        %v1169 = vadd.f32 %v1164, %v659
        %v1172 = vunpack.c.l.s4 1966171168
        %v1173 = vunpack.c.0.s8 %v1172
        %v1174 = vlaneseq
        %v1175 = vshrl.u32 %v1174, 7
        %v1176 = vsub.s32 %v1173, %v1175
        %v1177 = vrot.slane %v1169, %v1176
        %v1178 = vcombine.high %v1177, %v1177
        %v1180 = vunpack.c.l.s4 1966171168
        %v1181 = vunpack.c.0.s8 %v1180
        %v1182 = vlaneseq
        %v1183 = vshrl.u32 %v1182, 7
        %v1184 = vsub.s32 %v1181, %v1183
        %v1185 = vrot.slane %v1177, %v1184
        %v1187 = vunpack.c.l.s4 1966171168
        %v1188 = vunpack.c.0.s8 %v1187
        %v1189 = vlaneseq
        %v1190 = vshrl.u32 %v1189, 7
        %v1191 = vsub.s32 %v1188, %v1190
        %v1192 = vrot.slane %v1178, %v1191
        %v1193 = vcombine.high %v1185, %v1185
        %v1194 = vcombine.high %v1192, %v1192
        %1199 = vst.msk [vmem:[%s691 + $0x3] sm:$0x1] %vm692, %v1185
        %1200 = vst.msk [vmem:[%s691 + $0x13] sm:$0x1] %vm692, %v1192
        %1201 = vst.msk [vmem:[%s691 + $0x23] sm:$0x1] %vm692, %v1193
        %1202 = vst.msk [vmem:[%s691 + $0x33] sm:$0x1] %vm692, %v1194
        %v1203 = vld [vmem:[%s288 + $0x2] sm:$0x1]
        %v1204 = vld [vmem:[%s288 + $0xa] sm:$0x1]
        %v1205 = vld [vmem:[%s288 + $0x12] sm:$0x1]
        %v1206 = vld [vmem:[%s288 + $0x1a] sm:$0x1]
        %v1207 = vld [vmem:[%s288 + $0x22] sm:$0x1]
        %v1208 = vld [vmem:[%s288 + $0x2a] sm:$0x1]
        %v1209 = vld [vmem:[%s288 + $0x32] sm:$0x1]
        %v1210 = vld [vmem:[%s288 + $0x3a] sm:$0x1]
        %v1211 = vpack.c.bf16 %v1203, %v1203
        %v1212 = vpack.c.bf16 %v1204, %v1204
        %v1213 = vpack.c.bf16 %v1205, %v1205
        %v1214 = vpack.c.bf16 %v1206, %v1206
        %v1215 = vpack.c.bf16 %v1207, %v1207
        %v1216 = vpack.c.bf16 %v1208, %v1208
        %v1217 = vpack.c.bf16 %v1209, %v1209
        %v1218 = vpack.c.bf16 %v1210, %v1210
        %v1227 = vunpack.c.l.b16 %v1211
        %v1228 = vunpack.c.l.b16 %v1212
        %v1229 = vunpack.c.l.b16 %v1213
        %v1230 = vunpack.c.l.b16 %v1214
        %v1231 = vunpack.c.l.b16 %v1215
        %v1232 = vunpack.c.l.b16 %v1216
        %v1233 = vunpack.c.l.b16 %v1217
        %v1234 = vunpack.c.l.b16 %v1218
        %v1235 = vrot.slane %v1228, 7
        %v1236 = vsel %vm440, %v1235, %v1227
        %v1237 = vrot.slane %v1229, 6
        %v1238 = vsel %vm443, %v1237, %v1236
        %v1239 = vrot.slane %v1230, 5
        %v1240 = vsel %vm446, %v1239, %v1238
        %v1241 = vrot.slane %v1231, 4
        %v1242 = vsel %vm449, %v1241, %v1240
        %v1243 = vrot.slane %v1232, 3
        %v1244 = vsel %vm452, %v1243, %v1242
        %v1245 = vrot.slane %v1233, 2
        %v1246 = vsel %vm455, %v1245, %v1244
        %v1247 = vrot.slane %v1234, 1
        %v1248 = vsel %vm458, %v1247, %v1246
        %v1249 = vpack.c.b16 %v1248, %v1248
        %v1251 = vsel %vm467, %v1249, 0
        %1253 = vmatprep.subr.bf16.mxu0 0
        %1254 = vmatpush1.bf16.msra.mxu0 %v465
        %1255 = vmatprep.subr.bf16.mxu0 0
        %1256 = vmatpush1.bf16.msra.mxu0 0
        %1257 = vmatprep.subr.bf16.mxu0 0
        %1258 = vmatpush1.bf16.msra.mxu0 0
        %1259 = vmatprep.subr.bf16.mxu0 0
        %1260 = vmatpush1.bf16.msra.mxu0 0
        %1261 = vmatprep.subr.bf16.mxu0 0
        %1262 = vmatpush1.bf16.msra.mxu0 0
        %1263 = vmatprep.subr.bf16.mxu0 0
        %1264 = vmatpush1.bf16.msra.mxu0 0
        %1265 = vmatprep.subr.bf16.mxu0 0
        %1266 = vmatpush1.bf16.msra.mxu0 0
        %1267 = vmatprep.subr.bf16.mxu0 0
        %1268 = vmatpush1.bf16.msra.mxu0 0
        %1269 = vmatprep.subr.bf16.mxu0 0
        %1270 = vmatpush1.bf16.msra.mxu0 0
        %1271 = vmatprep.subr.bf16.mxu0 0
        %1272 = vmatpush1.bf16.msra.mxu0 0
        %1273 = vmatprep.subr.bf16.mxu0 0
        %1274 = vmatpush1.bf16.msra.mxu0 0
        %1275 = vmatprep.subr.bf16.mxu0 0
        %1276 = vmatpush1.bf16.msra.mxu0 0
        %1277 = vmatprep.subr.bf16.mxu0 0
        %1278 = vmatpush1.bf16.msra.mxu0 0
        %1279 = vmatprep.subr.bf16.mxu0 0
        %1280 = vmatpush1.bf16.msra.mxu0 0
        %1281 = vmatprep.subr.bf16.mxu0 0
        %1282 = vmatpush1.bf16.msra.mxu0 0
        %1283 = vmatprep.subr.bf16.mxu0 0
        %1284 = vmatpush1.bf16.msra.mxu0 0
        %1285 = vmatprep.mubr.bf16.mxu0 0
        %1286 = vmatmul.mubr.bf16.gmra.mrb[0].mxu0 %v1251
        %v1287 = vpop.f32.mrb[0].mxu0
        %v1288 = vadd.f32 0.0, %v1287
        %v1289 = vpop.f32.mrb[0].mxu0
        %v1290 = vpop.f32.mrb[0].mxu0
        %v1291 = vpop.f32.mrb[0].mxu0
        %1292 = vdwg.mxu0
        %v1293 = vpack.c.bf16 %v1288, %v1288
        %1294 = vmatprep.subr.bf16.mxu0 0
        %1295 = vmatpush1.bf16.msra.mxu0 %v516
        %1296 = vmatprep.subr.bf16.mxu0 0
        %1297 = vmatpush1.bf16.msra.mxu0 0
        %1298 = vmatprep.subr.bf16.mxu0 0
        %1299 = vmatpush1.bf16.msra.mxu0 0
        %1300 = vmatprep.subr.bf16.mxu0 0
        %1301 = vmatpush1.bf16.msra.mxu0 0
        %1302 = vmatprep.subr.bf16.mxu0 0
        %1303 = vmatpush1.bf16.msra.mxu0 0
        %1304 = vmatprep.subr.bf16.mxu0 0
        %1305 = vmatpush1.bf16.msra.mxu0 0
        %1306 = vmatprep.subr.bf16.mxu0 0
        %1307 = vmatpush1.bf16.msra.mxu0 0
        %1308 = vmatprep.subr.bf16.mxu0 0
        %1309 = vmatpush1.bf16.msra.mxu0 0
        %1310 = vmatprep.subr.bf16.mxu0 0
        %1311 = vmatpush1.bf16.msra.mxu0 0
        %1312 = vmatprep.subr.bf16.mxu0 0
        %1313 = vmatpush1.bf16.msra.mxu0 0
        %1314 = vmatprep.subr.bf16.mxu0 0
        %1315 = vmatpush1.bf16.msra.mxu0 0
        %1316 = vmatprep.subr.bf16.mxu0 0
        %1317 = vmatpush1.bf16.msra.mxu0 0
        %1318 = vmatprep.subr.bf16.mxu0 0
        %1319 = vmatpush1.bf16.msra.mxu0 0
        %1320 = vmatprep.subr.bf16.mxu0 0
        %1321 = vmatpush1.bf16.msra.mxu0 0
        %1322 = vmatprep.subr.bf16.mxu0 0
        %1323 = vmatpush1.bf16.msra.mxu0 0
        %1324 = vmatprep.subr.bf16.mxu0 0
        %1325 = vmatpush1.bf16.msra.mxu0 0
        %1326 = vmatprep.mubr.bf16.mxu0 0
        %1327 = vmatmul.mubr.bf16.gmra.mrb[0].mxu0 %v1251
        %v1328 = vpop.f32.mrb[0].mxu0
        %v1329 = vadd.f32 0.0, %v1328
        %v1330 = vpop.f32.mrb[0].mxu0
        %v1331 = vpop.f32.mrb[0].mxu0
        %v1332 = vpop.f32.mrb[0].mxu0
        %1333 = vdwg.mxu0
        %v1334 = vpack.c.bf16 %v1329, %v1329
        %v1335 = vld [vmem:[%s2] sm:$0x3]
        %v1336 = vld [vmem:[%s560] sm:$0x3]
        %v1338 = vsel %vm562, %v1336, 0
        %v1341 = vsel %vm566, %v1334, 0
        %1343 = vmatprep.subr.bf16.mxu0 0
        %1344 = vmatpush1.bf16.msra.mxu0 %v1341
        %1345 = vmatprep.subr.bf16.mxu0 0
        %1346 = vmatpush1.bf16.msra.mxu0 0
        %1347 = vmatprep.subr.bf16.mxu0 0
        %1348 = vmatpush1.bf16.msra.mxu0 0
        %1349 = vmatprep.subr.bf16.mxu0 0
        %1350 = vmatpush1.bf16.msra.mxu0 0
        %1351 = vmatprep.subr.bf16.mxu0 0
        %1352 = vmatpush1.bf16.msra.mxu0 0
        %1353 = vmatprep.subr.bf16.mxu0 0
        %1354 = vmatpush1.bf16.msra.mxu0 0
        %1355 = vmatprep.subr.bf16.mxu0 0
        %1356 = vmatpush1.bf16.msra.mxu0 0
        %1357 = vmatprep.subr.bf16.mxu0 0
        %1358 = vmatpush1.bf16.msra.mxu0 0
        %1359 = vmatprep.subr.bf16.mxu0 0
        %1360 = vmatpush1.bf16.msra.mxu0 0
        %1361 = vmatprep.subr.bf16.mxu0 0
        %1362 = vmatpush1.bf16.msra.mxu0 0
        %1363 = vmatprep.subr.bf16.mxu0 0
        %1364 = vmatpush1.bf16.msra.mxu0 0
        %1365 = vmatprep.subr.bf16.mxu0 0
        %1366 = vmatpush1.bf16.msra.mxu0 0
        %1367 = vmatprep.subr.bf16.mxu0 0
        %1368 = vmatpush1.bf16.msra.mxu0 0
        %1369 = vmatprep.subr.bf16.mxu0 0
        %1370 = vmatpush1.bf16.msra.mxu0 0
        %1371 = vmatprep.subr.bf16.mxu0 0
        %1372 = vmatpush1.bf16.msra.mxu0 0
        %1373 = vmatprep.subr.bf16.mxu0 0
        %1374 = vmatpush1.bf16.msra.mxu0 0
        %1375 = vmatprep.mubr.bf16.mxu0 0
        %1376 = vmatmul.mubr.bf16.gmra.mrb[0].mxu0 %v1338
        %v1377 = vpop.f32.mrb[0].mxu0
        %v1378 = vadd.f32 0.0, %v1377
        %v1379 = vpop.f32.mrb[0].mxu0
        %v1380 = vpop.f32.mrb[0].mxu0
        %v1381 = vpop.f32.mrb[0].mxu0
        %1382 = vdwg.mxu0
        %v1384 = vsel %vm562, %v1335, 0
        %v1387 = vsel %vm566, %v1293, 0
        %1389 = vmatprep.subr.bf16.mxu0 0
        %1390 = vmatpush1.bf16.msra.mxu0 %v1387
        %1391 = vmatprep.subr.bf16.mxu0 0
        %1392 = vmatpush1.bf16.msra.mxu0 0
        %1393 = vmatprep.subr.bf16.mxu0 0
        %1394 = vmatpush1.bf16.msra.mxu0 0
        %1395 = vmatprep.subr.bf16.mxu0 0
        %1396 = vmatpush1.bf16.msra.mxu0 0
        %1397 = vmatprep.subr.bf16.mxu0 0
        %1398 = vmatpush1.bf16.msra.mxu0 0
        %1399 = vmatprep.subr.bf16.mxu0 0
        %1400 = vmatpush1.bf16.msra.mxu0 0
        %1401 = vmatprep.subr.bf16.mxu0 0
        %1402 = vmatpush1.bf16.msra.mxu0 0
        %1403 = vmatprep.subr.bf16.mxu0 0
        %1404 = vmatpush1.bf16.msra.mxu0 0
        %1405 = vmatprep.subr.bf16.mxu0 0
        %1406 = vmatpush1.bf16.msra.mxu0 0
        %1407 = vmatprep.subr.bf16.mxu0 0
        %1408 = vmatpush1.bf16.msra.mxu0 0
        %1409 = vmatprep.subr.bf16.mxu0 0
        %1410 = vmatpush1.bf16.msra.mxu0 0
        %1411 = vmatprep.subr.bf16.mxu0 0
        %1412 = vmatpush1.bf16.msra.mxu0 0
        %1413 = vmatprep.subr.bf16.mxu0 0
        %1414 = vmatpush1.bf16.msra.mxu0 0
        %1415 = vmatprep.subr.bf16.mxu0 0
        %1416 = vmatpush1.bf16.msra.mxu0 0
        %1417 = vmatprep.subr.bf16.mxu0 0
        %1418 = vmatpush1.bf16.msra.mxu0 0
        %1419 = vmatprep.subr.bf16.mxu0 0
        %1420 = vmatpush1.bf16.msra.mxu0 0
        %1421 = vmatprep.mubr.bf16.mxu0 0
        %1422 = vmatmul.mubr.bf16.gmra.mrb[0].mxu0 %v1384
        %v1423 = vpop.f32.mrb[0].mxu0
        %v1424 = vadd.f32 %v1378, %v1423
        %v1425 = vpop.f32.mrb[0].mxu0
        %v1426 = vpop.f32.mrb[0].mxu0
        %v1427 = vpop.f32.mrb[0].mxu0
        %1428 = vdwg.mxu0
        %v1429 = vadd.f32 %v1424, %v659
        %v1432 = vunpack.c.l.s4 1966171168
        %v1433 = vunpack.c.0.s8 %v1432
        %v1434 = vlaneseq
        %v1435 = vshrl.u32 %v1434, 7
        %v1436 = vsub.s32 %v1433, %v1435
        %v1437 = vrot.slane %v1429, %v1436
        %v1438 = vcombine.high %v1437, %v1437
        %v1440 = vunpack.c.l.s4 1966171168
        %v1441 = vunpack.c.0.s8 %v1440
        %v1442 = vlaneseq
        %v1443 = vshrl.u32 %v1442, 7
        %v1444 = vsub.s32 %v1441, %v1443
        %v1445 = vrot.slane %v1437, %v1444
        %v1447 = vunpack.c.l.s4 1966171168
        %v1448 = vunpack.c.0.s8 %v1447
        %v1449 = vlaneseq
        %v1450 = vshrl.u32 %v1449, 7
        %v1451 = vsub.s32 %v1448, %v1450
        %v1452 = vrot.slane %v1438, %v1451
        %v1453 = vcombine.high %v1445, %v1445
        %v1454 = vcombine.high %v1452, %v1452
        %1459 = vst.msk [vmem:[%s691 + $0x4] sm:$0x1] %vm692, %v1445
        %1460 = vst.msk [vmem:[%s691 + $0x14] sm:$0x1] %vm692, %v1452
        %1461 = vst.msk [vmem:[%s691 + $0x24] sm:$0x1] %vm692, %v1453
        %1462 = vst.msk [vmem:[%s691 + $0x34] sm:$0x1] %vm692, %v1454
        %v1463 = vld [vmem:[%s697] sm:$0x3]
        %v1464 = vld [vmem:[%s699] sm:$0x3]
        %v1466 = vsel %vm562, %v1464, 0
        %1468 = vmatprep.subr.bf16.mxu0 0
        %1469 = vmatpush1.bf16.msra.mxu0 %v1341
        %1470 = vmatprep.subr.bf16.mxu0 0
        %1471 = vmatpush1.bf16.msra.mxu0 0
        %1472 = vmatprep.subr.bf16.mxu0 0
        %1473 = vmatpush1.bf16.msra.mxu0 0
        %1474 = vmatprep.subr.bf16.mxu0 0
        %1475 = vmatpush1.bf16.msra.mxu0 0
        %1476 = vmatprep.subr.bf16.mxu0 0
        %1477 = vmatpush1.bf16.msra.mxu0 0
        %1478 = vmatprep.subr.bf16.mxu0 0
        %1479 = vmatpush1.bf16.msra.mxu0 0
        %1480 = vmatprep.subr.bf16.mxu0 0
        %1481 = vmatpush1.bf16.msra.mxu0 0
        %1482 = vmatprep.subr.bf16.mxu0 0
        %1483 = vmatpush1.bf16.msra.mxu0 0
        %1484 = vmatprep.subr.bf16.mxu0 0
        %1485 = vmatpush1.bf16.msra.mxu0 0
        %1486 = vmatprep.subr.bf16.mxu0 0
        %1487 = vmatpush1.bf16.msra.mxu0 0
        %1488 = vmatprep.subr.bf16.mxu0 0
        %1489 = vmatpush1.bf16.msra.mxu0 0
        %1490 = vmatprep.subr.bf16.mxu0 0
        %1491 = vmatpush1.bf16.msra.mxu0 0
        %1492 = vmatprep.subr.bf16.mxu0 0
        %1493 = vmatpush1.bf16.msra.mxu0 0
        %1494 = vmatprep.subr.bf16.mxu0 0
        %1495 = vmatpush1.bf16.msra.mxu0 0
        %1496 = vmatprep.subr.bf16.mxu0 0
        %1497 = vmatpush1.bf16.msra.mxu0 0
        %1498 = vmatprep.subr.bf16.mxu0 0
        %1499 = vmatpush1.bf16.msra.mxu0 0
        %1500 = vmatprep.mubr.bf16.mxu0 0
        %1501 = vmatmul.mubr.bf16.gmra.mrb[0].mxu0 %v1466
        %v1502 = vpop.f32.mrb[0].mxu0
        %v1503 = vadd.f32 0.0, %v1502
        %v1504 = vpop.f32.mrb[0].mxu0
        %v1505 = vpop.f32.mrb[0].mxu0
        %v1506 = vpop.f32.mrb[0].mxu0
        %1507 = vdwg.mxu0
        %v1509 = vsel %vm562, %v1463, 0
        %1511 = vmatprep.subr.bf16.mxu0 0
        %1512 = vmatpush1.bf16.msra.mxu0 %v1387
        %1513 = vmatprep.subr.bf16.mxu0 0
        %1514 = vmatpush1.bf16.msra.mxu0 0
        %1515 = vmatprep.subr.bf16.mxu0 0
        %1516 = vmatpush1.bf16.msra.mxu0 0
        %1517 = vmatprep.subr.bf16.mxu0 0
        %1518 = vmatpush1.bf16.msra.mxu0 0
        %1519 = vmatprep.subr.bf16.mxu0 0
        %1520 = vmatpush1.bf16.msra.mxu0 0
        %1521 = vmatprep.subr.bf16.mxu0 0
        %1522 = vmatpush1.bf16.msra.mxu0 0
        %1523 = vmatprep.subr.bf16.mxu0 0
        %1524 = vmatpush1.bf16.msra.mxu0 0
        %1525 = vmatprep.subr.bf16.mxu0 0
        %1526 = vmatpush1.bf16.msra.mxu0 0
        %1527 = vmatprep.subr.bf16.mxu0 0
        %1528 = vmatpush1.bf16.msra.mxu0 0
        %1529 = vmatprep.subr.bf16.mxu0 0
        %1530 = vmatpush1.bf16.msra.mxu0 0
        %1531 = vmatprep.subr.bf16.mxu0 0
        %1532 = vmatpush1.bf16.msra.mxu0 0
        %1533 = vmatprep.subr.bf16.mxu0 0
        %1534 = vmatpush1.bf16.msra.mxu0 0
        %1535 = vmatprep.subr.bf16.mxu0 0
        %1536 = vmatpush1.bf16.msra.mxu0 0
        %1537 = vmatprep.subr.bf16.mxu0 0
        %1538 = vmatpush1.bf16.msra.mxu0 0
        %1539 = vmatprep.subr.bf16.mxu0 0
        %1540 = vmatpush1.bf16.msra.mxu0 0
        %1541 = vmatprep.subr.bf16.mxu0 0
        %1542 = vmatpush1.bf16.msra.mxu0 0
        %1543 = vmatprep.mubr.bf16.mxu0 0
        %1544 = vmatmul.mubr.bf16.gmra.mrb[0].mxu0 %v1509
        %v1545 = vpop.f32.mrb[0].mxu0
        %v1546 = vadd.f32 %v1503, %v1545
        %v1547 = vpop.f32.mrb[0].mxu0
        %v1548 = vpop.f32.mrb[0].mxu0
        %v1549 = vpop.f32.mrb[0].mxu0
        %1550 = vdwg.mxu0
        %v1551 = vadd.f32 %v1546, %v659
        %v1554 = vunpack.c.l.s4 1966171168
        %v1555 = vunpack.c.0.s8 %v1554
        %v1556 = vlaneseq
        %v1557 = vshrl.u32 %v1556, 7
        %v1558 = vsub.s32 %v1555, %v1557
        %v1559 = vrot.slane %v1551, %v1558
        %v1560 = vcombine.high %v1559, %v1559
        %v1562 = vunpack.c.l.s4 1966171168
        %v1563 = vunpack.c.0.s8 %v1562
        %v1564 = vlaneseq
        %v1565 = vshrl.u32 %v1564, 7
        %v1566 = vsub.s32 %v1563, %v1565
        %v1567 = vrot.slane %v1559, %v1566
        %v1569 = vunpack.c.l.s4 1966171168
        %v1570 = vunpack.c.0.s8 %v1569
        %v1571 = vlaneseq
        %v1572 = vshrl.u32 %v1571, 7
        %v1573 = vsub.s32 %v1570, %v1572
        %v1574 = vrot.slane %v1560, %v1573
        %v1575 = vcombine.high %v1567, %v1567
        %v1576 = vcombine.high %v1574, %v1574
        %1581 = vst.msk [vmem:[%s691 + $0x5] sm:$0x1] %vm692, %v1567
        %1582 = vst.msk [vmem:[%s691 + $0x15] sm:$0x1] %vm692, %v1574
        %1583 = vst.msk [vmem:[%s691 + $0x25] sm:$0x1] %vm692, %v1575
        %1584 = vst.msk [vmem:[%s691 + $0x35] sm:$0x1] %vm692, %v1576
        %v1585 = vld [vmem:[%s288 + $0x3] sm:$0x1]
        %v1586 = vld [vmem:[%s288 + $0xb] sm:$0x1]
        %v1587 = vld [vmem:[%s288 + $0x13] sm:$0x1]
        %v1588 = vld [vmem:[%s288 + $0x1b] sm:$0x1]
        %v1589 = vld [vmem:[%s288 + $0x23] sm:$0x1]
        %v1590 = vld [vmem:[%s288 + $0x2b] sm:$0x1]
        %v1591 = vld [vmem:[%s288 + $0x33] sm:$0x1]
        %v1592 = vld [vmem:[%s288 + $0x3b] sm:$0x1]
        %v1593 = vpack.c.bf16 %v1585, %v1585
        %v1594 = vpack.c.bf16 %v1586, %v1586
        %v1595 = vpack.c.bf16 %v1587, %v1587
        %v1596 = vpack.c.bf16 %v1588, %v1588
        %v1597 = vpack.c.bf16 %v1589, %v1589
        %v1598 = vpack.c.bf16 %v1590, %v1590
        %v1599 = vpack.c.bf16 %v1591, %v1591
        %v1600 = vpack.c.bf16 %v1592, %v1592
        %v1609 = vunpack.c.l.b16 %v1593
        %v1610 = vunpack.c.l.b16 %v1594
        %v1611 = vunpack.c.l.b16 %v1595
        %v1612 = vunpack.c.l.b16 %v1596
        %v1613 = vunpack.c.l.b16 %v1597
        %v1614 = vunpack.c.l.b16 %v1598
        %v1615 = vunpack.c.l.b16 %v1599
        %v1616 = vunpack.c.l.b16 %v1600
        %v1617 = vrot.slane %v1610, 7
        %v1618 = vsel %vm440, %v1617, %v1609
        %v1619 = vrot.slane %v1611, 6
        %v1620 = vsel %vm443, %v1619, %v1618
        %v1621 = vrot.slane %v1612, 5
        %v1622 = vsel %vm446, %v1621, %v1620
        %v1623 = vrot.slane %v1613, 4
        %v1624 = vsel %vm449, %v1623, %v1622
        %v1625 = vrot.slane %v1614, 3
        %v1626 = vsel %vm452, %v1625, %v1624
        %v1627 = vrot.slane %v1615, 2
        %v1628 = vsel %vm455, %v1627, %v1626
        %v1629 = vrot.slane %v1616, 1
        %v1630 = vsel %vm458, %v1629, %v1628
        %v1631 = vpack.c.b16 %v1630, %v1630
        %v1633 = vsel %vm467, %v1631, 0
        %1635 = vmatprep.subr.bf16.mxu0 0
        %1636 = vmatpush1.bf16.msra.mxu0 %v465
        %1637 = vmatprep.subr.bf16.mxu0 0
        %1638 = vmatpush1.bf16.msra.mxu0 0
        %1639 = vmatprep.subr.bf16.mxu0 0
        %1640 = vmatpush1.bf16.msra.mxu0 0
        %1641 = vmatprep.subr.bf16.mxu0 0
        %1642 = vmatpush1.bf16.msra.mxu0 0
        %1643 = vmatprep.subr.bf16.mxu0 0
        %1644 = vmatpush1.bf16.msra.mxu0 0
        %1645 = vmatprep.subr.bf16.mxu0 0
        %1646 = vmatpush1.bf16.msra.mxu0 0
        %1647 = vmatprep.subr.bf16.mxu0 0
        %1648 = vmatpush1.bf16.msra.mxu0 0
        %1649 = vmatprep.subr.bf16.mxu0 0
        %1650 = vmatpush1.bf16.msra.mxu0 0
        %1651 = vmatprep.subr.bf16.mxu0 0
        %1652 = vmatpush1.bf16.msra.mxu0 0
        %1653 = vmatprep.subr.bf16.mxu0 0
        %1654 = vmatpush1.bf16.msra.mxu0 0
        %1655 = vmatprep.subr.bf16.mxu0 0
        %1656 = vmatpush1.bf16.msra.mxu0 0
        %1657 = vmatprep.subr.bf16.mxu0 0
        %1658 = vmatpush1.bf16.msra.mxu0 0
        %1659 = vmatprep.subr.bf16.mxu0 0
        %1660 = vmatpush1.bf16.msra.mxu0 0
        %1661 = vmatprep.subr.bf16.mxu0 0
        %1662 = vmatpush1.bf16.msra.mxu0 0
        %1663 = vmatprep.subr.bf16.mxu0 0
        %1664 = vmatpush1.bf16.msra.mxu0 0
        %1665 = vmatprep.subr.bf16.mxu0 0
        %1666 = vmatpush1.bf16.msra.mxu0 0
        %1667 = vmatprep.mubr.bf16.mxu0 0
        %1668 = vmatmul.mubr.bf16.gmra.mrb[0].mxu0 %v1633
        %v1669 = vpop.f32.mrb[0].mxu0
        %v1670 = vadd.f32 0.0, %v1669
        %v1671 = vpop.f32.mrb[0].mxu0
        %v1672 = vpop.f32.mrb[0].mxu0
        %v1673 = vpop.f32.mrb[0].mxu0
        %1674 = vdwg.mxu0
        %v1675 = vpack.c.bf16 %v1670, %v1670
        %1676 = vmatprep.subr.bf16.mxu0 0
        %1677 = vmatpush1.bf16.msra.mxu0 %v516
        %1678 = vmatprep.subr.bf16.mxu0 0
        %1679 = vmatpush1.bf16.msra.mxu0 0
        %1680 = vmatprep.subr.bf16.mxu0 0
        %1681 = vmatpush1.bf16.msra.mxu0 0
        %1682 = vmatprep.subr.bf16.mxu0 0
        %1683 = vmatpush1.bf16.msra.mxu0 0
        %1684 = vmatprep.subr.bf16.mxu0 0
        %1685 = vmatpush1.bf16.msra.mxu0 0
        %1686 = vmatprep.subr.bf16.mxu0 0
        %1687 = vmatpush1.bf16.msra.mxu0 0
        %1688 = vmatprep.subr.bf16.mxu0 0
        %1689 = vmatpush1.bf16.msra.mxu0 0
        %1690 = vmatprep.subr.bf16.mxu0 0
        %1691 = vmatpush1.bf16.msra.mxu0 0
        %1692 = vmatprep.subr.bf16.mxu0 0
        %1693 = vmatpush1.bf16.msra.mxu0 0
        %1694 = vmatprep.subr.bf16.mxu0 0
        %1695 = vmatpush1.bf16.msra.mxu0 0
        %1696 = vmatprep.subr.bf16.mxu0 0
        %1697 = vmatpush1.bf16.msra.mxu0 0
        %1698 = vmatprep.subr.bf16.mxu0 0
        %1699 = vmatpush1.bf16.msra.mxu0 0
        %1700 = vmatprep.subr.bf16.mxu0 0
        %1701 = vmatpush1.bf16.msra.mxu0 0
        %1702 = vmatprep.subr.bf16.mxu0 0
        %1703 = vmatpush1.bf16.msra.mxu0 0
        %1704 = vmatprep.subr.bf16.mxu0 0
        %1705 = vmatpush1.bf16.msra.mxu0 0
        %1706 = vmatprep.subr.bf16.mxu0 0
        %1707 = vmatpush1.bf16.msra.mxu0 0
        %1708 = vmatprep.mubr.bf16.mxu0 0
        %1709 = vmatmul.mubr.bf16.gmra.mrb[0].mxu0 %v1633
        %v1710 = vpop.f32.mrb[0].mxu0
        %v1711 = vadd.f32 0.0, %v1710
        %v1712 = vpop.f32.mrb[0].mxu0
        %v1713 = vpop.f32.mrb[0].mxu0
        %v1714 = vpop.f32.mrb[0].mxu0
        %1715 = vdwg.mxu0
        %v1716 = vpack.c.bf16 %v1711, %v1711
        %v1717 = vld [vmem:[%s2] sm:$0x3]
        %v1718 = vld [vmem:[%s560] sm:$0x3]
        %v1720 = vsel %vm562, %v1718, 0
        %v1723 = vsel %vm566, %v1716, 0
        %1725 = vmatprep.subr.bf16.mxu0 0
        %1726 = vmatpush1.bf16.msra.mxu0 %v1723
        %1727 = vmatprep.subr.bf16.mxu0 0
        %1728 = vmatpush1.bf16.msra.mxu0 0
        %1729 = vmatprep.subr.bf16.mxu0 0
        %1730 = vmatpush1.bf16.msra.mxu0 0
        %1731 = vmatprep.subr.bf16.mxu0 0
        %1732 = vmatpush1.bf16.msra.mxu0 0
        %1733 = vmatprep.subr.bf16.mxu0 0
        %1734 = vmatpush1.bf16.msra.mxu0 0
        %1735 = vmatprep.subr.bf16.mxu0 0
        %1736 = vmatpush1.bf16.msra.mxu0 0
        %1737 = vmatprep.subr.bf16.mxu0 0
        %1738 = vmatpush1.bf16.msra.mxu0 0
        %1739 = vmatprep.subr.bf16.mxu0 0
        %1740 = vmatpush1.bf16.msra.mxu0 0
        %1741 = vmatprep.subr.bf16.mxu0 0
        %1742 = vmatpush1.bf16.msra.mxu0 0
        %1743 = vmatprep.subr.bf16.mxu0 0
        %1744 = vmatpush1.bf16.msra.mxu0 0
        %1745 = vmatprep.subr.bf16.mxu0 0
        %1746 = vmatpush1.bf16.msra.mxu0 0
        %1747 = vmatprep.subr.bf16.mxu0 0
        %1748 = vmatpush1.bf16.msra.mxu0 0
        %1749 = vmatprep.subr.bf16.mxu0 0
        %1750 = vmatpush1.bf16.msra.mxu0 0
        %1751 = vmatprep.subr.bf16.mxu0 0
        %1752 = vmatpush1.bf16.msra.mxu0 0
        %1753 = vmatprep.subr.bf16.mxu0 0
        %1754 = vmatpush1.bf16.msra.mxu0 0
        %1755 = vmatprep.subr.bf16.mxu0 0
        %1756 = vmatpush1.bf16.msra.mxu0 0
        %1757 = vmatprep.mubr.bf16.mxu0 0
        %1758 = vmatmul.mubr.bf16.gmra.mrb[0].mxu0 %v1720
        %v1759 = vpop.f32.mrb[0].mxu0
        %v1760 = vadd.f32 0.0, %v1759
        %v1761 = vpop.f32.mrb[0].mxu0
        %v1762 = vpop.f32.mrb[0].mxu0
        %v1763 = vpop.f32.mrb[0].mxu0
        %1764 = vdwg.mxu0
        %v1766 = vsel %vm562, %v1717, 0
        %v1769 = vsel %vm566, %v1675, 0
        %1771 = vmatprep.subr.bf16.mxu0 0
        %1772 = vmatpush1.bf16.msra.mxu0 %v1769
        %1773 = vmatprep.subr.bf16.mxu0 0
        %1774 = vmatpush1.bf16.msra.mxu0 0
        %1775 = vmatprep.subr.bf16.mxu0 0
        %1776 = vmatpush1.bf16.msra.mxu0 0
        %1777 = vmatprep.subr.bf16.mxu0 0
        %1778 = vmatpush1.bf16.msra.mxu0 0
        %1779 = vmatprep.subr.bf16.mxu0 0
        %1780 = vmatpush1.bf16.msra.mxu0 0
        %1781 = vmatprep.subr.bf16.mxu0 0
        %1782 = vmatpush1.bf16.msra.mxu0 0
        %1783 = vmatprep.subr.bf16.mxu0 0
        %1784 = vmatpush1.bf16.msra.mxu0 0
        %1785 = vmatprep.subr.bf16.mxu0 0
        %1786 = vmatpush1.bf16.msra.mxu0 0
        %1787 = vmatprep.subr.bf16.mxu0 0
        %1788 = vmatpush1.bf16.msra.mxu0 0
        %1789 = vmatprep.subr.bf16.mxu0 0
        %1790 = vmatpush1.bf16.msra.mxu0 0
        %1791 = vmatprep.subr.bf16.mxu0 0
        %1792 = vmatpush1.bf16.msra.mxu0 0
        %1793 = vmatprep.subr.bf16.mxu0 0
        %1794 = vmatpush1.bf16.msra.mxu0 0
        %1795 = vmatprep.subr.bf16.mxu0 0
        %1796 = vmatpush1.bf16.msra.mxu0 0
        %1797 = vmatprep.subr.bf16.mxu0 0
        %1798 = vmatpush1.bf16.msra.mxu0 0
        %1799 = vmatprep.subr.bf16.mxu0 0
        %1800 = vmatpush1.bf16.msra.mxu0 0
        %1801 = vmatprep.subr.bf16.mxu0 0
        %1802 = vmatpush1.bf16.msra.mxu0 0
        %1803 = vmatprep.mubr.bf16.mxu0 0
        %1804 = vmatmul.mubr.bf16.gmra.mrb[0].mxu0 %v1766
        %v1805 = vpop.f32.mrb[0].mxu0
        %v1806 = vadd.f32 %v1760, %v1805
        %v1807 = vpop.f32.mrb[0].mxu0
        %v1808 = vpop.f32.mrb[0].mxu0
        %v1809 = vpop.f32.mrb[0].mxu0
        %1810 = vdwg.mxu0
        %v1811 = vadd.f32 %v1806, %v659
        %v1814 = vunpack.c.l.s4 1966171168
        %v1815 = vunpack.c.0.s8 %v1814
        %v1816 = vlaneseq
        %v1817 = vshrl.u32 %v1816, 7
        %v1818 = vsub.s32 %v1815, %v1817
        %v1819 = vrot.slane %v1811, %v1818
        %v1820 = vcombine.high %v1819, %v1819
        %v1822 = vunpack.c.l.s4 1966171168
        %v1823 = vunpack.c.0.s8 %v1822
        %v1824 = vlaneseq
        %v1825 = vshrl.u32 %v1824, 7
        %v1826 = vsub.s32 %v1823, %v1825
        %v1827 = vrot.slane %v1819, %v1826
        %v1829 = vunpack.c.l.s4 1966171168
        %v1830 = vunpack.c.0.s8 %v1829
        %v1831 = vlaneseq
        %v1832 = vshrl.u32 %v1831, 7
        %v1833 = vsub.s32 %v1830, %v1832
        %v1834 = vrot.slane %v1820, %v1833
        %v1835 = vcombine.high %v1827, %v1827
        %v1836 = vcombine.high %v1834, %v1834
        %1841 = vst.msk [vmem:[%s691 + $0x6] sm:$0x1] %vm692, %v1827
        %1842 = vst.msk [vmem:[%s691 + $0x16] sm:$0x1] %vm692, %v1834
        %1843 = vst.msk [vmem:[%s691 + $0x26] sm:$0x1] %vm692, %v1835
        %1844 = vst.msk [vmem:[%s691 + $0x36] sm:$0x1] %vm692, %v1836
        %v1845 = vld [vmem:[%s697] sm:$0x3]
        %v1846 = vld [vmem:[%s699] sm:$0x3]
        %v1848 = vsel %vm562, %v1846, 0
        %1850 = vmatprep.subr.bf16.mxu0 0
        %1851 = vmatpush1.bf16.msra.mxu0 %v1723
        %1852 = vmatprep.subr.bf16.mxu0 0
        %1853 = vmatpush1.bf16.msra.mxu0 0
        %1854 = vmatprep.subr.bf16.mxu0 0
        %1855 = vmatpush1.bf16.msra.mxu0 0
        %1856 = vmatprep.subr.bf16.mxu0 0
        %1857 = vmatpush1.bf16.msra.mxu0 0
        %1858 = vmatprep.subr.bf16.mxu0 0
        %1859 = vmatpush1.bf16.msra.mxu0 0
        %1860 = vmatprep.subr.bf16.mxu0 0
        %1861 = vmatpush1.bf16.msra.mxu0 0
        %1862 = vmatprep.subr.bf16.mxu0 0
        %1863 = vmatpush1.bf16.msra.mxu0 0
        %1864 = vmatprep.subr.bf16.mxu0 0
        %1865 = vmatpush1.bf16.msra.mxu0 0
        %1866 = vmatprep.subr.bf16.mxu0 0
        %1867 = vmatpush1.bf16.msra.mxu0 0
        %1868 = vmatprep.subr.bf16.mxu0 0
        %1869 = vmatpush1.bf16.msra.mxu0 0
        %1870 = vmatprep.subr.bf16.mxu0 0
        %1871 = vmatpush1.bf16.msra.mxu0 0
        %1872 = vmatprep.subr.bf16.mxu0 0
        %1873 = vmatpush1.bf16.msra.mxu0 0
        %1874 = vmatprep.subr.bf16.mxu0 0
        %1875 = vmatpush1.bf16.msra.mxu0 0
        %1876 = vmatprep.subr.bf16.mxu0 0
        %1877 = vmatpush1.bf16.msra.mxu0 0
        %1878 = vmatprep.subr.bf16.mxu0 0
        %1879 = vmatpush1.bf16.msra.mxu0 0
        %1880 = vmatprep.subr.bf16.mxu0 0
        %1881 = vmatpush1.bf16.msra.mxu0 0
        %1882 = vmatprep.mubr.bf16.mxu0 0
        %1883 = vmatmul.mubr.bf16.gmra.mrb[0].mxu0 %v1848
        %v1884 = vpop.f32.mrb[0].mxu0
        %v1885 = vadd.f32 0.0, %v1884
        %v1886 = vpop.f32.mrb[0].mxu0
        %v1887 = vpop.f32.mrb[0].mxu0
        %v1888 = vpop.f32.mrb[0].mxu0
        %1889 = vdwg.mxu0
        %v1891 = vsel %vm562, %v1845, 0
        %1893 = vmatprep.subr.bf16.mxu0 0
        %1894 = vmatpush1.bf16.msra.mxu0 %v1769
        %1895 = vmatprep.subr.bf16.mxu0 0
        %1896 = vmatpush1.bf16.msra.mxu0 0
        %1897 = vmatprep.subr.bf16.mxu0 0
        %1898 = vmatpush1.bf16.msra.mxu0 0
        %1899 = vmatprep.subr.bf16.mxu0 0
        %1900 = vmatpush1.bf16.msra.mxu0 0
        %1901 = vmatprep.subr.bf16.mxu0 0
        %1902 = vmatpush1.bf16.msra.mxu0 0
        %1903 = vmatprep.subr.bf16.mxu0 0
        %1904 = vmatpush1.bf16.msra.mxu0 0
        %1905 = vmatprep.subr.bf16.mxu0 0
        %1906 = vmatpush1.bf16.msra.mxu0 0
        %1907 = vmatprep.subr.bf16.mxu0 0
        %1908 = vmatpush1.bf16.msra.mxu0 0
        %1909 = vmatprep.subr.bf16.mxu0 0
        %1910 = vmatpush1.bf16.msra.mxu0 0
        %1911 = vmatprep.subr.bf16.mxu0 0
        %1912 = vmatpush1.bf16.msra.mxu0 0
        %1913 = vmatprep.subr.bf16.mxu0 0
        %1914 = vmatpush1.bf16.msra.mxu0 0
        %1915 = vmatprep.subr.bf16.mxu0 0
        %1916 = vmatpush1.bf16.msra.mxu0 0
        %1917 = vmatprep.subr.bf16.mxu0 0
        %1918 = vmatpush1.bf16.msra.mxu0 0
        %1919 = vmatprep.subr.bf16.mxu0 0
        %1920 = vmatpush1.bf16.msra.mxu0 0
        %1921 = vmatprep.subr.bf16.mxu0 0
        %1922 = vmatpush1.bf16.msra.mxu0 0
        %1923 = vmatprep.subr.bf16.mxu0 0
        %1924 = vmatpush1.bf16.msra.mxu0 0
        %1925 = vmatprep.mubr.bf16.mxu0 0
        %1926 = vmatmul.mubr.bf16.gmra.mrb[0].mxu0 %v1891
        %v1927 = vpop.f32.mrb[0].mxu0
        %v1928 = vadd.f32 %v1885, %v1927
        %v1929 = vpop.f32.mrb[0].mxu0
        %v1930 = vpop.f32.mrb[0].mxu0
        %v1931 = vpop.f32.mrb[0].mxu0
        %1932 = vdwg.mxu0
        %v1933 = vadd.f32 %v1928, %v659
        %v1936 = vunpack.c.l.s4 1966171168
        %v1937 = vunpack.c.0.s8 %v1936
        %v1938 = vlaneseq
        %v1939 = vshrl.u32 %v1938, 7
        %v1940 = vsub.s32 %v1937, %v1939
        %v1941 = vrot.slane %v1933, %v1940
        %v1942 = vcombine.high %v1941, %v1941
        %v1944 = vunpack.c.l.s4 1966171168
        %v1945 = vunpack.c.0.s8 %v1944
        %v1946 = vlaneseq
        %v1947 = vshrl.u32 %v1946, 7
        %v1948 = vsub.s32 %v1945, %v1947
        %v1949 = vrot.slane %v1941, %v1948
        %v1951 = vunpack.c.l.s4 1966171168
        %v1952 = vunpack.c.0.s8 %v1951
        %v1953 = vlaneseq
        %v1954 = vshrl.u32 %v1953, 7
        %v1955 = vsub.s32 %v1952, %v1954
        %v1956 = vrot.slane %v1942, %v1955
        %v1957 = vcombine.high %v1949, %v1949
        %v1958 = vcombine.high %v1956, %v1956
        %1963 = vst.msk [vmem:[%s691 + $0x7] sm:$0x1] %vm692, %v1949
        %1964 = vst.msk [vmem:[%s691 + $0x17] sm:$0x1] %vm692, %v1956
        %1965 = vst.msk [vmem:[%s691 + $0x27] sm:$0x1] %vm692, %v1957
        %1966 = vst.msk [vmem:[%s691 + $0x37] sm:$0x1] %vm692, %v1958
        %v1967 = vld [vmem:[%s288 + $0x4] sm:$0x1]
        %v1968 = vld [vmem:[%s288 + $0xc] sm:$0x1]
        %v1969 = vld [vmem:[%s288 + $0x14] sm:$0x1]
        %v1970 = vld [vmem:[%s288 + $0x1c] sm:$0x1]
        %v1971 = vld [vmem:[%s288 + $0x24] sm:$0x1]
        %v1972 = vld [vmem:[%s288 + $0x2c] sm:$0x1]
        %v1973 = vld [vmem:[%s288 + $0x34] sm:$0x1]
        %v1974 = vld [vmem:[%s288 + $0x3c] sm:$0x1]
        %v1975 = vpack.c.bf16 %v1967, %v1967
        %v1976 = vpack.c.bf16 %v1968, %v1968
        %v1977 = vpack.c.bf16 %v1969, %v1969
        %v1978 = vpack.c.bf16 %v1970, %v1970
        %v1979 = vpack.c.bf16 %v1971, %v1971
        %v1980 = vpack.c.bf16 %v1972, %v1972
        %v1981 = vpack.c.bf16 %v1973, %v1973
        %v1982 = vpack.c.bf16 %v1974, %v1974
        %v1991 = vunpack.c.l.b16 %v1975
        %v1992 = vunpack.c.l.b16 %v1976
        %v1993 = vunpack.c.l.b16 %v1977
        %v1994 = vunpack.c.l.b16 %v1978
        %v1995 = vunpack.c.l.b16 %v1979
        %v1996 = vunpack.c.l.b16 %v1980
        %v1997 = vunpack.c.l.b16 %v1981
        %v1998 = vunpack.c.l.b16 %v1982
        %v1999 = vrot.slane %v1992, 7
        %v2000 = vsel %vm440, %v1999, %v1991
        %v2001 = vrot.slane %v1993, 6
        %v2002 = vsel %vm443, %v2001, %v2000
        %v2003 = vrot.slane %v1994, 5
        %v2004 = vsel %vm446, %v2003, %v2002
        %v2005 = vrot.slane %v1995, 4
        %v2006 = vsel %vm449, %v2005, %v2004
        %v2007 = vrot.slane %v1996, 3
        %v2008 = vsel %vm452, %v2007, %v2006
        %v2009 = vrot.slane %v1997, 2
        %v2010 = vsel %vm455, %v2009, %v2008
        %v2011 = vrot.slane %v1998, 1
        %v2012 = vsel %vm458, %v2011, %v2010
        %v2013 = vpack.c.b16 %v2012, %v2012
        %v2015 = vsel %vm467, %v2013, 0
        %2017 = vmatprep.subr.bf16.mxu0 0
        %2018 = vmatpush1.bf16.msra.mxu0 %v465
        %2019 = vmatprep.subr.bf16.mxu0 0
        %2020 = vmatpush1.bf16.msra.mxu0 0
        %2021 = vmatprep.subr.bf16.mxu0 0
        %2022 = vmatpush1.bf16.msra.mxu0 0
        %2023 = vmatprep.subr.bf16.mxu0 0
        %2024 = vmatpush1.bf16.msra.mxu0 0
        %2025 = vmatprep.subr.bf16.mxu0 0
        %2026 = vmatpush1.bf16.msra.mxu0 0
        %2027 = vmatprep.subr.bf16.mxu0 0
        %2028 = vmatpush1.bf16.msra.mxu0 0
        %2029 = vmatprep.subr.bf16.mxu0 0
        %2030 = vmatpush1.bf16.msra.mxu0 0
        %2031 = vmatprep.subr.bf16.mxu0 0
        %2032 = vmatpush1.bf16.msra.mxu0 0
        %2033 = vmatprep.subr.bf16.mxu0 0
        %2034 = vmatpush1.bf16.msra.mxu0 0
        %2035 = vmatprep.subr.bf16.mxu0 0
        %2036 = vmatpush1.bf16.msra.mxu0 0
        %2037 = vmatprep.subr.bf16.mxu0 0
        %2038 = vmatpush1.bf16.msra.mxu0 0
        %2039 = vmatprep.subr.bf16.mxu0 0
        %2040 = vmatpush1.bf16.msra.mxu0 0
        %2041 = vmatprep.subr.bf16.mxu0 0
        %2042 = vmatpush1.bf16.msra.mxu0 0
        %2043 = vmatprep.subr.bf16.mxu0 0
        %2044 = vmatpush1.bf16.msra.mxu0 0
        %2045 = vmatprep.subr.bf16.mxu0 0
        %2046 = vmatpush1.bf16.msra.mxu0 0
        %2047 = vmatprep.subr.bf16.mxu0 0
        %2048 = vmatpush1.bf16.msra.mxu0 0
        %2049 = vmatprep.mubr.bf16.mxu0 0
        %2050 = vmatmul.mubr.bf16.gmra.mrb[0].mxu0 %v2015
        %v2051 = vpop.f32.mrb[0].mxu0
        %v2052 = vadd.f32 0.0, %v2051
        %v2053 = vpop.f32.mrb[0].mxu0
        %v2054 = vpop.f32.mrb[0].mxu0
        %v2055 = vpop.f32.mrb[0].mxu0
        %2056 = vdwg.mxu0
        %v2057 = vpack.c.bf16 %v2052, %v2052
        %2058 = vmatprep.subr.bf16.mxu0 0
        %2059 = vmatpush1.bf16.msra.mxu0 %v516
        %2060 = vmatprep.subr.bf16.mxu0 0
        %2061 = vmatpush1.bf16.msra.mxu0 0
        %2062 = vmatprep.subr.bf16.mxu0 0
        %2063 = vmatpush1.bf16.msra.mxu0 0
        %2064 = vmatprep.subr.bf16.mxu0 0
        %2065 = vmatpush1.bf16.msra.mxu0 0
        %2066 = vmatprep.subr.bf16.mxu0 0
        %2067 = vmatpush1.bf16.msra.mxu0 0
        %2068 = vmatprep.subr.bf16.mxu0 0
        %2069 = vmatpush1.bf16.msra.mxu0 0
        %2070 = vmatprep.subr.bf16.mxu0 0
        %2071 = vmatpush1.bf16.msra.mxu0 0
        %2072 = vmatprep.subr.bf16.mxu0 0
        %2073 = vmatpush1.bf16.msra.mxu0 0
        %2074 = vmatprep.subr.bf16.mxu0 0
        %2075 = vmatpush1.bf16.msra.mxu0 0
        %2076 = vmatprep.subr.bf16.mxu0 0
        %2077 = vmatpush1.bf16.msra.mxu0 0
        %2078 = vmatprep.subr.bf16.mxu0 0
        %2079 = vmatpush1.bf16.msra.mxu0 0
        %2080 = vmatprep.subr.bf16.mxu0 0
        %2081 = vmatpush1.bf16.msra.mxu0 0
        %2082 = vmatprep.subr.bf16.mxu0 0
        %2083 = vmatpush1.bf16.msra.mxu0 0
        %2084 = vmatprep.subr.bf16.mxu0 0
        %2085 = vmatpush1.bf16.msra.mxu0 0
        %2086 = vmatprep.subr.bf16.mxu0 0
        %2087 = vmatpush1.bf16.msra.mxu0 0
        %2088 = vmatprep.subr.bf16.mxu0 0
        %2089 = vmatpush1.bf16.msra.mxu0 0
        %2090 = vmatprep.mubr.bf16.mxu0 0
        %2091 = vmatmul.mubr.bf16.gmra.mrb[0].mxu0 %v2015
        %v2092 = vpop.f32.mrb[0].mxu0
        %v2093 = vadd.f32 0.0, %v2092
        %v2094 = vpop.f32.mrb[0].mxu0
        %v2095 = vpop.f32.mrb[0].mxu0
        %v2096 = vpop.f32.mrb[0].mxu0
        %2097 = vdwg.mxu0
        %v2098 = vpack.c.bf16 %v2093, %v2093
        %v2099 = vld [vmem:[%s2] sm:$0x3]
        %v2100 = vld [vmem:[%s560] sm:$0x3]
        %v2102 = vsel %vm562, %v2100, 0
        %v2105 = vsel %vm566, %v2098, 0
        %2107 = vmatprep.subr.bf16.mxu0 0
        %2108 = vmatpush1.bf16.msra.mxu0 %v2105
        %2109 = vmatprep.subr.bf16.mxu0 0
        %2110 = vmatpush1.bf16.msra.mxu0 0
        %2111 = vmatprep.subr.bf16.mxu0 0
        %2112 = vmatpush1.bf16.msra.mxu0 0
        %2113 = vmatprep.subr.bf16.mxu0 0
        %2114 = vmatpush1.bf16.msra.mxu0 0
        %2115 = vmatprep.subr.bf16.mxu0 0
        %2116 = vmatpush1.bf16.msra.mxu0 0
        %2117 = vmatprep.subr.bf16.mxu0 0
        %2118 = vmatpush1.bf16.msra.mxu0 0
        %2119 = vmatprep.subr.bf16.mxu0 0
        %2120 = vmatpush1.bf16.msra.mxu0 0
        %2121 = vmatprep.subr.bf16.mxu0 0
        %2122 = vmatpush1.bf16.msra.mxu0 0
        %2123 = vmatprep.subr.bf16.mxu0 0
        %2124 = vmatpush1.bf16.msra.mxu0 0
        %2125 = vmatprep.subr.bf16.mxu0 0
        %2126 = vmatpush1.bf16.msra.mxu0 0
        %2127 = vmatprep.subr.bf16.mxu0 0
        %2128 = vmatpush1.bf16.msra.mxu0 0
        %2129 = vmatprep.subr.bf16.mxu0 0
        %2130 = vmatpush1.bf16.msra.mxu0 0
        %2131 = vmatprep.subr.bf16.mxu0 0
        %2132 = vmatpush1.bf16.msra.mxu0 0
        %2133 = vmatprep.subr.bf16.mxu0 0
        %2134 = vmatpush1.bf16.msra.mxu0 0
        %2135 = vmatprep.subr.bf16.mxu0 0
        %2136 = vmatpush1.bf16.msra.mxu0 0
        %2137 = vmatprep.subr.bf16.mxu0 0
        %2138 = vmatpush1.bf16.msra.mxu0 0
        %2139 = vmatprep.mubr.bf16.mxu0 0
        %2140 = vmatmul.mubr.bf16.gmra.mrb[0].mxu0 %v2102
        %v2141 = vpop.f32.mrb[0].mxu0
        %v2142 = vadd.f32 0.0, %v2141
        %v2143 = vpop.f32.mrb[0].mxu0
        %v2144 = vpop.f32.mrb[0].mxu0
        %v2145 = vpop.f32.mrb[0].mxu0
        %2146 = vdwg.mxu0
        %v2148 = vsel %vm562, %v2099, 0
        %v2151 = vsel %vm566, %v2057, 0
        %2153 = vmatprep.subr.bf16.mxu0 0
        %2154 = vmatpush1.bf16.msra.mxu0 %v2151
        %2155 = vmatprep.subr.bf16.mxu0 0
        %2156 = vmatpush1.bf16.msra.mxu0 0
        %2157 = vmatprep.subr.bf16.mxu0 0
        %2158 = vmatpush1.bf16.msra.mxu0 0
        %2159 = vmatprep.subr.bf16.mxu0 0
        %2160 = vmatpush1.bf16.msra.mxu0 0
        %2161 = vmatprep.subr.bf16.mxu0 0
        %2162 = vmatpush1.bf16.msra.mxu0 0
        %2163 = vmatprep.subr.bf16.mxu0 0
        %2164 = vmatpush1.bf16.msra.mxu0 0
        %2165 = vmatprep.subr.bf16.mxu0 0
        %2166 = vmatpush1.bf16.msra.mxu0 0
        %2167 = vmatprep.subr.bf16.mxu0 0
        %2168 = vmatpush1.bf16.msra.mxu0 0
        %2169 = vmatprep.subr.bf16.mxu0 0
        %2170 = vmatpush1.bf16.msra.mxu0 0
        %2171 = vmatprep.subr.bf16.mxu0 0
        %2172 = vmatpush1.bf16.msra.mxu0 0
        %2173 = vmatprep.subr.bf16.mxu0 0
        %2174 = vmatpush1.bf16.msra.mxu0 0
        %2175 = vmatprep.subr.bf16.mxu0 0
        %2176 = vmatpush1.bf16.msra.mxu0 0
        %2177 = vmatprep.subr.bf16.mxu0 0
        %2178 = vmatpush1.bf16.msra.mxu0 0
        %2179 = vmatprep.subr.bf16.mxu0 0
        %2180 = vmatpush1.bf16.msra.mxu0 0
        %2181 = vmatprep.subr.bf16.mxu0 0
        %2182 = vmatpush1.bf16.msra.mxu0 0
        %2183 = vmatprep.subr.bf16.mxu0 0
        %2184 = vmatpush1.bf16.msra.mxu0 0
        %2185 = vmatprep.mubr.bf16.mxu0 0
        %2186 = vmatmul.mubr.bf16.gmra.mrb[0].mxu0 %v2148
        %v2187 = vpop.f32.mrb[0].mxu0
        %v2188 = vadd.f32 %v2142, %v2187
        %v2189 = vpop.f32.mrb[0].mxu0
        %v2190 = vpop.f32.mrb[0].mxu0
        %v2191 = vpop.f32.mrb[0].mxu0
        %2192 = vdwg.mxu0
        %v2193 = vadd.f32 %v2188, %v659
        %v2196 = vunpack.c.l.s4 1966171168
        %v2197 = vunpack.c.0.s8 %v2196
        %v2198 = vlaneseq
        %v2199 = vshrl.u32 %v2198, 7
        %v2200 = vsub.s32 %v2197, %v2199
        %v2201 = vrot.slane %v2193, %v2200
        %v2202 = vcombine.high %v2201, %v2201
        %v2204 = vunpack.c.l.s4 1966171168
        %v2205 = vunpack.c.0.s8 %v2204
        %v2206 = vlaneseq
        %v2207 = vshrl.u32 %v2206, 7
        %v2208 = vsub.s32 %v2205, %v2207
        %v2209 = vrot.slane %v2201, %v2208
        %v2211 = vunpack.c.l.s4 1966171168
        %v2212 = vunpack.c.0.s8 %v2211
        %v2213 = vlaneseq
        %v2214 = vshrl.u32 %v2213, 7
        %v2215 = vsub.s32 %v2212, %v2214
        %v2216 = vrot.slane %v2202, %v2215
        %v2217 = vcombine.high %v2209, %v2209
        %v2218 = vcombine.high %v2216, %v2216
        %2223 = vst.msk [vmem:[%s691 + $0x8] sm:$0x1] %vm692, %v2209
        %2224 = vst.msk [vmem:[%s691 + $0x18] sm:$0x1] %vm692, %v2216
        %2225 = vst.msk [vmem:[%s691 + $0x28] sm:$0x1] %vm692, %v2217
        %2226 = vst.msk [vmem:[%s691 + $0x38] sm:$0x1] %vm692, %v2218
        %v2227 = vld [vmem:[%s697] sm:$0x3]
        %v2228 = vld [vmem:[%s699] sm:$0x3]
        %v2230 = vsel %vm562, %v2228, 0
        %2232 = vmatprep.subr.bf16.mxu0 0
        %2233 = vmatpush1.bf16.msra.mxu0 %v2105
        %2234 = vmatprep.subr.bf16.mxu0 0
        %2235 = vmatpush1.bf16.msra.mxu0 0
        %2236 = vmatprep.subr.bf16.mxu0 0
        %2237 = vmatpush1.bf16.msra.mxu0 0
        %2238 = vmatprep.subr.bf16.mxu0 0
        %2239 = vmatpush1.bf16.msra.mxu0 0
        %2240 = vmatprep.subr.bf16.mxu0 0
        %2241 = vmatpush1.bf16.msra.mxu0 0
        %2242 = vmatprep.subr.bf16.mxu0 0
        %2243 = vmatpush1.bf16.msra.mxu0 0
        %2244 = vmatprep.subr.bf16.mxu0 0
        %2245 = vmatpush1.bf16.msra.mxu0 0
        %2246 = vmatprep.subr.bf16.mxu0 0
        %2247 = vmatpush1.bf16.msra.mxu0 0
        %2248 = vmatprep.subr.bf16.mxu0 0
        %2249 = vmatpush1.bf16.msra.mxu0 0
        %2250 = vmatprep.subr.bf16.mxu0 0
        %2251 = vmatpush1.bf16.msra.mxu0 0
        %2252 = vmatprep.subr.bf16.mxu0 0
        %2253 = vmatpush1.bf16.msra.mxu0 0
        %2254 = vmatprep.subr.bf16.mxu0 0
        %2255 = vmatpush1.bf16.msra.mxu0 0
        %2256 = vmatprep.subr.bf16.mxu0 0
        %2257 = vmatpush1.bf16.msra.mxu0 0
        %2258 = vmatprep.subr.bf16.mxu0 0
        %2259 = vmatpush1.bf16.msra.mxu0 0
        %2260 = vmatprep.subr.bf16.mxu0 0
        %2261 = vmatpush1.bf16.msra.mxu0 0
        %2262 = vmatprep.subr.bf16.mxu0 0
        %2263 = vmatpush1.bf16.msra.mxu0 0
        %2264 = vmatprep.mubr.bf16.mxu0 0
        %2265 = vmatmul.mubr.bf16.gmra.mrb[0].mxu0 %v2230
        %v2266 = vpop.f32.mrb[0].mxu0
        %v2267 = vadd.f32 0.0, %v2266
        %v2268 = vpop.f32.mrb[0].mxu0
        %v2269 = vpop.f32.mrb[0].mxu0
        %v2270 = vpop.f32.mrb[0].mxu0
        %2271 = vdwg.mxu0
        %v2273 = vsel %vm562, %v2227, 0
        %2275 = vmatprep.subr.bf16.mxu0 0
        %2276 = vmatpush1.bf16.msra.mxu0 %v2151
        %2277 = vmatprep.subr.bf16.mxu0 0
        %2278 = vmatpush1.bf16.msra.mxu0 0
        %2279 = vmatprep.subr.bf16.mxu0 0
        %2280 = vmatpush1.bf16.msra.mxu0 0
        %2281 = vmatprep.subr.bf16.mxu0 0
        %2282 = vmatpush1.bf16.msra.mxu0 0
        %2283 = vmatprep.subr.bf16.mxu0 0
        %2284 = vmatpush1.bf16.msra.mxu0 0
        %2285 = vmatprep.subr.bf16.mxu0 0
        %2286 = vmatpush1.bf16.msra.mxu0 0
        %2287 = vmatprep.subr.bf16.mxu0 0
        %2288 = vmatpush1.bf16.msra.mxu0 0
        %2289 = vmatprep.subr.bf16.mxu0 0
        %2290 = vmatpush1.bf16.msra.mxu0 0
        %2291 = vmatprep.subr.bf16.mxu0 0
        %2292 = vmatpush1.bf16.msra.mxu0 0
        %2293 = vmatprep.subr.bf16.mxu0 0
        %2294 = vmatpush1.bf16.msra.mxu0 0
        %2295 = vmatprep.subr.bf16.mxu0 0
        %2296 = vmatpush1.bf16.msra.mxu0 0
        %2297 = vmatprep.subr.bf16.mxu0 0
        %2298 = vmatpush1.bf16.msra.mxu0 0
        %2299 = vmatprep.subr.bf16.mxu0 0
        %2300 = vmatpush1.bf16.msra.mxu0 0
        %2301 = vmatprep.subr.bf16.mxu0 0
        %2302 = vmatpush1.bf16.msra.mxu0 0
        %2303 = vmatprep.subr.bf16.mxu0 0
        %2304 = vmatpush1.bf16.msra.mxu0 0
        %2305 = vmatprep.subr.bf16.mxu0 0
        %2306 = vmatpush1.bf16.msra.mxu0 0
        %2307 = vmatprep.mubr.bf16.mxu0 0
        %2308 = vmatmul.mubr.bf16.gmra.mrb[0].mxu0 %v2273
        %v2309 = vpop.f32.mrb[0].mxu0
        %v2310 = vadd.f32 %v2267, %v2309
        %v2311 = vpop.f32.mrb[0].mxu0
        %v2312 = vpop.f32.mrb[0].mxu0
        %v2313 = vpop.f32.mrb[0].mxu0
        %2314 = vdwg.mxu0
        %v2315 = vadd.f32 %v2310, %v659
        %v2318 = vunpack.c.l.s4 1966171168
        %v2319 = vunpack.c.0.s8 %v2318
        %v2320 = vlaneseq
        %v2321 = vshrl.u32 %v2320, 7
        %v2322 = vsub.s32 %v2319, %v2321
        %v2323 = vrot.slane %v2315, %v2322
        %v2324 = vcombine.high %v2323, %v2323
        %v2326 = vunpack.c.l.s4 1966171168
        %v2327 = vunpack.c.0.s8 %v2326
        %v2328 = vlaneseq
        %v2329 = vshrl.u32 %v2328, 7
        %v2330 = vsub.s32 %v2327, %v2329
        %v2331 = vrot.slane %v2323, %v2330
        %v2333 = vunpack.c.l.s4 1966171168
        %v2334 = vunpack.c.0.s8 %v2333
        %v2335 = vlaneseq
        %v2336 = vshrl.u32 %v2335, 7
        %v2337 = vsub.s32 %v2334, %v2336
        %v2338 = vrot.slane %v2324, %v2337
        %v2339 = vcombine.high %v2331, %v2331
        %v2340 = vcombine.high %v2338, %v2338
        %2345 = vst.msk [vmem:[%s691 + $0x9] sm:$0x1] %vm692, %v2331
        %2346 = vst.msk [vmem:[%s691 + $0x19] sm:$0x1] %vm692, %v2338
        %2347 = vst.msk [vmem:[%s691 + $0x29] sm:$0x1] %vm692, %v2339
        %2348 = vst.msk [vmem:[%s691 + $0x39] sm:$0x1] %vm692, %v2340
        %v2349 = vld [vmem:[%s288 + $0x5] sm:$0x1]
        %v2350 = vld [vmem:[%s288 + $0xd] sm:$0x1]
        %v2351 = vld [vmem:[%s288 + $0x15] sm:$0x1]
        %v2352 = vld [vmem:[%s288 + $0x1d] sm:$0x1]
        %v2353 = vld [vmem:[%s288 + $0x25] sm:$0x1]
        %v2354 = vld [vmem:[%s288 + $0x2d] sm:$0x1]
        %v2355 = vld [vmem:[%s288 + $0x35] sm:$0x1]
        %v2356 = vld [vmem:[%s288 + $0x3d] sm:$0x1]
        %v2357 = vpack.c.bf16 %v2349, %v2349
        %v2358 = vpack.c.bf16 %v2350, %v2350
        %v2359 = vpack.c.bf16 %v2351, %v2351
        %v2360 = vpack.c.bf16 %v2352, %v2352
        %v2361 = vpack.c.bf16 %v2353, %v2353
        %v2362 = vpack.c.bf16 %v2354, %v2354
        %v2363 = vpack.c.bf16 %v2355, %v2355
        %v2364 = vpack.c.bf16 %v2356, %v2356
        %v2373 = vunpack.c.l.b16 %v2357
        %v2374 = vunpack.c.l.b16 %v2358
        %v2375 = vunpack.c.l.b16 %v2359
        %v2376 = vunpack.c.l.b16 %v2360
        %v2377 = vunpack.c.l.b16 %v2361
        %v2378 = vunpack.c.l.b16 %v2362
        %v2379 = vunpack.c.l.b16 %v2363
        %v2380 = vunpack.c.l.b16 %v2364
        %v2381 = vrot.slane %v2374, 7
        %v2382 = vsel %vm440, %v2381, %v2373
        %v2383 = vrot.slane %v2375, 6
        %v2384 = vsel %vm443, %v2383, %v2382
        %v2385 = vrot.slane %v2376, 5
        %v2386 = vsel %vm446, %v2385, %v2384
        %v2387 = vrot.slane %v2377, 4
        %v2388 = vsel %vm449, %v2387, %v2386
        %v2389 = vrot.slane %v2378, 3
        %v2390 = vsel %vm452, %v2389, %v2388
        %v2391 = vrot.slane %v2379, 2
        %v2392 = vsel %vm455, %v2391, %v2390
        %v2393 = vrot.slane %v2380, 1
        %v2394 = vsel %vm458, %v2393, %v2392
        %v2395 = vpack.c.b16 %v2394, %v2394
        %v2397 = vsel %vm467, %v2395, 0
        %2399 = vmatprep.subr.bf16.mxu0 0
        %2400 = vmatpush1.bf16.msra.mxu0 %v465
        %2401 = vmatprep.subr.bf16.mxu0 0
        %2402 = vmatpush1.bf16.msra.mxu0 0
        %2403 = vmatprep.subr.bf16.mxu0 0
        %2404 = vmatpush1.bf16.msra.mxu0 0
        %2405 = vmatprep.subr.bf16.mxu0 0
        %2406 = vmatpush1.bf16.msra.mxu0 0
        %2407 = vmatprep.subr.bf16.mxu0 0
        %2408 = vmatpush1.bf16.msra.mxu0 0
        %2409 = vmatprep.subr.bf16.mxu0 0
        %2410 = vmatpush1.bf16.msra.mxu0 0
        %2411 = vmatprep.subr.bf16.mxu0 0
        %2412 = vmatpush1.bf16.msra.mxu0 0
        %2413 = vmatprep.subr.bf16.mxu0 0
        %2414 = vmatpush1.bf16.msra.mxu0 0
        %2415 = vmatprep.subr.bf16.mxu0 0
        %2416 = vmatpush1.bf16.msra.mxu0 0
        %2417 = vmatprep.subr.bf16.mxu0 0
        %2418 = vmatpush1.bf16.msra.mxu0 0
        %2419 = vmatprep.subr.bf16.mxu0 0
        %2420 = vmatpush1.bf16.msra.mxu0 0
        %2421 = vmatprep.subr.bf16.mxu0 0
        %2422 = vmatpush1.bf16.msra.mxu0 0
        %2423 = vmatprep.subr.bf16.mxu0 0
        %2424 = vmatpush1.bf16.msra.mxu0 0
        %2425 = vmatprep.subr.bf16.mxu0 0
        %2426 = vmatpush1.bf16.msra.mxu0 0
        %2427 = vmatprep.subr.bf16.mxu0 0
        %2428 = vmatpush1.bf16.msra.mxu0 0
        %2429 = vmatprep.subr.bf16.mxu0 0
        %2430 = vmatpush1.bf16.msra.mxu0 0
        %2431 = vmatprep.mubr.bf16.mxu0 0
        %2432 = vmatmul.mubr.bf16.gmra.mrb[0].mxu0 %v2397
        %v2433 = vpop.f32.mrb[0].mxu0
        %v2434 = vadd.f32 0.0, %v2433
        %v2435 = vpop.f32.mrb[0].mxu0
        %v2436 = vpop.f32.mrb[0].mxu0
        %v2437 = vpop.f32.mrb[0].mxu0
        %2438 = vdwg.mxu0
        %v2439 = vpack.c.bf16 %v2434, %v2434
        %2440 = vmatprep.subr.bf16.mxu0 0
        %2441 = vmatpush1.bf16.msra.mxu0 %v516
        %2442 = vmatprep.subr.bf16.mxu0 0
        %2443 = vmatpush1.bf16.msra.mxu0 0
        %2444 = vmatprep.subr.bf16.mxu0 0
        %2445 = vmatpush1.bf16.msra.mxu0 0
        %2446 = vmatprep.subr.bf16.mxu0 0
        %2447 = vmatpush1.bf16.msra.mxu0 0
        %2448 = vmatprep.subr.bf16.mxu0 0
        %2449 = vmatpush1.bf16.msra.mxu0 0
        %2450 = vmatprep.subr.bf16.mxu0 0
        %2451 = vmatpush1.bf16.msra.mxu0 0
        %2452 = vmatprep.subr.bf16.mxu0 0
        %2453 = vmatpush1.bf16.msra.mxu0 0
        %2454 = vmatprep.subr.bf16.mxu0 0
        %2455 = vmatpush1.bf16.msra.mxu0 0
        %2456 = vmatprep.subr.bf16.mxu0 0
        %2457 = vmatpush1.bf16.msra.mxu0 0
        %2458 = vmatprep.subr.bf16.mxu0 0
        %2459 = vmatpush1.bf16.msra.mxu0 0
        %2460 = vmatprep.subr.bf16.mxu0 0
        %2461 = vmatpush1.bf16.msra.mxu0 0
        %2462 = vmatprep.subr.bf16.mxu0 0
        %2463 = vmatpush1.bf16.msra.mxu0 0
        %2464 = vmatprep.subr.bf16.mxu0 0
        %2465 = vmatpush1.bf16.msra.mxu0 0
        %2466 = vmatprep.subr.bf16.mxu0 0
        %2467 = vmatpush1.bf16.msra.mxu0 0
        %2468 = vmatprep.subr.bf16.mxu0 0
        %2469 = vmatpush1.bf16.msra.mxu0 0
        %2470 = vmatprep.subr.bf16.mxu0 0
        %2471 = vmatpush1.bf16.msra.mxu0 0
        %2472 = vmatprep.mubr.bf16.mxu0 0
        %2473 = vmatmul.mubr.bf16.gmra.mrb[0].mxu0 %v2397
        %v2474 = vpop.f32.mrb[0].mxu0
        %v2475 = vadd.f32 0.0, %v2474
        %v2476 = vpop.f32.mrb[0].mxu0
        %v2477 = vpop.f32.mrb[0].mxu0
        %v2478 = vpop.f32.mrb[0].mxu0
        %2479 = vdwg.mxu0
        %v2480 = vpack.c.bf16 %v2475, %v2475
        %v2481 = vld [vmem:[%s2] sm:$0x3]
        %v2482 = vld [vmem:[%s560] sm:$0x3]
        %v2484 = vsel %vm562, %v2482, 0
        %v2487 = vsel %vm566, %v2480, 0
        %2489 = vmatprep.subr.bf16.mxu0 0
        %2490 = vmatpush1.bf16.msra.mxu0 %v2487
        %2491 = vmatprep.subr.bf16.mxu0 0
        %2492 = vmatpush1.bf16.msra.mxu0 0
        %2493 = vmatprep.subr.bf16.mxu0 0
        %2494 = vmatpush1.bf16.msra.mxu0 0
        %2495 = vmatprep.subr.bf16.mxu0 0
        %2496 = vmatpush1.bf16.msra.mxu0 0
        %2497 = vmatprep.subr.bf16.mxu0 0
        %2498 = vmatpush1.bf16.msra.mxu0 0
        %2499 = vmatprep.subr.bf16.mxu0 0
        %2500 = vmatpush1.bf16.msra.mxu0 0
        %2501 = vmatprep.subr.bf16.mxu0 0
        %2502 = vmatpush1.bf16.msra.mxu0 0
        %2503 = vmatprep.subr.bf16.mxu0 0
        %2504 = vmatpush1.bf16.msra.mxu0 0
        %2505 = vmatprep.subr.bf16.mxu0 0
        %2506 = vmatpush1.bf16.msra.mxu0 0
        %2507 = vmatprep.subr.bf16.mxu0 0
        %2508 = vmatpush1.bf16.msra.mxu0 0
        %2509 = vmatprep.subr.bf16.mxu0 0
        %2510 = vmatpush1.bf16.msra.mxu0 0
        %2511 = vmatprep.subr.bf16.mxu0 0
        %2512 = vmatpush1.bf16.msra.mxu0 0
        %2513 = vmatprep.subr.bf16.mxu0 0
        %2514 = vmatpush1.bf16.msra.mxu0 0
        %2515 = vmatprep.subr.bf16.mxu0 0
        %2516 = vmatpush1.bf16.msra.mxu0 0
        %2517 = vmatprep.subr.bf16.mxu0 0
        %2518 = vmatpush1.bf16.msra.mxu0 0
        %2519 = vmatprep.subr.bf16.mxu0 0
        %2520 = vmatpush1.bf16.msra.mxu0 0
        %2521 = vmatprep.mubr.bf16.mxu0 0
        %2522 = vmatmul.mubr.bf16.gmra.mrb[0].mxu0 %v2484
        %v2523 = vpop.f32.mrb[0].mxu0
        %v2524 = vadd.f32 0.0, %v2523
        %v2525 = vpop.f32.mrb[0].mxu0
        %v2526 = vpop.f32.mrb[0].mxu0
        %v2527 = vpop.f32.mrb[0].mxu0
        %2528 = vdwg.mxu0
        %v2530 = vsel %vm562, %v2481, 0
        %v2533 = vsel %vm566, %v2439, 0
        %2535 = vmatprep.subr.bf16.mxu0 0
        %2536 = vmatpush1.bf16.msra.mxu0 %v2533
        %2537 = vmatprep.subr.bf16.mxu0 0
        %2538 = vmatpush1.bf16.msra.mxu0 0
        %2539 = vmatprep.subr.bf16.mxu0 0
        %2540 = vmatpush1.bf16.msra.mxu0 0
        %2541 = vmatprep.subr.bf16.mxu0 0
        %2542 = vmatpush1.bf16.msra.mxu0 0
        %2543 = vmatprep.subr.bf16.mxu0 0
        %2544 = vmatpush1.bf16.msra.mxu0 0
        %2545 = vmatprep.subr.bf16.mxu0 0
        %2546 = vmatpush1.bf16.msra.mxu0 0
        %2547 = vmatprep.subr.bf16.mxu0 0
        %2548 = vmatpush1.bf16.msra.mxu0 0
        %2549 = vmatprep.subr.bf16.mxu0 0
        %2550 = vmatpush1.bf16.msra.mxu0 0
        %2551 = vmatprep.subr.bf16.mxu0 0
        %2552 = vmatpush1.bf16.msra.mxu0 0
        %2553 = vmatprep.subr.bf16.mxu0 0
        %2554 = vmatpush1.bf16.msra.mxu0 0
        %2555 = vmatprep.subr.bf16.mxu0 0
        %2556 = vmatpush1.bf16.msra.mxu0 0
        %2557 = vmatprep.subr.bf16.mxu0 0
        %2558 = vmatpush1.bf16.msra.mxu0 0
        %2559 = vmatprep.subr.bf16.mxu0 0
        %2560 = vmatpush1.bf16.msra.mxu0 0
        %2561 = vmatprep.subr.bf16.mxu0 0
        %2562 = vmatpush1.bf16.msra.mxu0 0
        %2563 = vmatprep.subr.bf16.mxu0 0
        %2564 = vmatpush1.bf16.msra.mxu0 0
        %2565 = vmatprep.subr.bf16.mxu0 0
        %2566 = vmatpush1.bf16.msra.mxu0 0
        %2567 = vmatprep.mubr.bf16.mxu0 0
        %2568 = vmatmul.mubr.bf16.gmra.mrb[0].mxu0 %v2530
        %v2569 = vpop.f32.mrb[0].mxu0
        %v2570 = vadd.f32 %v2524, %v2569
        %v2571 = vpop.f32.mrb[0].mxu0
        %v2572 = vpop.f32.mrb[0].mxu0
        %v2573 = vpop.f32.mrb[0].mxu0
        %2574 = vdwg.mxu0
        %v2575 = vadd.f32 %v2570, %v659
        %v2578 = vunpack.c.l.s4 1966171168
        %v2579 = vunpack.c.0.s8 %v2578
        %v2580 = vlaneseq
        %v2581 = vshrl.u32 %v2580, 7
        %v2582 = vsub.s32 %v2579, %v2581
        %v2583 = vrot.slane %v2575, %v2582
        %v2584 = vcombine.high %v2583, %v2583
        %v2586 = vunpack.c.l.s4 1966171168
        %v2587 = vunpack.c.0.s8 %v2586
        %v2588 = vlaneseq
        %v2589 = vshrl.u32 %v2588, 7
        %v2590 = vsub.s32 %v2587, %v2589
        %v2591 = vrot.slane %v2583, %v2590
        %v2593 = vunpack.c.l.s4 1966171168
        %v2594 = vunpack.c.0.s8 %v2593
        %v2595 = vlaneseq
        %v2596 = vshrl.u32 %v2595, 7
        %v2597 = vsub.s32 %v2594, %v2596
        %v2598 = vrot.slane %v2584, %v2597
        %v2599 = vcombine.high %v2591, %v2591
        %v2600 = vcombine.high %v2598, %v2598
        %2605 = vst.msk [vmem:[%s691 + $0xa] sm:$0x1] %vm692, %v2591
        %2606 = vst.msk [vmem:[%s691 + $0x1a] sm:$0x1] %vm692, %v2598
        %2607 = vst.msk [vmem:[%s691 + $0x2a] sm:$0x1] %vm692, %v2599
        %2608 = vst.msk [vmem:[%s691 + $0x3a] sm:$0x1] %vm692, %v2600
        %v2609 = vld [vmem:[%s697] sm:$0x3]
        %v2610 = vld [vmem:[%s699] sm:$0x3]
        %v2612 = vsel %vm562, %v2610, 0
        %2614 = vmatprep.subr.bf16.mxu0 0
        %2615 = vmatpush1.bf16.msra.mxu0 %v2487
        %2616 = vmatprep.subr.bf16.mxu0 0
        %2617 = vmatpush1.bf16.msra.mxu0 0
        %2618 = vmatprep.subr.bf16.mxu0 0
        %2619 = vmatpush1.bf16.msra.mxu0 0
        %2620 = vmatprep.subr.bf16.mxu0 0
        %2621 = vmatpush1.bf16.msra.mxu0 0
        %2622 = vmatprep.subr.bf16.mxu0 0
        %2623 = vmatpush1.bf16.msra.mxu0 0
        %2624 = vmatprep.subr.bf16.mxu0 0
        %2625 = vmatpush1.bf16.msra.mxu0 0
        %2626 = vmatprep.subr.bf16.mxu0 0
        %2627 = vmatpush1.bf16.msra.mxu0 0
        %2628 = vmatprep.subr.bf16.mxu0 0
        %2629 = vmatpush1.bf16.msra.mxu0 0
        %2630 = vmatprep.subr.bf16.mxu0 0
        %2631 = vmatpush1.bf16.msra.mxu0 0
        %2632 = vmatprep.subr.bf16.mxu0 0
        %2633 = vmatpush1.bf16.msra.mxu0 0
        %2634 = vmatprep.subr.bf16.mxu0 0
        %2635 = vmatpush1.bf16.msra.mxu0 0
        %2636 = vmatprep.subr.bf16.mxu0 0
        %2637 = vmatpush1.bf16.msra.mxu0 0
        %2638 = vmatprep.subr.bf16.mxu0 0
        %2639 = vmatpush1.bf16.msra.mxu0 0
        %2640 = vmatprep.subr.bf16.mxu0 0
        %2641 = vmatpush1.bf16.msra.mxu0 0
        %2642 = vmatprep.subr.bf16.mxu0 0
        %2643 = vmatpush1.bf16.msra.mxu0 0
        %2644 = vmatprep.subr.bf16.mxu0 0
        %2645 = vmatpush1.bf16.msra.mxu0 0
        %2646 = vmatprep.mubr.bf16.mxu0 0
        %2647 = vmatmul.mubr.bf16.gmra.mrb[0].mxu0 %v2612
        %v2648 = vpop.f32.mrb[0].mxu0
        %v2649 = vadd.f32 0.0, %v2648
        %v2650 = vpop.f32.mrb[0].mxu0
        %v2651 = vpop.f32.mrb[0].mxu0
        %v2652 = vpop.f32.mrb[0].mxu0
        %2653 = vdwg.mxu0
        %v2655 = vsel %vm562, %v2609, 0
        %2657 = vmatprep.subr.bf16.mxu0 0
        %2658 = vmatpush1.bf16.msra.mxu0 %v2533
        %2659 = vmatprep.subr.bf16.mxu0 0
        %2660 = vmatpush1.bf16.msra.mxu0 0
        %2661 = vmatprep.subr.bf16.mxu0 0
        %2662 = vmatpush1.bf16.msra.mxu0 0
        %2663 = vmatprep.subr.bf16.mxu0 0
        %2664 = vmatpush1.bf16.msra.mxu0 0
        %2665 = vmatprep.subr.bf16.mxu0 0
        %2666 = vmatpush1.bf16.msra.mxu0 0
        %2667 = vmatprep.subr.bf16.mxu0 0
        %2668 = vmatpush1.bf16.msra.mxu0 0
        %2669 = vmatprep.subr.bf16.mxu0 0
        %2670 = vmatpush1.bf16.msra.mxu0 0
        %2671 = vmatprep.subr.bf16.mxu0 0
        %2672 = vmatpush1.bf16.msra.mxu0 0
        %2673 = vmatprep.subr.bf16.mxu0 0
        %2674 = vmatpush1.bf16.msra.mxu0 0
        %2675 = vmatprep.subr.bf16.mxu0 0
        %2676 = vmatpush1.bf16.msra.mxu0 0
        %2677 = vmatprep.subr.bf16.mxu0 0
        %2678 = vmatpush1.bf16.msra.mxu0 0
        %2679 = vmatprep.subr.bf16.mxu0 0
        %2680 = vmatpush1.bf16.msra.mxu0 0
        %2681 = vmatprep.subr.bf16.mxu0 0
        %2682 = vmatpush1.bf16.msra.mxu0 0
        %2683 = vmatprep.subr.bf16.mxu0 0
        %2684 = vmatpush1.bf16.msra.mxu0 0
        %2685 = vmatprep.subr.bf16.mxu0 0
        %2686 = vmatpush1.bf16.msra.mxu0 0
        %2687 = vmatprep.subr.bf16.mxu0 0
        %2688 = vmatpush1.bf16.msra.mxu0 0
        %2689 = vmatprep.mubr.bf16.mxu0 0
        %2690 = vmatmul.mubr.bf16.gmra.mrb[0].mxu0 %v2655
        %v2691 = vpop.f32.mrb[0].mxu0
        %v2692 = vadd.f32 %v2649, %v2691
        %v2693 = vpop.f32.mrb[0].mxu0
        %v2694 = vpop.f32.mrb[0].mxu0
        %v2695 = vpop.f32.mrb[0].mxu0
        %2696 = vdwg.mxu0
        %v2697 = vadd.f32 %v2692, %v659
        %v2700 = vunpack.c.l.s4 1966171168
        %v2701 = vunpack.c.0.s8 %v2700
        %v2702 = vlaneseq
        %v2703 = vshrl.u32 %v2702, 7
        %v2704 = vsub.s32 %v2701, %v2703
        %v2705 = vrot.slane %v2697, %v2704
        %v2706 = vcombine.high %v2705, %v2705
        %v2708 = vunpack.c.l.s4 1966171168
        %v2709 = vunpack.c.0.s8 %v2708
        %v2710 = vlaneseq
        %v2711 = vshrl.u32 %v2710, 7
        %v2712 = vsub.s32 %v2709, %v2711
        %v2713 = vrot.slane %v2705, %v2712
        %v2715 = vunpack.c.l.s4 1966171168
        %v2716 = vunpack.c.0.s8 %v2715
        %v2717 = vlaneseq
        %v2718 = vshrl.u32 %v2717, 7
        %v2719 = vsub.s32 %v2716, %v2718
        %v2720 = vrot.slane %v2706, %v2719
        %v2721 = vcombine.high %v2713, %v2713
        %v2722 = vcombine.high %v2720, %v2720
        %2727 = vst.msk [vmem:[%s691 + $0xb] sm:$0x1] %vm692, %v2713
        %2728 = vst.msk [vmem:[%s691 + $0x1b] sm:$0x1] %vm692, %v2720
        %2729 = vst.msk [vmem:[%s691 + $0x2b] sm:$0x1] %vm692, %v2721
        %2730 = vst.msk [vmem:[%s691 + $0x3b] sm:$0x1] %vm692, %v2722
        %v2731 = vld [vmem:[%s288 + $0x6] sm:$0x1]
        %v2732 = vld [vmem:[%s288 + $0xe] sm:$0x1]
        %v2733 = vld [vmem:[%s288 + $0x16] sm:$0x1]
        %v2734 = vld [vmem:[%s288 + $0x1e] sm:$0x1]
        %v2735 = vld [vmem:[%s288 + $0x26] sm:$0x1]
        %v2736 = vld [vmem:[%s288 + $0x2e] sm:$0x1]
        %v2737 = vld [vmem:[%s288 + $0x36] sm:$0x1]
        %v2738 = vld [vmem:[%s288 + $0x3e] sm:$0x1]
        %v2739 = vpack.c.bf16 %v2731, %v2731
        %v2740 = vpack.c.bf16 %v2732, %v2732
        %v2741 = vpack.c.bf16 %v2733, %v2733
        %v2742 = vpack.c.bf16 %v2734, %v2734
        %v2743 = vpack.c.bf16 %v2735, %v2735
        %v2744 = vpack.c.bf16 %v2736, %v2736
        %v2745 = vpack.c.bf16 %v2737, %v2737
        %v2746 = vpack.c.bf16 %v2738, %v2738
        %v2755 = vunpack.c.l.b16 %v2739
        %v2756 = vunpack.c.l.b16 %v2740
        %v2757 = vunpack.c.l.b16 %v2741
        %v2758 = vunpack.c.l.b16 %v2742
        %v2759 = vunpack.c.l.b16 %v2743
        %v2760 = vunpack.c.l.b16 %v2744
        %v2761 = vunpack.c.l.b16 %v2745
        %v2762 = vunpack.c.l.b16 %v2746
        %v2763 = vrot.slane %v2756, 7
        %v2764 = vsel %vm440, %v2763, %v2755
        %v2765 = vrot.slane %v2757, 6
        %v2766 = vsel %vm443, %v2765, %v2764
        %v2767 = vrot.slane %v2758, 5
        %v2768 = vsel %vm446, %v2767, %v2766
        %v2769 = vrot.slane %v2759, 4
        %v2770 = vsel %vm449, %v2769, %v2768
        %v2771 = vrot.slane %v2760, 3
        %v2772 = vsel %vm452, %v2771, %v2770
        %v2773 = vrot.slane %v2761, 2
        %v2774 = vsel %vm455, %v2773, %v2772
        %v2775 = vrot.slane %v2762, 1
        %v2776 = vsel %vm458, %v2775, %v2774
        %v2777 = vpack.c.b16 %v2776, %v2776
        %v2779 = vsel %vm467, %v2777, 0
        %2781 = vmatprep.subr.bf16.mxu0 0
        %2782 = vmatpush1.bf16.msra.mxu0 %v465
        %2783 = vmatprep.subr.bf16.mxu0 0
        %2784 = vmatpush1.bf16.msra.mxu0 0
        %2785 = vmatprep.subr.bf16.mxu0 0
        %2786 = vmatpush1.bf16.msra.mxu0 0
        %2787 = vmatprep.subr.bf16.mxu0 0
        %2788 = vmatpush1.bf16.msra.mxu0 0
        %2789 = vmatprep.subr.bf16.mxu0 0
        %2790 = vmatpush1.bf16.msra.mxu0 0
        %2791 = vmatprep.subr.bf16.mxu0 0
        %2792 = vmatpush1.bf16.msra.mxu0 0
        %2793 = vmatprep.subr.bf16.mxu0 0
        %2794 = vmatpush1.bf16.msra.mxu0 0
        %2795 = vmatprep.subr.bf16.mxu0 0
        %2796 = vmatpush1.bf16.msra.mxu0 0
        %2797 = vmatprep.subr.bf16.mxu0 0
        %2798 = vmatpush1.bf16.msra.mxu0 0
        %2799 = vmatprep.subr.bf16.mxu0 0
        %2800 = vmatpush1.bf16.msra.mxu0 0
        %2801 = vmatprep.subr.bf16.mxu0 0
        %2802 = vmatpush1.bf16.msra.mxu0 0
        %2803 = vmatprep.subr.bf16.mxu0 0
        %2804 = vmatpush1.bf16.msra.mxu0 0
        %2805 = vmatprep.subr.bf16.mxu0 0
        %2806 = vmatpush1.bf16.msra.mxu0 0
        %2807 = vmatprep.subr.bf16.mxu0 0
        %2808 = vmatpush1.bf16.msra.mxu0 0
        %2809 = vmatprep.subr.bf16.mxu0 0
        %2810 = vmatpush1.bf16.msra.mxu0 0
        %2811 = vmatprep.subr.bf16.mxu0 0
        %2812 = vmatpush1.bf16.msra.mxu0 0
        %2813 = vmatprep.mubr.bf16.mxu0 0
        %2814 = vmatmul.mubr.bf16.gmra.mrb[0].mxu0 %v2779
        %v2815 = vpop.f32.mrb[0].mxu0
        %v2816 = vadd.f32 0.0, %v2815
        %v2817 = vpop.f32.mrb[0].mxu0
        %v2818 = vpop.f32.mrb[0].mxu0
        %v2819 = vpop.f32.mrb[0].mxu0
        %2820 = vdwg.mxu0
        %v2821 = vpack.c.bf16 %v2816, %v2816
        %2822 = vmatprep.subr.bf16.mxu0 0
        %2823 = vmatpush1.bf16.msra.mxu0 %v516
        %2824 = vmatprep.subr.bf16.mxu0 0
        %2825 = vmatpush1.bf16.msra.mxu0 0
        %2826 = vmatprep.subr.bf16.mxu0 0
        %2827 = vmatpush1.bf16.msra.mxu0 0
        %2828 = vmatprep.subr.bf16.mxu0 0
        %2829 = vmatpush1.bf16.msra.mxu0 0
        %2830 = vmatprep.subr.bf16.mxu0 0
        %2831 = vmatpush1.bf16.msra.mxu0 0
        %2832 = vmatprep.subr.bf16.mxu0 0
        %2833 = vmatpush1.bf16.msra.mxu0 0
        %2834 = vmatprep.subr.bf16.mxu0 0
        %2835 = vmatpush1.bf16.msra.mxu0 0
        %2836 = vmatprep.subr.bf16.mxu0 0
        %2837 = vmatpush1.bf16.msra.mxu0 0
        %2838 = vmatprep.subr.bf16.mxu0 0
        %2839 = vmatpush1.bf16.msra.mxu0 0
        %2840 = vmatprep.subr.bf16.mxu0 0
        %2841 = vmatpush1.bf16.msra.mxu0 0
        %2842 = vmatprep.subr.bf16.mxu0 0
        %2843 = vmatpush1.bf16.msra.mxu0 0
        %2844 = vmatprep.subr.bf16.mxu0 0
        %2845 = vmatpush1.bf16.msra.mxu0 0
        %2846 = vmatprep.subr.bf16.mxu0 0
        %2847 = vmatpush1.bf16.msra.mxu0 0
        %2848 = vmatprep.subr.bf16.mxu0 0
        %2849 = vmatpush1.bf16.msra.mxu0 0
        %2850 = vmatprep.subr.bf16.mxu0 0
        %2851 = vmatpush1.bf16.msra.mxu0 0
        %2852 = vmatprep.subr.bf16.mxu0 0
        %2853 = vmatpush1.bf16.msra.mxu0 0
        %2854 = vmatprep.mubr.bf16.mxu0 0
        %2855 = vmatmul.mubr.bf16.gmra.mrb[0].mxu0 %v2779
        %v2856 = vpop.f32.mrb[0].mxu0
        %v2857 = vadd.f32 0.0, %v2856
        %v2858 = vpop.f32.mrb[0].mxu0
        %v2859 = vpop.f32.mrb[0].mxu0
        %v2860 = vpop.f32.mrb[0].mxu0
        %2861 = vdwg.mxu0
        %v2862 = vpack.c.bf16 %v2857, %v2857
        %v2863 = vld [vmem:[%s2] sm:$0x3]
        %v2864 = vld [vmem:[%s560] sm:$0x3]
        %v2866 = vsel %vm562, %v2864, 0
        %v2869 = vsel %vm566, %v2862, 0
        %2871 = vmatprep.subr.bf16.mxu0 0
        %2872 = vmatpush1.bf16.msra.mxu0 %v2869
        %2873 = vmatprep.subr.bf16.mxu0 0
        %2874 = vmatpush1.bf16.msra.mxu0 0
        %2875 = vmatprep.subr.bf16.mxu0 0
        %2876 = vmatpush1.bf16.msra.mxu0 0
        %2877 = vmatprep.subr.bf16.mxu0 0
        %2878 = vmatpush1.bf16.msra.mxu0 0
        %2879 = vmatprep.subr.bf16.mxu0 0
        %2880 = vmatpush1.bf16.msra.mxu0 0
        %2881 = vmatprep.subr.bf16.mxu0 0
        %2882 = vmatpush1.bf16.msra.mxu0 0
        %2883 = vmatprep.subr.bf16.mxu0 0
        %2884 = vmatpush1.bf16.msra.mxu0 0
        %2885 = vmatprep.subr.bf16.mxu0 0
        %2886 = vmatpush1.bf16.msra.mxu0 0
        %2887 = vmatprep.subr.bf16.mxu0 0
        %2888 = vmatpush1.bf16.msra.mxu0 0
        %2889 = vmatprep.subr.bf16.mxu0 0
        %2890 = vmatpush1.bf16.msra.mxu0 0
        %2891 = vmatprep.subr.bf16.mxu0 0
        %2892 = vmatpush1.bf16.msra.mxu0 0
        %2893 = vmatprep.subr.bf16.mxu0 0
        %2894 = vmatpush1.bf16.msra.mxu0 0
        %2895 = vmatprep.subr.bf16.mxu0 0
        %2896 = vmatpush1.bf16.msra.mxu0 0
        %2897 = vmatprep.subr.bf16.mxu0 0
        %2898 = vmatpush1.bf16.msra.mxu0 0
        %2899 = vmatprep.subr.bf16.mxu0 0
        %2900 = vmatpush1.bf16.msra.mxu0 0
        %2901 = vmatprep.subr.bf16.mxu0 0
        %2902 = vmatpush1.bf16.msra.mxu0 0
        %2903 = vmatprep.mubr.bf16.mxu0 0
        %2904 = vmatmul.mubr.bf16.gmra.mrb[0].mxu0 %v2866
        %v2905 = vpop.f32.mrb[0].mxu0
        %v2906 = vadd.f32 0.0, %v2905
        %v2907 = vpop.f32.mrb[0].mxu0
        %v2908 = vpop.f32.mrb[0].mxu0
        %v2909 = vpop.f32.mrb[0].mxu0
        %2910 = vdwg.mxu0
        %v2912 = vsel %vm562, %v2863, 0
        %v2915 = vsel %vm566, %v2821, 0
        %2917 = vmatprep.subr.bf16.mxu0 0
        %2918 = vmatpush1.bf16.msra.mxu0 %v2915
        %2919 = vmatprep.subr.bf16.mxu0 0
        %2920 = vmatpush1.bf16.msra.mxu0 0
        %2921 = vmatprep.subr.bf16.mxu0 0
        %2922 = vmatpush1.bf16.msra.mxu0 0
        %2923 = vmatprep.subr.bf16.mxu0 0
        %2924 = vmatpush1.bf16.msra.mxu0 0
        %2925 = vmatprep.subr.bf16.mxu0 0
        %2926 = vmatpush1.bf16.msra.mxu0 0
        %2927 = vmatprep.subr.bf16.mxu0 0
        %2928 = vmatpush1.bf16.msra.mxu0 0
        %2929 = vmatprep.subr.bf16.mxu0 0
        %2930 = vmatpush1.bf16.msra.mxu0 0
        %2931 = vmatprep.subr.bf16.mxu0 0
        %2932 = vmatpush1.bf16.msra.mxu0 0
        %2933 = vmatprep.subr.bf16.mxu0 0
        %2934 = vmatpush1.bf16.msra.mxu0 0
        %2935 = vmatprep.subr.bf16.mxu0 0
        %2936 = vmatpush1.bf16.msra.mxu0 0
        %2937 = vmatprep.subr.bf16.mxu0 0
        %2938 = vmatpush1.bf16.msra.mxu0 0
        %2939 = vmatprep.subr.bf16.mxu0 0
        %2940 = vmatpush1.bf16.msra.mxu0 0
        %2941 = vmatprep.subr.bf16.mxu0 0
        %2942 = vmatpush1.bf16.msra.mxu0 0
        %2943 = vmatprep.subr.bf16.mxu0 0
        %2944 = vmatpush1.bf16.msra.mxu0 0
        %2945 = vmatprep.subr.bf16.mxu0 0
        %2946 = vmatpush1.bf16.msra.mxu0 0
        %2947 = vmatprep.subr.bf16.mxu0 0
        %2948 = vmatpush1.bf16.msra.mxu0 0
        %2949 = vmatprep.mubr.bf16.mxu0 0
        %2950 = vmatmul.mubr.bf16.gmra.mrb[0].mxu0 %v2912
        %v2951 = vpop.f32.mrb[0].mxu0
        %v2952 = vadd.f32 %v2906, %v2951
        %v2953 = vpop.f32.mrb[0].mxu0
        %v2954 = vpop.f32.mrb[0].mxu0
        %v2955 = vpop.f32.mrb[0].mxu0
        %2956 = vdwg.mxu0
        %v2957 = vadd.f32 %v2952, %v659
        %v2960 = vunpack.c.l.s4 1966171168
        %v2961 = vunpack.c.0.s8 %v2960
        %v2962 = vlaneseq
        %v2963 = vshrl.u32 %v2962, 7
        %v2964 = vsub.s32 %v2961, %v2963
        %v2965 = vrot.slane %v2957, %v2964
        %v2966 = vcombine.high %v2965, %v2965
        %v2968 = vunpack.c.l.s4 1966171168
        %v2969 = vunpack.c.0.s8 %v2968
        %v2970 = vlaneseq
        %v2971 = vshrl.u32 %v2970, 7
        %v2972 = vsub.s32 %v2969, %v2971
        %v2973 = vrot.slane %v2965, %v2972
        %v2975 = vunpack.c.l.s4 1966171168
        %v2976 = vunpack.c.0.s8 %v2975
        %v2977 = vlaneseq
        %v2978 = vshrl.u32 %v2977, 7
        %v2979 = vsub.s32 %v2976, %v2978
        %v2980 = vrot.slane %v2966, %v2979
        %v2981 = vcombine.high %v2973, %v2973
        %v2982 = vcombine.high %v2980, %v2980
        %2987 = vst.msk [vmem:[%s691 + $0xc] sm:$0x1] %vm692, %v2973
        %2988 = vst.msk [vmem:[%s691 + $0x1c] sm:$0x1] %vm692, %v2980
        %2989 = vst.msk [vmem:[%s691 + $0x2c] sm:$0x1] %vm692, %v2981
        %2990 = vst.msk [vmem:[%s691 + $0x3c] sm:$0x1] %vm692, %v2982
        %v2991 = vld [vmem:[%s697] sm:$0x3]
        %v2992 = vld [vmem:[%s699] sm:$0x3]
        %v2994 = vsel %vm562, %v2992, 0
        %2996 = vmatprep.subr.bf16.mxu0 0
        %2997 = vmatpush1.bf16.msra.mxu0 %v2869
        %2998 = vmatprep.subr.bf16.mxu0 0
        %2999 = vmatpush1.bf16.msra.mxu0 0
        %3000 = vmatprep.subr.bf16.mxu0 0
        %3001 = vmatpush1.bf16.msra.mxu0 0
        %3002 = vmatprep.subr.bf16.mxu0 0
        %3003 = vmatpush1.bf16.msra.mxu0 0
        %3004 = vmatprep.subr.bf16.mxu0 0
        %3005 = vmatpush1.bf16.msra.mxu0 0
        %3006 = vmatprep.subr.bf16.mxu0 0
        %3007 = vmatpush1.bf16.msra.mxu0 0
        %3008 = vmatprep.subr.bf16.mxu0 0
        %3009 = vmatpush1.bf16.msra.mxu0 0
        %3010 = vmatprep.subr.bf16.mxu0 0
        %3011 = vmatpush1.bf16.msra.mxu0 0
        %3012 = vmatprep.subr.bf16.mxu0 0
        %3013 = vmatpush1.bf16.msra.mxu0 0
        %3014 = vmatprep.subr.bf16.mxu0 0
        %3015 = vmatpush1.bf16.msra.mxu0 0
        %3016 = vmatprep.subr.bf16.mxu0 0
        %3017 = vmatpush1.bf16.msra.mxu0 0
        %3018 = vmatprep.subr.bf16.mxu0 0
        %3019 = vmatpush1.bf16.msra.mxu0 0
        %3020 = vmatprep.subr.bf16.mxu0 0
        %3021 = vmatpush1.bf16.msra.mxu0 0
        %3022 = vmatprep.subr.bf16.mxu0 0
        %3023 = vmatpush1.bf16.msra.mxu0 0
        %3024 = vmatprep.subr.bf16.mxu0 0
        %3025 = vmatpush1.bf16.msra.mxu0 0
        %3026 = vmatprep.subr.bf16.mxu0 0
        %3027 = vmatpush1.bf16.msra.mxu0 0
        %3028 = vmatprep.mubr.bf16.mxu0 0
        %3029 = vmatmul.mubr.bf16.gmra.mrb[0].mxu0 %v2994
        %v3030 = vpop.f32.mrb[0].mxu0
        %v3031 = vadd.f32 0.0, %v3030
        %v3032 = vpop.f32.mrb[0].mxu0
        %v3033 = vpop.f32.mrb[0].mxu0
        %v3034 = vpop.f32.mrb[0].mxu0
        %3035 = vdwg.mxu0
        %v3037 = vsel %vm562, %v2991, 0
        %3039 = vmatprep.subr.bf16.mxu0 0
        %3040 = vmatpush1.bf16.msra.mxu0 %v2915
        %3041 = vmatprep.subr.bf16.mxu0 0
        %3042 = vmatpush1.bf16.msra.mxu0 0
        %3043 = vmatprep.subr.bf16.mxu0 0
        %3044 = vmatpush1.bf16.msra.mxu0 0
        %3045 = vmatprep.subr.bf16.mxu0 0
        %3046 = vmatpush1.bf16.msra.mxu0 0
        %3047 = vmatprep.subr.bf16.mxu0 0
        %3048 = vmatpush1.bf16.msra.mxu0 0
        %3049 = vmatprep.subr.bf16.mxu0 0
        %3050 = vmatpush1.bf16.msra.mxu0 0
        %3051 = vmatprep.subr.bf16.mxu0 0
        %3052 = vmatpush1.bf16.msra.mxu0 0
        %3053 = vmatprep.subr.bf16.mxu0 0
        %3054 = vmatpush1.bf16.msra.mxu0 0
        %3055 = vmatprep.subr.bf16.mxu0 0
        %3056 = vmatpush1.bf16.msra.mxu0 0
        %3057 = vmatprep.subr.bf16.mxu0 0
        %3058 = vmatpush1.bf16.msra.mxu0 0
        %3059 = vmatprep.subr.bf16.mxu0 0
        %3060 = vmatpush1.bf16.msra.mxu0 0
        %3061 = vmatprep.subr.bf16.mxu0 0
        %3062 = vmatpush1.bf16.msra.mxu0 0
        %3063 = vmatprep.subr.bf16.mxu0 0
        %3064 = vmatpush1.bf16.msra.mxu0 0
        %3065 = vmatprep.subr.bf16.mxu0 0
        %3066 = vmatpush1.bf16.msra.mxu0 0
        %3067 = vmatprep.subr.bf16.mxu0 0
        %3068 = vmatpush1.bf16.msra.mxu0 0
        %3069 = vmatprep.subr.bf16.mxu0 0
        %3070 = vmatpush1.bf16.msra.mxu0 0
        %3071 = vmatprep.mubr.bf16.mxu0 0
        %3072 = vmatmul.mubr.bf16.gmra.mrb[0].mxu0 %v3037
        %v3073 = vpop.f32.mrb[0].mxu0
        %v3074 = vadd.f32 %v3031, %v3073
        %v3075 = vpop.f32.mrb[0].mxu0
        %v3076 = vpop.f32.mrb[0].mxu0
        %v3077 = vpop.f32.mrb[0].mxu0
        %3078 = vdwg.mxu0
        %v3079 = vadd.f32 %v3074, %v659
        %v3082 = vunpack.c.l.s4 1966171168
        %v3083 = vunpack.c.0.s8 %v3082
        %v3084 = vlaneseq
        %v3085 = vshrl.u32 %v3084, 7
        %v3086 = vsub.s32 %v3083, %v3085
        %v3087 = vrot.slane %v3079, %v3086
        %v3088 = vcombine.high %v3087, %v3087
        %v3090 = vunpack.c.l.s4 1966171168
        %v3091 = vunpack.c.0.s8 %v3090
        %v3092 = vlaneseq
        %v3093 = vshrl.u32 %v3092, 7
        %v3094 = vsub.s32 %v3091, %v3093
        %v3095 = vrot.slane %v3087, %v3094
        %v3097 = vunpack.c.l.s4 1966171168
        %v3098 = vunpack.c.0.s8 %v3097
        %v3099 = vlaneseq
        %v3100 = vshrl.u32 %v3099, 7
        %v3101 = vsub.s32 %v3098, %v3100
        %v3102 = vrot.slane %v3088, %v3101
        %v3103 = vcombine.high %v3095, %v3095
        %v3104 = vcombine.high %v3102, %v3102
        %3109 = vst.msk [vmem:[%s691 + $0xd] sm:$0x1] %vm692, %v3095
        %3110 = vst.msk [vmem:[%s691 + $0x1d] sm:$0x1] %vm692, %v3102
        %3111 = vst.msk [vmem:[%s691 + $0x2d] sm:$0x1] %vm692, %v3103
        %3112 = vst.msk [vmem:[%s691 + $0x3d] sm:$0x1] %vm692, %v3104
        %v3113 = vld [vmem:[%s288 + $0x7] sm:$0x1]
        %v3114 = vld [vmem:[%s288 + $0xf] sm:$0x1]
        %v3115 = vld [vmem:[%s288 + $0x17] sm:$0x1]
        %v3116 = vld [vmem:[%s288 + $0x1f] sm:$0x1]
        %v3117 = vld [vmem:[%s288 + $0x27] sm:$0x1]
        %v3118 = vld [vmem:[%s288 + $0x2f] sm:$0x1]
        %v3119 = vld [vmem:[%s288 + $0x37] sm:$0x1]
        %v3120 = vld [vmem:[%s288 + $0x3f] sm:$0x1]
        %v3121 = vpack.c.bf16 %v3113, %v3113
        %v3122 = vpack.c.bf16 %v3114, %v3114
        %v3123 = vpack.c.bf16 %v3115, %v3115
        %v3124 = vpack.c.bf16 %v3116, %v3116
        %v3125 = vpack.c.bf16 %v3117, %v3117
        %v3126 = vpack.c.bf16 %v3118, %v3118
        %v3127 = vpack.c.bf16 %v3119, %v3119
        %v3128 = vpack.c.bf16 %v3120, %v3120
        %v3137 = vunpack.c.l.b16 %v3121
        %v3138 = vunpack.c.l.b16 %v3122
        %v3139 = vunpack.c.l.b16 %v3123
        %v3140 = vunpack.c.l.b16 %v3124
        %v3141 = vunpack.c.l.b16 %v3125
        %v3142 = vunpack.c.l.b16 %v3126
        %v3143 = vunpack.c.l.b16 %v3127
        %v3144 = vunpack.c.l.b16 %v3128
        %v3145 = vrot.slane %v3138, 7
        %v3146 = vsel %vm440, %v3145, %v3137
        %v3147 = vrot.slane %v3139, 6
        %v3148 = vsel %vm443, %v3147, %v3146
        %v3149 = vrot.slane %v3140, 5
        %v3150 = vsel %vm446, %v3149, %v3148
        %v3151 = vrot.slane %v3141, 4
        %v3152 = vsel %vm449, %v3151, %v3150
        %v3153 = vrot.slane %v3142, 3
        %v3154 = vsel %vm452, %v3153, %v3152
        %v3155 = vrot.slane %v3143, 2
        %v3156 = vsel %vm455, %v3155, %v3154
        %v3157 = vrot.slane %v3144, 1
        %v3158 = vsel %vm458, %v3157, %v3156
        %v3159 = vpack.c.b16 %v3158, %v3158
        %v3161 = vsel %vm467, %v3159, 0
        %3163 = vmatprep.subr.bf16.mxu0 0
        %3164 = vmatpush1.bf16.msra.mxu0 %v465
        %3165 = vmatprep.subr.bf16.mxu0 0
        %3166 = vmatpush1.bf16.msra.mxu0 0
        %3167 = vmatprep.subr.bf16.mxu0 0
        %3168 = vmatpush1.bf16.msra.mxu0 0
        %3169 = vmatprep.subr.bf16.mxu0 0
        %3170 = vmatpush1.bf16.msra.mxu0 0
        %3171 = vmatprep.subr.bf16.mxu0 0
        %3172 = vmatpush1.bf16.msra.mxu0 0
        %3173 = vmatprep.subr.bf16.mxu0 0
        %3174 = vmatpush1.bf16.msra.mxu0 0
        %3175 = vmatprep.subr.bf16.mxu0 0
        %3176 = vmatpush1.bf16.msra.mxu0 0
        %3177 = vmatprep.subr.bf16.mxu0 0
        %3178 = vmatpush1.bf16.msra.mxu0 0
        %3179 = vmatprep.subr.bf16.mxu0 0
        %3180 = vmatpush1.bf16.msra.mxu0 0
        %3181 = vmatprep.subr.bf16.mxu0 0
        %3182 = vmatpush1.bf16.msra.mxu0 0
        %3183 = vmatprep.subr.bf16.mxu0 0
        %3184 = vmatpush1.bf16.msra.mxu0 0
        %3185 = vmatprep.subr.bf16.mxu0 0
        %3186 = vmatpush1.bf16.msra.mxu0 0
        %3187 = vmatprep.subr.bf16.mxu0 0
        %3188 = vmatpush1.bf16.msra.mxu0 0
        %3189 = vmatprep.subr.bf16.mxu0 0
        %3190 = vmatpush1.bf16.msra.mxu0 0
        %3191 = vmatprep.subr.bf16.mxu0 0
        %3192 = vmatpush1.bf16.msra.mxu0 0
        %3193 = vmatprep.subr.bf16.mxu0 0
        %3194 = vmatpush1.bf16.msra.mxu0 0
        %3195 = vmatprep.mubr.bf16.mxu0 0
        %3196 = vmatmul.mubr.bf16.gmra.mrb[0].mxu0 %v3161
        %v3197 = vpop.f32.mrb[0].mxu0
        %v3198 = vadd.f32 0.0, %v3197
        %v3199 = vpop.f32.mrb[0].mxu0
        %v3200 = vpop.f32.mrb[0].mxu0
        %v3201 = vpop.f32.mrb[0].mxu0
        %3202 = vdwg.mxu0
        %v3203 = vpack.c.bf16 %v3198, %v3198
        %3204 = vmatprep.subr.bf16.mxu0 0
        %3205 = vmatpush1.bf16.msra.mxu0 %v516
        %3206 = vmatprep.subr.bf16.mxu0 0
        %3207 = vmatpush1.bf16.msra.mxu0 0
        %3208 = vmatprep.subr.bf16.mxu0 0
        %3209 = vmatpush1.bf16.msra.mxu0 0
        %3210 = vmatprep.subr.bf16.mxu0 0
        %3211 = vmatpush1.bf16.msra.mxu0 0
        %3212 = vmatprep.subr.bf16.mxu0 0
        %3213 = vmatpush1.bf16.msra.mxu0 0
        %3214 = vmatprep.subr.bf16.mxu0 0
        %3215 = vmatpush1.bf16.msra.mxu0 0
        %3216 = vmatprep.subr.bf16.mxu0 0
        %3217 = vmatpush1.bf16.msra.mxu0 0
        %3218 = vmatprep.subr.bf16.mxu0 0
        %3219 = vmatpush1.bf16.msra.mxu0 0
        %3220 = vmatprep.subr.bf16.mxu0 0
        %3221 = vmatpush1.bf16.msra.mxu0 0
        %3222 = vmatprep.subr.bf16.mxu0 0
        %3223 = vmatpush1.bf16.msra.mxu0 0
        %3224 = vmatprep.subr.bf16.mxu0 0
        %3225 = vmatpush1.bf16.msra.mxu0 0
        %3226 = vmatprep.subr.bf16.mxu0 0
        %3227 = vmatpush1.bf16.msra.mxu0 0
        %3228 = vmatprep.subr.bf16.mxu0 0
        %3229 = vmatpush1.bf16.msra.mxu0 0
        %3230 = vmatprep.subr.bf16.mxu0 0
        %3231 = vmatpush1.bf16.msra.mxu0 0
        %3232 = vmatprep.subr.bf16.mxu0 0
        %3233 = vmatpush1.bf16.msra.mxu0 0
        %3234 = vmatprep.subr.bf16.mxu0 0
        %3235 = vmatpush1.bf16.msra.mxu0 0
        %3236 = vmatprep.mubr.bf16.mxu0 0
        %3237 = vmatmul.mubr.bf16.gmra.mrb[0].mxu0 %v3161
        %v3238 = vpop.f32.mrb[0].mxu0
        %v3239 = vadd.f32 0.0, %v3238
        %v3240 = vpop.f32.mrb[0].mxu0
        %v3241 = vpop.f32.mrb[0].mxu0
        %v3242 = vpop.f32.mrb[0].mxu0
        %3243 = vdwg.mxu0
        %v3244 = vpack.c.bf16 %v3239, %v3239
        %v3245 = vld [vmem:[%s2] sm:$0x3]
        %v3246 = vld [vmem:[%s560] sm:$0x3]
        %v3248 = vsel %vm562, %v3246, 0
        %v3251 = vsel %vm566, %v3244, 0
        %3253 = vmatprep.subr.bf16.mxu0 0
        %3254 = vmatpush1.bf16.msra.mxu0 %v3251
        %3255 = vmatprep.subr.bf16.mxu0 0
        %3256 = vmatpush1.bf16.msra.mxu0 0
        %3257 = vmatprep.subr.bf16.mxu0 0
        %3258 = vmatpush1.bf16.msra.mxu0 0
        %3259 = vmatprep.subr.bf16.mxu0 0
        %3260 = vmatpush1.bf16.msra.mxu0 0
        %3261 = vmatprep.subr.bf16.mxu0 0
        %3262 = vmatpush1.bf16.msra.mxu0 0
        %3263 = vmatprep.subr.bf16.mxu0 0
        %3264 = vmatpush1.bf16.msra.mxu0 0
        %3265 = vmatprep.subr.bf16.mxu0 0
        %3266 = vmatpush1.bf16.msra.mxu0 0
        %3267 = vmatprep.subr.bf16.mxu0 0
        %3268 = vmatpush1.bf16.msra.mxu0 0
        %3269 = vmatprep.subr.bf16.mxu0 0
        %3270 = vmatpush1.bf16.msra.mxu0 0
        %3271 = vmatprep.subr.bf16.mxu0 0
        %3272 = vmatpush1.bf16.msra.mxu0 0
        %3273 = vmatprep.subr.bf16.mxu0 0
        %3274 = vmatpush1.bf16.msra.mxu0 0
        %3275 = vmatprep.subr.bf16.mxu0 0
        %3276 = vmatpush1.bf16.msra.mxu0 0
        %3277 = vmatprep.subr.bf16.mxu0 0
        %3278 = vmatpush1.bf16.msra.mxu0 0
        %3279 = vmatprep.subr.bf16.mxu0 0
        %3280 = vmatpush1.bf16.msra.mxu0 0
        %3281 = vmatprep.subr.bf16.mxu0 0
        %3282 = vmatpush1.bf16.msra.mxu0 0
        %3283 = vmatprep.subr.bf16.mxu0 0
        %3284 = vmatpush1.bf16.msra.mxu0 0
        %3285 = vmatprep.mubr.bf16.mxu0 0
        %3286 = vmatmul.mubr.bf16.gmra.mrb[0].mxu0 %v3248
        %v3287 = vpop.f32.mrb[0].mxu0
        %v3288 = vadd.f32 0.0, %v3287
        %v3289 = vpop.f32.mrb[0].mxu0
        %v3290 = vpop.f32.mrb[0].mxu0
        %v3291 = vpop.f32.mrb[0].mxu0
        %3292 = vdwg.mxu0
        %v3294 = vsel %vm562, %v3245, 0
        %v3297 = vsel %vm566, %v3203, 0
        %3299 = vmatprep.subr.bf16.mxu0 0
        %3300 = vmatpush1.bf16.msra.mxu0 %v3297
        %3301 = vmatprep.subr.bf16.mxu0 0
        %3302 = vmatpush1.bf16.msra.mxu0 0
        %3303 = vmatprep.subr.bf16.mxu0 0
        %3304 = vmatpush1.bf16.msra.mxu0 0
        %3305 = vmatprep.subr.bf16.mxu0 0
        %3306 = vmatpush1.bf16.msra.mxu0 0
        %3307 = vmatprep.subr.bf16.mxu0 0
        %3308 = vmatpush1.bf16.msra.mxu0 0
        %3309 = vmatprep.subr.bf16.mxu0 0
        %3310 = vmatpush1.bf16.msra.mxu0 0
        %3311 = vmatprep.subr.bf16.mxu0 0
        %3312 = vmatpush1.bf16.msra.mxu0 0
        %3313 = vmatprep.subr.bf16.mxu0 0
        %3314 = vmatpush1.bf16.msra.mxu0 0
        %3315 = vmatprep.subr.bf16.mxu0 0
        %3316 = vmatpush1.bf16.msra.mxu0 0
        %3317 = vmatprep.subr.bf16.mxu0 0
        %3318 = vmatpush1.bf16.msra.mxu0 0
        %3319 = vmatprep.subr.bf16.mxu0 0
        %3320 = vmatpush1.bf16.msra.mxu0 0
        %3321 = vmatprep.subr.bf16.mxu0 0
        %3322 = vmatpush1.bf16.msra.mxu0 0
        %3323 = vmatprep.subr.bf16.mxu0 0
        %3324 = vmatpush1.bf16.msra.mxu0 0
        %3325 = vmatprep.subr.bf16.mxu0 0
        %3326 = vmatpush1.bf16.msra.mxu0 0
        %3327 = vmatprep.subr.bf16.mxu0 0
        %3328 = vmatpush1.bf16.msra.mxu0 0
        %3329 = vmatprep.subr.bf16.mxu0 0
        %3330 = vmatpush1.bf16.msra.mxu0 0
        %3331 = vmatprep.mubr.bf16.mxu0 0
        %3332 = vmatmul.mubr.bf16.gmra.mrb[0].mxu0 %v3294
        %v3333 = vpop.f32.mrb[0].mxu0
        %v3334 = vadd.f32 %v3288, %v3333
        %v3335 = vpop.f32.mrb[0].mxu0
        %v3336 = vpop.f32.mrb[0].mxu0
        %v3337 = vpop.f32.mrb[0].mxu0
        %3338 = vdwg.mxu0
        %v3339 = vadd.f32 %v3334, %v659
        %v3342 = vunpack.c.l.s4 1966171168
        %v3343 = vunpack.c.0.s8 %v3342
        %v3344 = vlaneseq
        %v3345 = vshrl.u32 %v3344, 7
        %v3346 = vsub.s32 %v3343, %v3345
        %v3347 = vrot.slane %v3339, %v3346
        %v3348 = vcombine.high %v3347, %v3347
        %v3350 = vunpack.c.l.s4 1966171168
        %v3351 = vunpack.c.0.s8 %v3350
        %v3352 = vlaneseq
        %v3353 = vshrl.u32 %v3352, 7
        %v3354 = vsub.s32 %v3351, %v3353
        %v3355 = vrot.slane %v3347, %v3354
        %v3357 = vunpack.c.l.s4 1966171168
        %v3358 = vunpack.c.0.s8 %v3357
        %v3359 = vlaneseq
        %v3360 = vshrl.u32 %v3359, 7
        %v3361 = vsub.s32 %v3358, %v3360
        %v3362 = vrot.slane %v3348, %v3361
        %v3363 = vcombine.high %v3355, %v3355
        %v3364 = vcombine.high %v3362, %v3362
        %3369 = vst.msk [vmem:[%s691 + $0xe] sm:$0x1] %vm692, %v3355
        %3370 = vst.msk [vmem:[%s691 + $0x1e] sm:$0x1] %vm692, %v3362
        %3371 = vst.msk [vmem:[%s691 + $0x2e] sm:$0x1] %vm692, %v3363
        %3372 = vst.msk [vmem:[%s691 + $0x3e] sm:$0x1] %vm692, %v3364
        %v3373 = vld [vmem:[%s697] sm:$0x3]
        %v3374 = vld [vmem:[%s699] sm:$0x3]
        %v3376 = vsel %vm562, %v3374, 0
        %3378 = vmatprep.subr.bf16.mxu0 0
        %3379 = vmatpush1.bf16.msra.mxu0 %v3251
        %3380 = vmatprep.subr.bf16.mxu0 0
        %3381 = vmatpush1.bf16.msra.mxu0 0
        %3382 = vmatprep.subr.bf16.mxu0 0
        %3383 = vmatpush1.bf16.msra.mxu0 0
        %3384 = vmatprep.subr.bf16.mxu0 0
        %3385 = vmatpush1.bf16.msra.mxu0 0
        %3386 = vmatprep.subr.bf16.mxu0 0
        %3387 = vmatpush1.bf16.msra.mxu0 0
        %3388 = vmatprep.subr.bf16.mxu0 0
        %3389 = vmatpush1.bf16.msra.mxu0 0
        %3390 = vmatprep.subr.bf16.mxu0 0
        %3391 = vmatpush1.bf16.msra.mxu0 0
        %3392 = vmatprep.subr.bf16.mxu0 0
        %3393 = vmatpush1.bf16.msra.mxu0 0
        %3394 = vmatprep.subr.bf16.mxu0 0
        %3395 = vmatpush1.bf16.msra.mxu0 0
        %3396 = vmatprep.subr.bf16.mxu0 0
        %3397 = vmatpush1.bf16.msra.mxu0 0
        %3398 = vmatprep.subr.bf16.mxu0 0
        %3399 = vmatpush1.bf16.msra.mxu0 0
        %3400 = vmatprep.subr.bf16.mxu0 0
        %3401 = vmatpush1.bf16.msra.mxu0 0
        %3402 = vmatprep.subr.bf16.mxu0 0
        %3403 = vmatpush1.bf16.msra.mxu0 0
        %3404 = vmatprep.subr.bf16.mxu0 0
        %3405 = vmatpush1.bf16.msra.mxu0 0
        %3406 = vmatprep.subr.bf16.mxu0 0
        %3407 = vmatpush1.bf16.msra.mxu0 0
        %3408 = vmatprep.subr.bf16.mxu0 0
        %3409 = vmatpush1.bf16.msra.mxu0 0
        %3410 = vmatprep.mubr.bf16.mxu0 0
        %3411 = vmatmul.mubr.bf16.gmra.mrb[0].mxu0 %v3376
        %v3412 = vpop.f32.mrb[0].mxu0
        %v3413 = vadd.f32 0.0, %v3412
        %v3414 = vpop.f32.mrb[0].mxu0
        %v3415 = vpop.f32.mrb[0].mxu0
        %v3416 = vpop.f32.mrb[0].mxu0
        %3417 = vdwg.mxu0
        %v3419 = vsel %vm562, %v3373, 0
        %3421 = vmatprep.subr.bf16.mxu0 0
        %3422 = vmatpush1.bf16.msra.mxu0 %v3297
        %3423 = vmatprep.subr.bf16.mxu0 0
        %3424 = vmatpush1.bf16.msra.mxu0 0
        %3425 = vmatprep.subr.bf16.mxu0 0
        %3426 = vmatpush1.bf16.msra.mxu0 0
        %3427 = vmatprep.subr.bf16.mxu0 0
        %3428 = vmatpush1.bf16.msra.mxu0 0
        %3429 = vmatprep.subr.bf16.mxu0 0
        %3430 = vmatpush1.bf16.msra.mxu0 0
        %3431 = vmatprep.subr.bf16.mxu0 0
        %3432 = vmatpush1.bf16.msra.mxu0 0
        %3433 = vmatprep.subr.bf16.mxu0 0
        %3434 = vmatpush1.bf16.msra.mxu0 0
        %3435 = vmatprep.subr.bf16.mxu0 0
        %3436 = vmatpush1.bf16.msra.mxu0 0
        %3437 = vmatprep.subr.bf16.mxu0 0
        %3438 = vmatpush1.bf16.msra.mxu0 0
        %3439 = vmatprep.subr.bf16.mxu0 0
        %3440 = vmatpush1.bf16.msra.mxu0 0
        %3441 = vmatprep.subr.bf16.mxu0 0
        %3442 = vmatpush1.bf16.msra.mxu0 0
        %3443 = vmatprep.subr.bf16.mxu0 0
        %3444 = vmatpush1.bf16.msra.mxu0 0
        %3445 = vmatprep.subr.bf16.mxu0 0
        %3446 = vmatpush1.bf16.msra.mxu0 0
        %3447 = vmatprep.subr.bf16.mxu0 0
        %3448 = vmatpush1.bf16.msra.mxu0 0
        %3449 = vmatprep.subr.bf16.mxu0 0
        %3450 = vmatpush1.bf16.msra.mxu0 0
        %3451 = vmatprep.subr.bf16.mxu0 0
        %3452 = vmatpush1.bf16.msra.mxu0 0
        %3453 = vmatprep.mubr.bf16.mxu0 0
        %3454 = vmatmul.mubr.bf16.gmra.mrb[0].mxu0 %v3419
        %v3455 = vpop.f32.mrb[0].mxu0
        %v3456 = vadd.f32 %v3413, %v3455
        %v3457 = vpop.f32.mrb[0].mxu0
        %v3458 = vpop.f32.mrb[0].mxu0
        %v3459 = vpop.f32.mrb[0].mxu0
        %3460 = vdwg.mxu0
        %v3461 = vadd.f32 %v3456, %v659
        %v3464 = vunpack.c.l.s4 1966171168
        %v3465 = vunpack.c.0.s8 %v3464
        %v3466 = vlaneseq
        %v3467 = vshrl.u32 %v3466, 7
        %v3468 = vsub.s32 %v3465, %v3467
        %v3469 = vrot.slane %v3461, %v3468
        %v3470 = vcombine.high %v3469, %v3469
        %v3472 = vunpack.c.l.s4 1966171168
        %v3473 = vunpack.c.0.s8 %v3472
        %v3474 = vlaneseq
        %v3475 = vshrl.u32 %v3474, 7
        %v3476 = vsub.s32 %v3473, %v3475
        %v3477 = vrot.slane %v3469, %v3476
        %v3479 = vunpack.c.l.s4 1966171168
        %v3480 = vunpack.c.0.s8 %v3479
        %v3481 = vlaneseq
        %v3482 = vshrl.u32 %v3481, 7
        %v3483 = vsub.s32 %v3480, %v3482
        %v3484 = vrot.slane %v3470, %v3483
        %v3485 = vcombine.high %v3477, %v3477
        %v3486 = vcombine.high %v3484, %v3484
        %3491 = vst.msk [vmem:[%s691 + $0xf] sm:$0x1] %vm692, %v3477
        %3492 = vst.msk [vmem:[%s691 + $0x1f] sm:$0x1] %vm692, %v3484
        %3493 = vst.msk [vmem:[%s691 + $0x2f] sm:$0x1] %vm692, %v3485
        %3494 = vst.msk [vmem:[%s691 + $0x3f] sm:$0x1] %vm692, %v3486
        %s3495 = sand.u32 %s158, 1
        %s3496 = scalar_lea.sflag [#allocation4], %s3495
        %s3497 = sand.u32 %s158, 1
        %s3498 = smul.addr %s3497, 160
        %s3499 = scalar_lea.vmem [#allocation3], %s3498
        // Predicated region
        $region79: #{up_forward.1} parent=73 // pred_check
          %p3500 = pneg %p168
        $region80: #{up_forward.1} parent=73 // pred_check_branch
          %3502 = sbr.rel (%p3500) target = $region82
        $region81: #{up_forward.1} parent=73 // pred_region
          #allocation6 [shape = 'u32[6]{0}', space=smem, size = 0x18, scoped, tag = 'DMA stride descriptor']
          %s3503 = smul.u32 2, %s24
          %s3505 = ssub.s32 2560, 2560
          %3506 = vsyncadd %s3496, %s3505
          %s3507 = smul.addr %s23, 40
          %s3508 = sadd.s32 %s3503, %s3507
          %s3509 = smul.addr %s3508, 128
          %s3510 = scalar_lea.hbm %s5, %s3509
          %s3512 = sshll.u32 1, 14
          %s3513 = sxor.u32 4294967295, %s3512
          %s3516 = sshll.u32 7, 18
          %s3517 = sxor.u32 4294967295, %s3516
          %s3518 = sand.u32 0, %s3517
          %s3520 = sor.u32 %s3518, 0
          %s3522 = sshll.u32 3, 24
          %s3523 = sxor.u32 4294967295, %s3522
          %s3524 = sand.u32 %s3520, %s3523
          %s3526 = sor.u32 %s3524, 0
          %s3527 = sshll.u32 %s3499, 4
          %s3528 = int_to_ptr.vmem [resolvable:$true] %s3527
          %3534 = sst [smem:[#allocation6]] 256
          %s3535 = scalar_lea.smem [#allocation6], 1
          %3536 = sst [smem:[%s3535]] 512
          %s3537 = scalar_lea.smem [#allocation6], 2
          %3538 = sst [smem:[%s3537]] 2
          %s3539 = scalar_lea.smem [#allocation6], 3
          %3540 = sst [smem:[%s3539]] 128
          %s3541 = scalar_lea.smem [#allocation6], 4
          %3542 = sst [smem:[%s3541]] 128
          %s3543 = scalar_lea.smem [#allocation6], 5
          %3544 = sst [smem:[%s3543]] 8
          %3546 = dma.general %s3528, 2560, %s3510, %s3496, [#allocation5], [#allocation6], %s3526, 0
        $region82: #{up_forward.1} parent=73 // pred_fallthru
          _
      $region74: #{up_forward.1} parent=5 // pred_fallthru
        _
      %p3547 = scmp.le.s32.totalorder 2, %s14
      // Predicated region
      $region83: #{up_forward.1} parent=5 // pred_check
        %p3548 = pneg %p3547
      $region84: #{up_forward.1} parent=5 // pred_check_branch
        %3550 = sbr.rel (%p3548) target = $region86
      $region85: #{up_forward.1} parent=5 // pred_region
        %s3551 = ssub.s32 %s14, 2
        // Predicated region
        $region87: #{up_forward.1} parent=85 // pred_check
          %p3552 = pneg %p174
        $region88: #{up_forward.1} parent=85 // pred_check_branch
          %3554 = sbr.rel (%p3552) target = $region90
        $region89: #{up_forward.1} parent=85 // pred_region
          %s3555 = sand.u32 %s159, 1
          %s3556 = scalar_lea.sflag [#allocation4], %s3555
          %s3557 = sand.u32 %s159, 1
          %s3558 = smul.addr %s3557, 160
          %s3559 = scalar_lea.vmem [#allocation3], %s3558
          %3560 = dma.done %s3556, 2560
        $region90: #{up_forward.1} parent=85 // pred_fallthru
          _
      $region86: #{up_forward.1} parent=5 // pred_fallthru
        _
    $region6: #{up_forward.1} parent=1 // loop_footer
      %s18 = sadd.s32 1, %s14
    $region7: #{up_forward.1} parent=1 // loop_footer_branch
      %13 = sbr.rel target = $region3
    $region8: #{up_forward.1} parent=1 // loop_exit
      _
    %3561 = vsyncpa [#allocation4], 1
    %s3562 = scalar_lea.sflag [#allocation4], 1
    %3563 = vsyncpa %s3562, 1

</llo_original>
